<compile_context>
chip_gen: v6e
topology: v6e:2x2x1
jax: 0.10.0
libtpu: 0.0.40
codegen_flags: <defaults>
</compile_context>

<pallas_src>
import jax
import jax.numpy as jnp
import numpy as np
from jax.experimental import pallas as pl
from jax.experimental.pallas import tpu as pltpu


def fold_bn(bn, eps=1e-5):
    scale = bn["gamma"] / jnp.sqrt(bn["var"] + eps)
    shift = bn["beta"] - bn["mean"] * scale
    return scale, shift


def _images_per_step(n, hw, max_lanes=2048):
    """Largest B dividing N with B*HW <= max_lanes, keeping >= 2 grid steps
    when possible (so both TensorCores of a multi-TC chip get work)."""
    best = 1
    for b in range(1, n + 1):
        if b * hw > max_lanes:
            break
        if n % b:
            continue
        if n // b >= 2 or n == 1:
            best = b
    return best


@jax.jit
def basic_block_forward(x, params):
    """BasicBlock.forward (method='Conv', stride=1, downsample=None), eval BN.

    x: (N, C, H, W) float32 (NCHW, PyTorch layout).
    out = relu(bn1(conv1(x))); out = relu(bn2(conv2(out)) + x)
    """
    N, Cin, H, W = x.shape
    w1, w2 = params["w1"], params["w2"]          # (3,3,Cin,Cmid), (3,3,Cmid,Cout)
    Cmid, Cout = w1.shape[-1], w2.shape[-1]
    assert Cin == Cmid == Cout, "stride=1 / downsample=None implies inplanes == planes"
    C = Cin
    HW = H * W

    B = _images_per_step(N, HW)                  # images per grid step
    G = N // B                                   # grid steps
    BHW = B * HW                                 # lane width per step

    s1, b1 = fold_bn(params["bn1"])
    s2, b2 = fold_bn(params["bn2"])

    # --- wrapper-side layout plumbing (cheap reshapes / transposes / casts) --
    # Lane-dense activations: B images side by side on the lane axis.
    x2d = x.reshape(G, B, C, HW).transpose(0, 2, 1, 3).reshape(G, C, BHW)
    # im2col weights, K ordered (kh, kw, cin); bf16 operands for the MXU.
    w1m = w1.transpose(3, 0, 1, 2).reshape(Cmid, 9 * Cin).astype(jnp.bfloat16)
    w2m = w2.transpose(3, 0, 1, 2).reshape(Cout, 9 * Cmid).astype(jnp.bfloat16)
    s1c = s1.reshape(Cmid, 1).astype(jnp.float32)
    b1c = b1.reshape(Cmid, 1).astype(jnp.float32)
    s2c = s2.reshape(Cout, 1).astype(jnp.float32)
    b2c = b2.reshape(Cout, 1).astype(jnp.float32)

    # Per-tap validity masks over the flattened (B images | H*W) lane axis.
    # A tap (kh, kw) that would read outside its own image (padding rows /
    # columns) is zeroed; this also kills cross-image leakage now that B
    # images share the lane axis.
    r = jnp.arange(HW, dtype=jnp.int32) // W
    c = jnp.arange(HW, dtype=jnp.int32) % W
    taps = []
    for kh in range(3):
        for kw in range(3):
            dr, dc = kh - 1, kw - 1
            taps.append((r + dr >= 0) & (r + dr < H) & (c + dc >= 0) & (c + dc < W))
    masks = jnp.tile(jnp.stack(taps).astype(jnp.bfloat16), (1, B))   # (9, BHW)

    # Flattened, row-padded scratch: interior starts at lane PAD0 (vreg
    # aligned).  The halos only need to be *finite* (every out-of-image tap is
    # masked) but are zeroed so 0 * NaN cannot leak through.
    PAD0 = 128
    PADR = 128
    assert W + 1 <= PAD0 and W + 1 <= PADR
    LPAD = PAD0 + BHW + PADR

    def kernel(x_ref, m_ref, w1_ref, s1_ref, b1_ref, w2_ref, s2_ref, b2_ref,
               o_ref, pad_ref, patch_ref):
        # Halo zeroing: just the two 128-lane slabs (a few vector stores), done
        # every step.  Not a one-time program_id==0 init: with "parallel"
        # semantics each TensorCore has its own scratch and only one core ever
        # runs program_id == 0.
        pad_ref[:, :PAD0] = jnp.zeros((C, PAD0), jnp.bfloat16)
        pad_ref[:, PAD0 + BHW:] = jnp.zeros((C, PADR), jnp.bfloat16)

        def conv3x3(w_ref):
            # im2col: write the 9 shifted windows of the (already bf16) padded
            # interior straight into the persistent patches scratch (no
            # concatenate copy), then one MXU matmul with K = 9*C, f32 acc.
            # TODO(synk): if tap extraction ever saturates XLU/vld, build the 3
            # row-shifted windows once and derive the +-1 column shifts with
            # pltpu.roll (shares rotates, ~2x fewer unaligned extractions).
            for kh in range(3):
                for kw in range(3):
                    t = kh * 3 + kw
                    start = PAD0 + (kh - 1) * W + (kw - 1)
                    win = pad_ref[:, start:start + BHW]
                    if t != 4:                         # centre tap never masked
                        win = win * m_ref[t:t + 1, :]
                    patch_ref[t * C:(t + 1) * C, :] = win
            return jnp.dot(w_ref[...], patch_ref[...],
                           preferred_element_type=jnp.float32)

        # conv1 -> bn1 (folded, eval) -> relu
        pad_ref[:, PAD0:PAD0 + BHW] = x_ref[0].astype(jnp.bfloat16)  # one cast
        out1 = conv3x3(w1_ref)
        out1 = jnp.maximum(out1 * s1_ref[...] + b1_ref[...], 0.0)

        # conv2 -> bn2 -> residual -> relu  (pad / patch scratches reused)
        pad_ref[:, PAD0:PAD0 + BHW] = out1.astype(jnp.bfloat16)
        out2 = conv3x3(w2_ref)
        out2 = out2 * s2_ref[...] + b2_ref[...]
        out2 = jnp.maximum(out2 + x_ref[0], 0.0)       # residual in f32

        o_ref[0] = out2.astype(o_ref.dtype)            # one dense BHW-lane store

    grid_spec = pltpu.PrefetchScalarGridSpec(
        num_scalar_prefetch=0,
        grid=(G,),
        in_specs=[
            pl.BlockSpec((1, C, BHW), lambda g: (g, 0, 0)),
            pl.BlockSpec((9, BHW), lambda g: (0, 0)),
            pl.BlockSpec((Cmid, 9 * Cin), lambda g: (0, 0)),
            pl.BlockSpec((Cmid, 1), lambda g: (0, 0)),
            pl.BlockSpec((Cmid, 1), lambda g: (0, 0)),
            pl.BlockSpec((Cout, 9 * Cmid), lambda g: (0, 0)),
            pl.BlockSpec((Cout, 1), lambda g: (0, 0)),
            pl.BlockSpec((Cout, 1), lambda g: (0, 0)),
        ],
        out_specs=pl.BlockSpec((1, Cout, BHW), lambda g: (g, 0, 0)),
        scratch_shapes=[
            pltpu.VMEM((C, LPAD), jnp.bfloat16),       # shared padded interior
            pltpu.VMEM((9 * C, BHW), jnp.bfloat16),    # im2col patches
        ],
    )

    # NOTE: at toy channel counts this kernel is overhead / VMEM-traffic bound,
    # not MXU bound, so the flop count is only a scheduling hint for XLA.
    flops = 2 * 9 * N * HW * (Cin * Cmid + Cmid * Cout)
    bytes_accessed = (x2d.size * 4 + N * Cout * HW * 4
                      + (w1m.size + w2m.size + masks.size) * 2
                      + (s1c.size + b1c.size + s2c.size + b2c.size) * 4)

    out = pl.pallas_call(
        kernel,
        out_shape=jax.ShapeDtypeStruct((G, Cout, BHW), x.dtype),
        grid_spec=grid_spec,
        compiler_params=pltpu.CompilerParams(
            dimension_semantics=("parallel",),
            vmem_limit_bytes=32 * 1024 * 1024),
        cost_estimate=pl.CostEstimate(flops=flops, transcendentals=0,
                                      bytes_accessed=bytes_accessed),
    )(x2d, masks, w1m, s1c, b1c, w2m, s2c, b2c)

    return (out.reshape(G, Cout, B, HW).transpose(0, 2, 1, 3)
               .reshape(N, Cout, H, W))


def init_basic_block_params(key, inplanes, planes):
    ks = jax.random.split(key, 10)
    fan1 = 3 * 3 * inplanes
    fan2 = 3 * 3 * planes
    return {
        "w1": jax.random.normal(ks[0], (3, 3, inplanes, planes), jnp.float32)
              * (2.0 / fan1) ** 0.5,
        "w2": jax.random.normal(ks[1], (3, 3, planes, planes), jnp.float32)
              * (2.0 / fan2) ** 0.5,
        "bn1": {
            "gamma": jax.random.uniform(ks[2], (planes,), jnp.float32, 0.5, 1.5),
            "beta": 0.1 * jax.random.normal(ks[3], (planes,), jnp.float32),
            "mean": 0.1 * jax.random.normal(ks[4], (planes,), jnp.float32),
            "var": jax.random.uniform(ks[5], (planes,), jnp.float32, 0.5, 1.5),
        },
        "bn2": {
            "gamma": jax.random.uniform(ks[6], (planes,), jnp.float32, 0.5, 1.5),
            "beta": 0.1 * jax.random.normal(ks[7], (planes,), jnp.float32),
            "mean": 0.1 * jax.random.normal(ks[8], (planes,), jnp.float32),
            "var": jax.random.uniform(ks[9], (planes,), jnp.float32, 0.5, 1.5),
        },
    }


def _reference_forward(x, params, eps=1e-5):
    """Pure-JAX reference matching the kernel's numerics: eval-mode folded BN
    and bf16 rounding applied to conv weights and conv inputs exactly where
    the kernel rounds them (so only f32 accumulation-order error remains)."""
    bf = lambda t: t.astype(jnp.bfloat16).astype(jnp.float32)

    def conv(a, w):
        return jax.lax.conv_general_dilated(
            bf(a), bf(w), window_strides=(1, 1), padding=((1, 1), (1, 1)),
            dimension_numbers=("NCHW", "HWIO", "NCHW"))

    def bn(a, p):
        s, b = fold_bn(p, eps)
        return a * s[None, :, None, None] + b[None, :, None, None]

    out = jax.nn.relu(bn(conv(x, params["w1"]), params["bn1"]))
    out = bn(conv(out, params["w2"]), params["bn2"]) + x   # residual in f32
    return jax.nn.relu(out)


if __name__ == "__main__":
    key = jax.random.PRNGKey(0)
    kx, kp = jax.random.split(key)

    # Small shapes consistent with the module (NCHW, 16x16 images).  N=8 so the
    # batched kernel runs with B=4 images per grid step and a 2-step grid.
    N, C, H, W = 8, 16, 16, 16
    x = jax.random.normal(kx, (N, C, H, W), jnp.float32)
    params = init_basic_block_params(kp, inplanes=C, planes=C)

    out = basic_block_forward(x, params)
    jax.block_until_ready(out)
    assert out.shape == (N, C, H, W) and out.dtype == jnp.float32

    # Numerical check vs a pure-JAX reference with identical bf16 rounding
    # points, so only f32 accumulation-order differences remain.
    ref = _reference_forward(x, params)
    np.testing.assert_allclose(np.asarray(out), np.asarray(ref),
                               atol=5e-3, rtol=5e-3)

    print("KERNEL_OK")
</pallas_src>

<mosaic_0001>
module attributes {stable_mosaic.version = 11 : i64} {
  func.func @kernel(%arg0: i32, %arg1: memref<1x16x1024xf32, #tpu.memory_space<vmem>>, %arg2: memref<9x1024xbf16, #tpu.memory_space<vmem>>, %arg3: memref<16x144xbf16, #tpu.memory_space<vmem>>, %arg4: memref<16x1xf32, #tpu.memory_space<vmem>>, %arg5: memref<16x1xf32, #tpu.memory_space<vmem>>, %arg6: memref<16x144xbf16, #tpu.memory_space<vmem>>, %arg7: memref<16x1xf32, #tpu.memory_space<vmem>>, %arg8: memref<16x1xf32, #tpu.memory_space<vmem>>, %arg9: memref<1x16x1024xf32, #tpu.memory_space<vmem>>, %arg10: memref<16x1280xbf16, #tpu.memory_space<vmem>>, %arg11: memref<144x1024xbf16, #tpu.memory_space<vmem>>) attributes {dimension_semantics = [#tpu.dimension_semantics<parallel>], iteration_bounds = array<i64: 2>, scalar_prefetch = 0 : i64, scratch_operands = 2 : i64, tpu.core_type = #tpu.core_type<tc>, window_params = [{transform_indices = @transform_0, window_bounds = array<i64: 1, 16, 1024>}, {pipeline_mode = #tpu.pipeline_mode<synchronous>, transform_indices = @transform_1, window_bounds = array<i64: 9, 1024>}, {pipeline_mode = #tpu.pipeline_mode<synchronous>, transform_indices = @transform_2, window_bounds = array<i64: 16, 144>}, {pipeline_mode = #tpu.pipeline_mode<synchronous>, transform_indices = @transform_3, window_bounds = array<i64: 16, 1>}, {pipeline_mode = #tpu.pipeline_mode<synchronous>, transform_indices = @transform_4, window_bounds = array<i64: 16, 1>}, {pipeline_mode = #tpu.pipeline_mode<synchronous>, transform_indices = @transform_5, window_bounds = array<i64: 16, 144>}, {pipeline_mode = #tpu.pipeline_mode<synchronous>, transform_indices = @transform_6, window_bounds = array<i64: 16, 1>}, {pipeline_mode = #tpu.pipeline_mode<synchronous>, transform_indices = @transform_7, window_bounds = array<i64: 16, 1>}, {transform_indices = @transform_8, window_bounds = array<i64: 1, 16, 1024>}]} {
    %cst = arith.constant 0.000000e+00 : bf16
    %0 = vector.broadcast %cst : bf16 to vector<16x128xbf16>
    %c0 = arith.constant 0 : index
    %c0_0 = arith.constant 0 : index
    %1 = vector.load %arg10[%c0, %c0_0] : memref<16x1280xbf16, #tpu.memory_space<vmem>>, vector<16x128xbf16>
    tpu.vector_store %arg10[%c0, %c0_0], %0 {strides = array<i32>} : memref<16x1280xbf16, #tpu.memory_space<vmem>>, vector<16x128xbf16>,
    %cst_1 = arith.constant 0.000000e+00 : bf16
    %2 = vector.broadcast %cst_1 : bf16 to vector<16x128xbf16>
    %c0_2 = arith.constant 0 : index
    %c1152 = arith.constant 1152 : index
    %3 = vector.load %arg10[%c0_2, %c1152] : memref<16x1280xbf16, #tpu.memory_space<vmem>>, vector<16x128xbf16>
    tpu.vector_store %arg10[%c0_2, %c1152], %2 {strides = array<i32>} : memref<16x1280xbf16, #tpu.memory_space<vmem>>, vector<16x128xbf16>,
    %c0_3 = arith.constant 0 : index
    %c0_4 = arith.constant 0 : index
    %c0_5 = arith.constant 0 : index
    %4 = vector.load %arg1[%c0_3, %c0_4, %c0_5] : memref<1x16x1024xf32, #tpu.memory_space<vmem>>, vector<1x16x1024xf32>
    %5 = vector.shape_cast %4 : vector<1x16x1024xf32> to vector<16x1024xf32>
    %6 = arith.truncf %5 : vector<16x1024xf32> to vector<16x1024xbf16>
    %c0_6 = arith.constant 0 : index
    %c128 = arith.constant 128 : index
    %7 = vector.load %arg10[%c0_6, %c128] : memref<16x1280xbf16, #tpu.memory_space<vmem>>, vector<16x1024xbf16>
    tpu.vector_store %arg10[%c0_6, %c128], %6 {strides = array<i32>} : memref<16x1280xbf16, #tpu.memory_space<vmem>>, vector<16x1024xbf16>,
    %c0_7 = arith.constant 0 : index
    %c111 = arith.constant 111 : index
    %8 = vector.load %arg10[%c0_7, %c111] : memref<16x1280xbf16, #tpu.memory_space<vmem>>, vector<16x1024xbf16>
    %c0_8 = arith.constant 0 : index
    %c0_9 = arith.constant 0 : index
    %9 = vector.load %arg2[%c0_8, %c0_9] : memref<9x1024xbf16, #tpu.memory_space<vmem>>, vector<1x1024xbf16>
    %10 = vector.broadcast %9 : vector<1x1024xbf16> to vector<16x1024xbf16>
    %11 = arith.mulf %8, %10 : vector<16x1024xbf16>
    %c0_10 = arith.constant 0 : index
    %c0_11 = arith.constant 0 : index
    %12 = vector.load %arg11[%c0_10, %c0_11] : memref<144x1024xbf16, #tpu.memory_space<vmem>>, vector<16x1024xbf16>
    tpu.vector_store %arg11[%c0_10, %c0_11], %11 {strides = array<i32>} : memref<144x1024xbf16, #tpu.memory_space<vmem>>, vector<16x1024xbf16>,
    %c0_12 = arith.constant 0 : index
    %c112 = arith.constant 112 : index
    %13 = vector.load %arg10[%c0_12, %c112] : memref<16x1280xbf16, #tpu.memory_space<vmem>>, vector<16x1024xbf16>
    %c1 = arith.constant 1 : index
    %c0_13 = arith.constant 0 : index
    %14 = vector.load %arg2[%c1, %c0_13] : memref<9x1024xbf16, #tpu.memory_space<vmem>>, vector<1x1024xbf16>
    %15 = vector.broadcast %14 : vector<1x1024xbf16> to vector<16x1024xbf16>
    %16 = arith.mulf %13, %15 : vector<16x1024xbf16>
    %c16 = arith.constant 16 : index
    %c0_14 = arith.constant 0 : index
    %17 = vector.load %arg11[%c16, %c0_14] : memref<144x1024xbf16, #tpu.memory_space<vmem>>, vector<16x1024xbf16>
    tpu.vector_store %arg11[%c16, %c0_14], %16 {strides = array<i32>} : memref<144x1024xbf16, #tpu.memory_space<vmem>>, vector<16x1024xbf16>,
    %c0_15 = arith.constant 0 : index
    %c113 = arith.constant 113 : index
    %18 = vector.load %arg10[%c0_15, %c113] : memref<16x1280xbf16, #tpu.memory_space<vmem>>, vector<16x1024xbf16>
    %c2 = arith.constant 2 : index
    %c0_16 = arith.constant 0 : index
    %19 = vector.load %arg2[%c2, %c0_16] : memref<9x1024xbf16, #tpu.memory_space<vmem>>, vector<1x1024xbf16>
    %20 = vector.broadcast %19 : vector<1x1024xbf16> to vector<16x1024xbf16>
    %21 = arith.mulf %18, %20 : vector<16x1024xbf16>
    %c32 = arith.constant 32 : index
    %c0_17 = arith.constant 0 : index
    %22 = vector.load %arg11[%c32, %c0_17] : memref<144x1024xbf16, #tpu.memory_space<vmem>>, vector<16x1024xbf16>
    tpu.vector_store %arg11[%c32, %c0_17], %21 {strides = array<i32>} : memref<144x1024xbf16, #tpu.memory_space<vmem>>, vector<16x1024xbf16>,
    %c0_18 = arith.constant 0 : index
    %c127 = arith.constant 127 : index
    %23 = vector.load %arg10[%c0_18, %c127] : memref<16x1280xbf16, #tpu.memory_space<vmem>>, vector<16x1024xbf16>
    %c3 = arith.constant 3 : index
    %c0_19 = arith.constant 0 : index
    %24 = vector.load %arg2[%c3, %c0_19] : memref<9x1024xbf16, #tpu.memory_space<vmem>>, vector<1x1024xbf16>
    %25 = vector.broadcast %24 : vector<1x1024xbf16> to vector<16x1024xbf16>
    %26 = arith.mulf %23, %25 : vector<16x1024xbf16>
    %c48 = arith.constant 48 : index
    %c0_20 = arith.constant 0 : index
    %27 = vector.load %arg11[%c48, %c0_20] : memref<144x1024xbf16, #tpu.memory_space<vmem>>, vector<16x1024xbf16>
    tpu.vector_store %arg11[%c48, %c0_20], %26 {strides = array<i32>} : memref<144x1024xbf16, #tpu.memory_space<vmem>>, vector<16x1024xbf16>,
    %c0_21 = arith.constant 0 : index
    %c128_22 = arith.constant 128 : index
    %28 = vector.load %arg10[%c0_21, %c128_22] : memref<16x1280xbf16, #tpu.memory_space<vmem>>, vector<16x1024xbf16>
    %c64 = arith.constant 64 : index
    %c0_23 = arith.constant 0 : index
    %29 = vector.load %arg11[%c64, %c0_23] : memref<144x1024xbf16, #tpu.memory_space<vmem>>, vector<16x1024xbf16>
    tpu.vector_store %arg11[%c64, %c0_23], %28 {strides = array<i32>} : memref<144x1024xbf16, #tpu.memory_space<vmem>>, vector<16x1024xbf16>,
    %c0_24 = arith.constant 0 : index
    %c129 = arith.constant 129 : index
    %30 = vector.load %arg10[%c0_24, %c129] : memref<16x1280xbf16, #tpu.memory_space<vmem>>, vector<16x1024xbf16>
    %c5 = arith.constant 5 : index
    %c0_25 = arith.constant 0 : index
    %31 = vector.load %arg2[%c5, %c0_25] : memref<9x1024xbf16, #tpu.memory_space<vmem>>, vector<1x1024xbf16>
    %32 = vector.broadcast %31 : vector<1x1024xbf16> to vector<16x1024xbf16>
    %33 = arith.mulf %30, %32 : vector<16x1024xbf16>
    %c80 = arith.constant 80 : index
    %c0_26 = arith.constant 0 : index
    %34 = vector.load %arg11[%c80, %c0_26] : memref<144x1024xbf16, #tpu.memory_space<vmem>>, vector<16x1024xbf16>
    tpu.vector_store %arg11[%c80, %c0_26], %33 {strides = array<i32>} : memref<144x1024xbf16, #tpu.memory_space<vmem>>, vector<16x1024xbf16>,
    %c0_27 = arith.constant 0 : index
    %c143 = arith.constant 143 : index
    %35 = vector.load %arg10[%c0_27, %c143] : memref<16x1280xbf16, #tpu.memory_space<vmem>>, vector<16x1024xbf16>
    %c6 = arith.constant 6 : index
    %c0_28 = arith.constant 0 : index
    %36 = vector.load %arg2[%c6, %c0_28] : memref<9x1024xbf16, #tpu.memory_space<vmem>>, vector<1x1024xbf16>
    %37 = vector.broadcast %36 : vector<1x1024xbf16> to vector<16x1024xbf16>
    %38 = arith.mulf %35, %37 : vector<16x1024xbf16>
    %c96 = arith.constant 96 : index
    %c0_29 = arith.constant 0 : index
    %39 = vector.load %arg11[%c96, %c0_29] : memref<144x1024xbf16, #tpu.memory_space<vmem>>, vector<16x1024xbf16>
    tpu.vector_store %arg11[%c96, %c0_29], %38 {strides = array<i32>} : memref<144x1024xbf16, #tpu.memory_space<vmem>>, vector<16x1024xbf16>,
    %c0_30 = arith.constant 0 : index
    %c144 = arith.constant 144 : index
    %40 = vector.load %arg10[%c0_30, %c144] : memref<16x1280xbf16, #tpu.memory_space<vmem>>, vector<16x1024xbf16>
    %c7 = arith.constant 7 : index
    %c0_31 = arith.constant 0 : index
    %41 = vector.load %arg2[%c7, %c0_31] : memref<9x1024xbf16, #tpu.memory_space<vmem>>, vector<1x1024xbf16>
    %42 = vector.broadcast %41 : vector<1x1024xbf16> to vector<16x1024xbf16>
    %43 = arith.mulf %40, %42 : vector<16x1024xbf16>
    %c112_32 = arith.constant 112 : index
    %c0_33 = arith.constant 0 : index
    %44 = vector.load %arg11[%c112_32, %c0_33] : memref<144x1024xbf16, #tpu.memory_space<vmem>>, vector<16x1024xbf16>
    tpu.vector_store %arg11[%c112_32, %c0_33], %43 {strides = array<i32>} : memref<144x1024xbf16, #tpu.memory_space<vmem>>, vector<16x1024xbf16>,
    %c0_34 = arith.constant 0 : index
    %c145 = arith.constant 145 : index
    %45 = vector.load %arg10[%c0_34, %c145] : memref<16x1280xbf16, #tpu.memory_space<vmem>>, vector<16x1024xbf16>
    %c8 = arith.constant 8 : index
    %c0_35 = arith.constant 0 : index
    %46 = vector.load %arg2[%c8, %c0_35] : memref<9x1024xbf16, #tpu.memory_space<vmem>>, vector<1x1024xbf16>
    %47 = vector.broadcast %46 : vector<1x1024xbf16> to vector<16x1024xbf16>
    %48 = arith.mulf %45, %47 : vector<16x1024xbf16>
    %c128_36 = arith.constant 128 : index
    %c0_37 = arith.constant 0 : index
    %49 = vector.load %arg11[%c128_36, %c0_37] : memref<144x1024xbf16, #tpu.memory_space<vmem>>, vector<16x1024xbf16>
    tpu.vector_store %arg11[%c128_36, %c0_37], %48 {strides = array<i32>} : memref<144x1024xbf16, #tpu.memory_space<vmem>>, vector<16x1024xbf16>,
    %c0_38 = arith.constant 0 : index
    %c0_39 = arith.constant 0 : index
    %50 = vector.load %arg3[%c0_38, %c0_39] : memref<16x144xbf16, #tpu.memory_space<vmem>>, vector<16x144xbf16>
    %c0_40 = arith.constant 0 : index
    %c0_41 = arith.constant 0 : index
    %51 = vector.load %arg11[%c0_40, %c0_41] : memref<144x1024xbf16, #tpu.memory_space<vmem>>, vector<144x1024xbf16>
    %cst_42 = arith.constant dense<0.000000e+00> : vector<16x1024xf32>
    %52 = tpu.matmul %50, %51, %cst_42 {dimension_numbers = #tpu.dot_dimension_numbers<[1], [0], [0], [1], [0, 0, 1, 1], [], []>} : vector<16x144xbf16>, vector<144x1024xbf16>, vector<16x1024xf32> -> vector<16x1024xf32>
    %c0_43 = arith.constant 0 : index
    %c0_44 = arith.constant 0 : index
    %53 = vector.load %arg4[%c0_43, %c0_44] : memref<16x1xf32, #tpu.memory_space<vmem>>, vector<16x1xf32>
    %54 = vector.broadcast %53 : vector<16x1xf32> to vector<16x1024xf32>
    %55 = arith.mulf %52, %54 : vector<16x1024xf32>
    %c0_45 = arith.constant 0 : index
    %c0_46 = arith.constant 0 : index
    %56 = vector.load %arg5[%c0_45, %c0_46] : memref<16x1xf32, #tpu.memory_space<vmem>>, vector<16x1xf32>
    %57 = vector.broadcast %56 : vector<16x1xf32> to vector<16x1024xf32>
    %58 = arith.addf %55, %57 : vector<16x1024xf32>
    %cst_47 = arith.constant 0.000000e+00 : f32
    %59 = vector.broadcast %cst_47 : f32 to vector<16x1024xf32>
    %60 = arith.maximumf %58, %59 : vector<16x1024xf32>
    %61 = arith.truncf %60 : vector<16x1024xf32> to vector<16x1024xbf16>
    %c0_48 = arith.constant 0 : index
    %c128_49 = arith.constant 128 : index
    %62 = vector.load %arg10[%c0_48, %c128_49] : memref<16x1280xbf16, #tpu.memory_space<vmem>>, vector<16x1024xbf16>
    tpu.vector_store %arg10[%c0_48, %c128_49], %61 {strides = array<i32>} : memref<16x1280xbf16, #tpu.memory_space<vmem>>, vector<16x1024xbf16>,
    %c0_50 = arith.constant 0 : index
    %c111_51 = arith.constant 111 : index
    %63 = vector.load %arg10[%c0_50, %c111_51] : memref<16x1280xbf16, #tpu.memory_space<vmem>>, vector<16x1024xbf16>
    %c0_52 = arith.constant 0 : index
    %c0_53 = arith.constant 0 : index
    %64 = vector.load %arg2[%c0_52, %c0_53] : memref<9x1024xbf16, #tpu.memory_space<vmem>>, vector<1x1024xbf16>
    %65 = vector.broadcast %64 : vector<1x1024xbf16> to vector<16x1024xbf16>
    %66 = arith.mulf %63, %65 : vector<16x1024xbf16>
    %c0_54 = arith.constant 0 : index
    %c0_55 = arith.constant 0 : index
    %67 = vector.load %arg11[%c0_54, %c0_55] : memref<144x1024xbf16, #tpu.memory_space<vmem>>, vector<16x1024xbf16>
    tpu.vector_store %arg11[%c0_54, %c0_55], %66 {strides = array<i32>} : memref<144x1024xbf16, #tpu.memory_space<vmem>>, vector<16x1024xbf16>,
    %c0_56 = arith.constant 0 : index
    %c112_57 = arith.constant 112 : index
    %68 = vector.load %arg10[%c0_56, %c112_57] : memref<16x1280xbf16, #tpu.memory_space<vmem>>, vector<16x1024xbf16>
    %c1_58 = arith.constant 1 : index
    %c0_59 = arith.constant 0 : index
    %69 = vector.load %arg2[%c1_58, %c0_59] : memref<9x1024xbf16, #tpu.memory_space<vmem>>, vector<1x1024xbf16>
    %70 = vector.broadcast %69 : vector<1x1024xbf16> to vector<16x1024xbf16>
    %71 = arith.mulf %68, %70 : vector<16x1024xbf16>
    %c16_60 = arith.constant 16 : index
    %c0_61 = arith.constant 0 : index
    %72 = vector.load %arg11[%c16_60, %c0_61] : memref<144x1024xbf16, #tpu.memory_space<vmem>>, vector<16x1024xbf16>
    tpu.vector_store %arg11[%c16_60, %c0_61], %71 {strides = array<i32>} : memref<144x1024xbf16, #tpu.memory_space<vmem>>, vector<16x1024xbf16>,
    %c0_62 = arith.constant 0 : index
    %c113_63 = arith.constant 113 : index
    %73 = vector.load %arg10[%c0_62, %c113_63] : memref<16x1280xbf16, #tpu.memory_space<vmem>>, vector<16x1024xbf16>
    %c2_64 = arith.constant 2 : index
    %c0_65 = arith.constant 0 : index
    %74 = vector.load %arg2[%c2_64, %c0_65] : memref<9x1024xbf16, #tpu.memory_space<vmem>>, vector<1x1024xbf16>
    %75 = vector.broadcast %74 : vector<1x1024xbf16> to vector<16x1024xbf16>
    %76 = arith.mulf %73, %75 : vector<16x1024xbf16>
    %c32_66 = arith.constant 32 : index
    %c0_67 = arith.constant 0 : index
    %77 = vector.load %arg11[%c32_66, %c0_67] : memref<144x1024xbf16, #tpu.memory_space<vmem>>, vector<16x1024xbf16>
    tpu.vector_store %arg11[%c32_66, %c0_67], %76 {strides = array<i32>} : memref<144x1024xbf16, #tpu.memory_space<vmem>>, vector<16x1024xbf16>,
    %c0_68 = arith.constant 0 : index
    %c127_69 = arith.constant 127 : index
    %78 = vector.load %arg10[%c0_68, %c127_69] : memref<16x1280xbf16, #tpu.memory_space<vmem>>, vector<16x1024xbf16>
    %c3_70 = arith.constant 3 : index
    %c0_71 = arith.constant 0 : index
    %79 = vector.load %arg2[%c3_70, %c0_71] : memref<9x1024xbf16, #tpu.memory_space<vmem>>, vector<1x1024xbf16>
    %80 = vector.broadcast %79 : vector<1x1024xbf16> to vector<16x1024xbf16>
    %81 = arith.mulf %78, %80 : vector<16x1024xbf16>
    %c48_72 = arith.constant 48 : index
    %c0_73 = arith.constant 0 : index
    %82 = vector.load %arg11[%c48_72, %c0_73] : memref<144x1024xbf16, #tpu.memory_space<vmem>>, vector<16x1024xbf16>
    tpu.vector_store %arg11[%c48_72, %c0_73], %81 {strides = array<i32>} : memref<144x1024xbf16, #tpu.memory_space<vmem>>, vector<16x1024xbf16>,
    %c0_74 = arith.constant 0 : index
    %c128_75 = arith.constant 128 : index
    %83 = vector.load %arg10[%c0_74, %c128_75] : memref<16x1280xbf16, #tpu.memory_space<vmem>>, vector<16x1024xbf16>
    %c64_76 = arith.constant 64 : index
    %c0_77 = arith.constant 0 : index
    %84 = vector.load %arg11[%c64_76, %c0_77] : memref<144x1024xbf16, #tpu.memory_space<vmem>>, vector<16x1024xbf16>
    tpu.vector_store %arg11[%c64_76, %c0_77], %83 {strides = array<i32>} : memref<144x1024xbf16, #tpu.memory_space<vmem>>, vector<16x1024xbf16>,
    %c0_78 = arith.constant 0 : index
    %c129_79 = arith.constant 129 : index
    %85 = vector.load %arg10[%c0_78, %c129_79] : memref<16x1280xbf16, #tpu.memory_space<vmem>>, vector<16x1024xbf16>
    %c5_80 = arith.constant 5 : index
    %c0_81 = arith.constant 0 : index
    %86 = vector.load %arg2[%c5_80, %c0_81] : memref<9x1024xbf16, #tpu.memory_space<vmem>>, vector<1x1024xbf16>
    %87 = vector.broadcast %86 : vector<1x1024xbf16> to vector<16x1024xbf16>
    %88 = arith.mulf %85, %87 : vector<16x1024xbf16>
    %c80_82 = arith.constant 80 : index
    %c0_83 = arith.constant 0 : index
    %89 = vector.load %arg11[%c80_82, %c0_83] : memref<144x1024xbf16, #tpu.memory_space<vmem>>, vector<16x1024xbf16>
    tpu.vector_store %arg11[%c80_82, %c0_83], %88 {strides = array<i32>} : memref<144x1024xbf16, #tpu.memory_space<vmem>>, vector<16x1024xbf16>,
    %c0_84 = arith.constant 0 : index
    %c143_85 = arith.constant 143 : index
    %90 = vector.load %arg10[%c0_84, %c143_85] : memref<16x1280xbf16, #tpu.memory_space<vmem>>, vector<16x1024xbf16>
    %c6_86 = arith.constant 6 : index
    %c0_87 = arith.constant 0 : index
    %91 = vector.load %arg2[%c6_86, %c0_87] : memref<9x1024xbf16, #tpu.memory_space<vmem>>, vector<1x1024xbf16>
    %92 = vector.broadcast %91 : vector<1x1024xbf16> to vector<16x1024xbf16>
    %93 = arith.mulf %90, %92 : vector<16x1024xbf16>
    %c96_88 = arith.constant 96 : index
    %c0_89 = arith.constant 0 : index
    %94 = vector.load %arg11[%c96_88, %c0_89] : memref<144x1024xbf16, #tpu.memory_space<vmem>>, vector<16x1024xbf16>
    tpu.vector_store %arg11[%c96_88, %c0_89], %93 {strides = array<i32>} : memref<144x1024xbf16, #tpu.memory_space<vmem>>, vector<16x1024xbf16>,
    %c0_90 = arith.constant 0 : index
    %c144_91 = arith.constant 144 : index
    %95 = vector.load %arg10[%c0_90, %c144_91] : memref<16x1280xbf16, #tpu.memory_space<vmem>>, vector<16x1024xbf16>
    %c7_92 = arith.constant 7 : index
    %c0_93 = arith.constant 0 : index
    %96 = vector.load %arg2[%c7_92, %c0_93] : memref<9x1024xbf16, #tpu.memory_space<vmem>>, vector<1x1024xbf16>
    %97 = vector.broadcast %96 : vector<1x1024xbf16> to vector<16x1024xbf16>
    %98 = arith.mulf %95, %97 : vector<16x1024xbf16>
    %c112_94 = arith.constant 112 : index
    %c0_95 = arith.constant 0 : index
    %99 = vector.load %arg11[%c112_94, %c0_95] : memref<144x1024xbf16, #tpu.memory_space<vmem>>, vector<16x1024xbf16>
    tpu.vector_store %arg11[%c112_94, %c0_95], %98 {strides = array<i32>} : memref<144x1024xbf16, #tpu.memory_space<vmem>>, vector<16x1024xbf16>,
    %c0_96 = arith.constant 0 : index
    %c145_97 = arith.constant 145 : index
    %100 = vector.load %arg10[%c0_96, %c145_97] : memref<16x1280xbf16, #tpu.memory_space<vmem>>, vector<16x1024xbf16>
    %c8_98 = arith.constant 8 : index
    %c0_99 = arith.constant 0 : index
    %101 = vector.load %arg2[%c8_98, %c0_99] : memref<9x1024xbf16, #tpu.memory_space<vmem>>, vector<1x1024xbf16>
    %102 = vector.broadcast %101 : vector<1x1024xbf16> to vector<16x1024xbf16>
    %103 = arith.mulf %100, %102 : vector<16x1024xbf16>
    %c128_100 = arith.constant 128 : index
    %c0_101 = arith.constant 0 : index
    %104 = vector.load %arg11[%c128_100, %c0_101] : memref<144x1024xbf16, #tpu.memory_space<vmem>>, vector<16x1024xbf16>
    tpu.vector_store %arg11[%c128_100, %c0_101], %103 {strides = array<i32>} : memref<144x1024xbf16, #tpu.memory_space<vmem>>, vector<16x1024xbf16>,
    %c0_102 = arith.constant 0 : index
    %c0_103 = arith.constant 0 : index
    %105 = vector.load %arg6[%c0_102, %c0_103] : memref<16x144xbf16, #tpu.memory_space<vmem>>, vector<16x144xbf16>
    %c0_104 = arith.constant 0 : index
    %c0_105 = arith.constant 0 : index
    %106 = vector.load %arg11[%c0_104, %c0_105] : memref<144x1024xbf16, #tpu.memory_space<vmem>>, vector<144x1024xbf16>
    %cst_106 = arith.constant dense<0.000000e+00> : vector<16x1024xf32>
    %107 = tpu.matmul %105, %106, %cst_106 {dimension_numbers = #tpu.dot_dimension_numbers<[1], [0], [0], [1], [0, 0, 1, 1], [], []>} : vector<16x144xbf16>, vector<144x1024xbf16>, vector<16x1024xf32> -> vector<16x1024xf32>
    %c0_107 = arith.constant 0 : index
    %c0_108 = arith.constant 0 : index
    %108 = vector.load %arg7[%c0_107, %c0_108] : memref<16x1xf32, #tpu.memory_space<vmem>>, vector<16x1xf32>
    %109 = vector.broadcast %108 : vector<16x1xf32> to vector<16x1024xf32>
    %110 = arith.mulf %107, %109 : vector<16x1024xf32>
    %c0_109 = arith.constant 0 : index
    %c0_110 = arith.constant 0 : index
    %111 = vector.load %arg8[%c0_109, %c0_110] : memref<16x1xf32, #tpu.memory_space<vmem>>, vector<16x1xf32>
    %112 = vector.broadcast %111 : vector<16x1xf32> to vector<16x1024xf32>
    %113 = arith.addf %110, %112 : vector<16x1024xf32>
    %c0_111 = arith.constant 0 : index
    %c0_112 = arith.constant 0 : index
    %c0_113 = arith.constant 0 : index
    %114 = vector.load %arg1[%c0_111, %c0_112, %c0_113] : memref<1x16x1024xf32, #tpu.memory_space<vmem>>, vector<1x16x1024xf32>
    %115 = vector.shape_cast %114 : vector<1x16x1024xf32> to vector<16x1024xf32>
    %116 = arith.addf %113, %115 : vector<16x1024xf32>
    %cst_114 = arith.constant 0.000000e+00 : f32
    %117 = vector.broadcast %cst_114 : f32 to vector<16x1024xf32>
    %118 = arith.maximumf %116, %117 : vector<16x1024xf32>
    %c0_115 = arith.constant 0 : index
    %c0_116 = arith.constant 0 : index
    %c0_117 = arith.constant 0 : index
    %119 = vector.load %arg9[%c0_115, %c0_116, %c0_117] : memref<1x16x1024xf32, #tpu.memory_space<vmem>>, vector<1x16x1024xf32>
    %120 = vector.shape_cast %119 : vector<1x16x1024xf32> to vector<16x1024xf32>
    %121 = vector.shape_cast %118 : vector<16x1024xf32> to vector<1x16x1024xf32>
    tpu.vector_store %arg9[%c0_115, %c0_116, %c0_117], %121 {strides = array<i32>} : memref<1x16x1024xf32, #tpu.memory_space<vmem>>, vector<1x16x1024xf32>,
    return
  }
  func.func @transform_0(%arg0: i32) -> (i32, i32, i32) {
    %c0_i32 = arith.constant 0 : i32
    %c0_i32_0 = arith.constant 0 : i32
    %c0_i32_1 = arith.constant 0 : i32
    return %arg0, %c0_i32, %c0_i32_0 : i32, i32, i32
  }
  func.func @transform_1(%arg0: i32) -> (i32, i32) {
    %c0_i32 = arith.constant 0 : i32
    %c0_i32_0 = arith.constant 0 : i32
    %c0_i32_1 = arith.constant 0 : i32
    return %c0_i32, %c0_i32_0 : i32, i32
  }
  func.func @transform_2(%arg0: i32) -> (i32, i32) {
    %c0_i32 = arith.constant 0 : i32
    %c0_i32_0 = arith.constant 0 : i32
    %c0_i32_1 = arith.constant 0 : i32
    return %c0_i32, %c0_i32_0 : i32, i32
  }
  func.func @transform_3(%arg0: i32) -> (i32, i32) {
    %c0_i32 = arith.constant 0 : i32
    %c0_i32_0 = arith.constant 0 : i32
    %c0_i32_1 = arith.constant 0 : i32
    return %c0_i32, %c0_i32_0 : i32, i32
  }
  func.func @transform_4(%arg0: i32) -> (i32, i32) {
    %c0_i32 = arith.constant 0 : i32
    %c0_i32_0 = arith.constant 0 : i32
    %c0_i32_1 = arith.constant 0 : i32
    return %c0_i32, %c0_i32_0 : i32, i32
  }
  func.func @transform_5(%arg0: i32) -> (i32, i32) {
    %c0_i32 = arith.constant 0 : i32
    %c0_i32_0 = arith.constant 0 : i32
    %c0_i32_1 = arith.constant 0 : i32
    return %c0_i32, %c0_i32_0 : i32, i32
  }
  func.func @transform_6(%arg0: i32) -> (i32, i32) {
    %c0_i32 = arith.constant 0 : i32
    %c0_i32_0 = arith.constant 0 : i32
    %c0_i32_1 = arith.constant 0 : i32
    return %c0_i32, %c0_i32_0 : i32, i32
  }
  func.func @transform_7(%arg0: i32) -> (i32, i32) {
    %c0_i32 = arith.constant 0 : i32
    %c0_i32_0 = arith.constant 0 : i32
    %c0_i32_1 = arith.constant 0 : i32
    return %c0_i32, %c0_i32_0 : i32, i32
  }
  func.func @transform_8(%arg0: i32) -> (i32, i32, i32) {
    %c0_i32 = arith.constant 0 : i32
    %c0_i32_0 = arith.constant 0 : i32
    %c0_i32_1 = arith.constant 0 : i32
    return %arg0, %c0_i32, %c0_i32_0 : i32, i32, i32
  }
}

</mosaic_0001>

<llo_original>
// kernel: basic_block_forward.1
$region0: #{basic_block_forward.1}
  #allocation0 [shape = 'u32[]', space=smem, size = 0x4, offset = 0x4, fixed_abs, tag = 'smem constant byte address 0x4 - core index']
  #allocation1 [shape = 'u32[144,128]{1,0:T(1,128)}', space=vmem, size = 0x12000, scoped, tag = 'internal scratch']
  #allocation2 [shape = 'bf16[16,1280]{1,0:T(8,128)(2,1)}', space=vmem, size = 0xa000, scoped, tag = 'scratch operand']
  #allocation3 [shape = 'bf16[144,1024]{1,0:T(8,128)(2,1)}', space=vmem, size = 0x48000, scoped, tag = 'scratch operand']
  %s0 = inlined_call_operand.vmem [shape: f32[2,16,1024], index: 0, kind: input, shape index: {}]
  %s1 = inlined_call_operand.vmem [shape: bf16[9,1024], index: 1, kind: input, shape index: {}]
  %s2 = inlined_call_operand.vmem [shape: bf16[16,144], index: 2, kind: input, shape index: {}]
  %s3 = inlined_call_operand.vmem [shape: f32[16,1], index: 3, kind: input, shape index: {}]
  %s4 = inlined_call_operand.vmem [shape: f32[16,1], index: 4, kind: input, shape index: {}]
  %s5 = inlined_call_operand.vmem [shape: bf16[16,144], index: 5, kind: input, shape index: {}]
  %s6 = inlined_call_operand.vmem [shape: f32[16,1], index: 6, kind: input, shape index: {}]
  %s7 = inlined_call_operand.vmem [shape: f32[16,1], index: 7, kind: input, shape index: {}]
  %s8 = inlined_call_operand.vmem [shape: f32[2,16,1024], index: 8, kind: output, shape index: {}]
  %s9 = sld [smem:[#allocation0]]
  $region65: #{basic_block_forward.1} parent=0
    _
  %s11 = ssub.s32 1, %s9
  %s12 = scalar_select 0, %s11, %s9
  loop: start=0, step=1, limit=4
  $region2: #{basic_block_forward.1} parent=0 // loop_pre_header
    _
  $region3: #{basic_block_forward.1} parent=0 // loop_header
    %s14 = sphi 0, %s18
    %p15 = scmp.ge.s32.totalorder %s14, 4
    %s24 = sphi 0, %s26
    %s27 = sphi 0, %s24
    %s28 = sphi 0, %s27
    %s44 = sphi 0, %s28
    %s48 = sphi 0, %s48
    %s50 = sphi 0, %s48
    %s51 = sphi 0, %s50
    %s65 = sphi 0, %s51
    %s69 = sphi 0, %s69
    %s71 = sphi 0, %s69
    %s72 = sphi 0, %s71
    %s86 = sphi 0, %s72
    %s90 = sphi 0, %s90
    %s92 = sphi 0, %s90
    %s93 = sphi 0, %s92
    %s107 = sphi 0, %s93
    %s111 = sphi 0, %s111
    %s113 = sphi 0, %s111
    %s114 = sphi 0, %s113
    %s128 = sphi 0, %s114
    %s132 = sphi 0, %s132
    %s134 = sphi 0, %s132
    %s135 = sphi 0, %s134
    %s149 = sphi 0, %s135
    %s153 = sphi 0, %s153
    %s155 = sphi 0, %s153
    %s156 = sphi 0, %s155
    %s170 = sphi 0, %s156
    %s174 = sphi 0, %s174
    %s176 = sphi 0, %s174
    %s177 = sphi 0, %s176
    %s191 = sphi 0, %s177
    %s197 = sphi 0, %s199
    %s200 = sphi 0, %s197
    %s201 = sphi 0, %s200
    %s217 = sphi 0, %s201
  $region4: #{basic_block_forward.1} parent=0 // loop_header_branch
    %17 = sbr.rel (%p15) target = $region8
  $region5: #{basic_block_forward.1} parent=0 // loop_body
    %s19 = ssub.s32 %s14, 1
    %s20 = ssub.s32 %s14, 2
    %s21 = sadd.s32 %s14, 1
    %s22 = ssub.s32 %s14, %s21
    %p23 = scmp.eq.s32.totalorder %s22, 0
    %s25 = sadd.s32 %s24, 1
    %s26 = scalar_select %p23, %s24, %s25
    %p29 = pneg %p23
    %p30 = scmp.eq.s32.totalorder %s14, 1
    %p31 = por %p29, %p30
    %p32 = scmp.ne.s32.totalorder %s24, %s27
    %p33 = scmp.eq.s32.totalorder %s14, 0
    %p34 = por %p32, %p33
    %p35 = scmp.ne.s32.totalorder %s24, %s27
    %p36 = scmp.eq.s32.totalorder %s19, 1
    %p37 = por %p35, %p36
    %p38 = scmp.ne.s32.totalorder %s27, %s28
    %p39 = scmp.eq.s32.totalorder %s19, 0
    %p40 = por %p38, %p39
    %p41 = scmp.ne.s32.totalorder %s27, %s28
    %p42 = scmp.eq.s32.totalorder %s20, 1
    %p43 = por %p41, %p42
    %p45 = scmp.ne.s32.totalorder %s28, %s44
    %p46 = scmp.eq.s32.totalorder %s20, 0
    %p47 = por %p45, %p46
    %s49 = sadd.s32 %s48, 1
    %p52 = scmp.eq.s32.totalorder %s14, 1
    %p53 = scmp.ne.s32.totalorder %s48, %s50
    %p54 = scmp.eq.s32.totalorder %s14, 0
    %p55 = por %p53, %p54
    %p56 = scmp.ne.s32.totalorder %s48, %s50
    %p57 = scmp.eq.s32.totalorder %s19, 1
    %p58 = por %p56, %p57
    %p59 = scmp.ne.s32.totalorder %s50, %s51
    %p60 = scmp.eq.s32.totalorder %s19, 0
    %p61 = por %p59, %p60
    %p62 = scmp.ne.s32.totalorder %s50, %s51
    %p63 = scmp.eq.s32.totalorder %s20, 1
    %p64 = por %p62, %p63
    %p66 = scmp.ne.s32.totalorder %s51, %s65
    %p67 = scmp.eq.s32.totalorder %s20, 0
    %p68 = por %p66, %p67
    %s70 = sadd.s32 %s69, 1
    %p73 = scmp.eq.s32.totalorder %s14, 1
    %p74 = scmp.ne.s32.totalorder %s69, %s71
    %p75 = scmp.eq.s32.totalorder %s14, 0
    %p76 = por %p74, %p75
    %p77 = scmp.ne.s32.totalorder %s69, %s71
    %p78 = scmp.eq.s32.totalorder %s19, 1
    %p79 = por %p77, %p78
    %p80 = scmp.ne.s32.totalorder %s71, %s72
    %p81 = scmp.eq.s32.totalorder %s19, 0
    %p82 = por %p80, %p81
    %p83 = scmp.ne.s32.totalorder %s71, %s72
    %p84 = scmp.eq.s32.totalorder %s20, 1
    %p85 = por %p83, %p84
    %p87 = scmp.ne.s32.totalorder %s72, %s86
    %p88 = scmp.eq.s32.totalorder %s20, 0
    %p89 = por %p87, %p88
    %s91 = sadd.s32 %s90, 1
    %p94 = scmp.eq.s32.totalorder %s14, 1
    %p95 = scmp.ne.s32.totalorder %s90, %s92
    %p96 = scmp.eq.s32.totalorder %s14, 0
    %p97 = por %p95, %p96
    %p98 = scmp.ne.s32.totalorder %s90, %s92
    %p99 = scmp.eq.s32.totalorder %s19, 1
    %p100 = por %p98, %p99
    %p101 = scmp.ne.s32.totalorder %s92, %s93
    %p102 = scmp.eq.s32.totalorder %s19, 0
    %p103 = por %p101, %p102
    %p104 = scmp.ne.s32.totalorder %s92, %s93
    %p105 = scmp.eq.s32.totalorder %s20, 1
    %p106 = por %p104, %p105
    %p108 = scmp.ne.s32.totalorder %s93, %s107
    %p109 = scmp.eq.s32.totalorder %s20, 0
    %p110 = por %p108, %p109
    %s112 = sadd.s32 %s111, 1
    %p115 = scmp.eq.s32.totalorder %s14, 1
    %p116 = scmp.ne.s32.totalorder %s111, %s113
    %p117 = scmp.eq.s32.totalorder %s14, 0
    %p118 = por %p116, %p117
    %p119 = scmp.ne.s32.totalorder %s111, %s113
    %p120 = scmp.eq.s32.totalorder %s19, 1
    %p121 = por %p119, %p120
    %p122 = scmp.ne.s32.totalorder %s113, %s114
    %p123 = scmp.eq.s32.totalorder %s19, 0
    %p124 = por %p122, %p123
    %p125 = scmp.ne.s32.totalorder %s113, %s114
    %p126 = scmp.eq.s32.totalorder %s20, 1
    %p127 = por %p125, %p126
    %p129 = scmp.ne.s32.totalorder %s114, %s128
    %p130 = scmp.eq.s32.totalorder %s20, 0
    %p131 = por %p129, %p130
    %s133 = sadd.s32 %s132, 1
    %p136 = scmp.eq.s32.totalorder %s14, 1
    %p137 = scmp.ne.s32.totalorder %s132, %s134
    %p138 = scmp.eq.s32.totalorder %s14, 0
    %p139 = por %p137, %p138
    %p140 = scmp.ne.s32.totalorder %s132, %s134
    %p141 = scmp.eq.s32.totalorder %s19, 1
    %p142 = por %p140, %p141
    %p143 = scmp.ne.s32.totalorder %s134, %s135
    %p144 = scmp.eq.s32.totalorder %s19, 0
    %p145 = por %p143, %p144
    %p146 = scmp.ne.s32.totalorder %s134, %s135
    %p147 = scmp.eq.s32.totalorder %s20, 1
    %p148 = por %p146, %p147
    %p150 = scmp.ne.s32.totalorder %s135, %s149
    %p151 = scmp.eq.s32.totalorder %s20, 0
    %p152 = por %p150, %p151
    %s154 = sadd.s32 %s153, 1
    %p157 = scmp.eq.s32.totalorder %s14, 1
    %p158 = scmp.ne.s32.totalorder %s153, %s155
    %p159 = scmp.eq.s32.totalorder %s14, 0
    %p160 = por %p158, %p159
    %p161 = scmp.ne.s32.totalorder %s153, %s155
    %p162 = scmp.eq.s32.totalorder %s19, 1
    %p163 = por %p161, %p162
    %p164 = scmp.ne.s32.totalorder %s155, %s156
    %p165 = scmp.eq.s32.totalorder %s19, 0
    %p166 = por %p164, %p165
    %p167 = scmp.ne.s32.totalorder %s155, %s156
    %p168 = scmp.eq.s32.totalorder %s20, 1
    %p169 = por %p167, %p168
    %p171 = scmp.ne.s32.totalorder %s156, %s170
    %p172 = scmp.eq.s32.totalorder %s20, 0
    %p173 = por %p171, %p172
    %s175 = sadd.s32 %s174, 1
    %p178 = scmp.eq.s32.totalorder %s14, 1
    %p179 = scmp.ne.s32.totalorder %s174, %s176
    %p180 = scmp.eq.s32.totalorder %s14, 0
    %p181 = por %p179, %p180
    %p182 = scmp.ne.s32.totalorder %s174, %s176
    %p183 = scmp.eq.s32.totalorder %s19, 1
    %p184 = por %p182, %p183
    %p185 = scmp.ne.s32.totalorder %s176, %s177
    %p186 = scmp.eq.s32.totalorder %s19, 0
    %p187 = por %p185, %p186
    %p188 = scmp.ne.s32.totalorder %s176, %s177
    %p189 = scmp.eq.s32.totalorder %s20, 1
    %p190 = por %p188, %p189
    %p192 = scmp.ne.s32.totalorder %s177, %s191
    %p193 = scmp.eq.s32.totalorder %s20, 0
    %p194 = por %p192, %p193
    %s195 = ssub.s32 %s14, %s21
    %p196 = scmp.eq.s32.totalorder %s195, 0
    %s198 = sadd.s32 %s197, 1
    %s199 = scalar_select %p196, %s197, %s198
    %p202 = pneg %p196
    %p203 = scmp.eq.s32.totalorder %s14, 1
    %p204 = por %p202, %p203
    %p205 = scmp.ne.s32.totalorder %s197, %s200
    %p206 = scmp.eq.s32.totalorder %s14, 0
    %p207 = por %p205, %p206
    %p208 = scmp.ne.s32.totalorder %s197, %s200
    %p209 = scmp.eq.s32.totalorder %s19, 1
    %p210 = por %p208, %p209
    %p211 = scmp.ne.s32.totalorder %s200, %s201
    %p212 = scmp.eq.s32.totalorder %s19, 0
    %p213 = por %p211, %p212
    %p214 = scmp.ne.s32.totalorder %s200, %s201
    %p215 = scmp.eq.s32.totalorder %s20, 1
    %p216 = por %p214, %p215
    %p218 = scmp.ne.s32.totalorder %s201, %s217
    %p219 = scmp.eq.s32.totalorder %s20, 0
    %p220 = por %p218, %p219
    %p221 = scmp.le.s32.totalorder 1, %s14
    %p222 = scmp.lt.s32.totalorder %s14, 3
    %p223 = pnand %p221, %p222
    %p224 = pneg %p223
    // Predicated region
    $region9: #{basic_block_forward.1} parent=5 // pred_check
      _
    $region10: #{basic_block_forward.1} parent=5 // pred_check_branch
      %226 = sbr.rel (%p223) target = $region12
    $region11: #{basic_block_forward.1} parent=5 // pred_region
      %s227 = ssub.s32 %s14, 1
      // Predicated region
      $region13: #{basic_block_forward.1} parent=11 // pred_check
        %p228 = pneg %p61
      $region14: #{basic_block_forward.1} parent=11 // pred_check_branch
        %230 = sbr.rel (%p228) target = $region16
      $region15: #{basic_block_forward.1} parent=11 // pred_region
        _
      $region16: #{basic_block_forward.1} parent=11 // pred_fallthru
        _
      // Predicated region
      $region17: #{basic_block_forward.1} parent=11 // pred_check
        %p231 = pneg %p82
      $region18: #{basic_block_forward.1} parent=11 // pred_check_branch
        %233 = sbr.rel (%p231) target = $region20
      $region19: #{basic_block_forward.1} parent=11 // pred_region
        _
      $region20: #{basic_block_forward.1} parent=11 // pred_fallthru
        _
      // Predicated region
      $region21: #{basic_block_forward.1} parent=11 // pred_check
        %p234 = pneg %p103
      $region22: #{basic_block_forward.1} parent=11 // pred_check_branch
        %236 = sbr.rel (%p234) target = $region24
      $region23: #{basic_block_forward.1} parent=11 // pred_region
        _
      $region24: #{basic_block_forward.1} parent=11 // pred_fallthru
        _
      // Predicated region
      $region25: #{basic_block_forward.1} parent=11 // pred_check
        %p237 = pneg %p124
      $region26: #{basic_block_forward.1} parent=11 // pred_check_branch
        %239 = sbr.rel (%p237) target = $region28
      $region27: #{basic_block_forward.1} parent=11 // pred_region
        _
      $region28: #{basic_block_forward.1} parent=11 // pred_fallthru
        _
      // Predicated region
      $region29: #{basic_block_forward.1} parent=11 // pred_check
        %p240 = pneg %p145
      $region30: #{basic_block_forward.1} parent=11 // pred_check_branch
        %242 = sbr.rel (%p240) target = $region32
      $region31: #{basic_block_forward.1} parent=11 // pred_region
        _
      $region32: #{basic_block_forward.1} parent=11 // pred_fallthru
        _
      // Predicated region
      $region33: #{basic_block_forward.1} parent=11 // pred_check
        %p243 = pneg %p166
      $region34: #{basic_block_forward.1} parent=11 // pred_check_branch
        %245 = sbr.rel (%p243) target = $region36
      $region35: #{basic_block_forward.1} parent=11 // pred_region
        _
      $region36: #{basic_block_forward.1} parent=11 // pred_fallthru
        _
      // Predicated region
      $region37: #{basic_block_forward.1} parent=11 // pred_check
        %p246 = pneg %p187
      $region38: #{basic_block_forward.1} parent=11 // pred_check_branch
        %248 = sbr.rel (%p246) target = $region40
      $region39: #{basic_block_forward.1} parent=11 // pred_region
        _
      $region40: #{basic_block_forward.1} parent=11 // pred_fallthru
        _
    $region12: #{basic_block_forward.1} parent=5 // pred_fallthru
      _
    %p249 = scmp.lt.s32.totalorder %s14, 2
    // Predicated region
    $region41: #{basic_block_forward.1} parent=5 // pred_check
      %p250 = pneg %p249
    $region42: #{basic_block_forward.1} parent=5 // pred_check_branch
      %252 = sbr.rel (%p250) target = $region44
    $region43: #{basic_block_forward.1} parent=5 // pred_region
      // Predicated region
      $region45: #{basic_block_forward.1} parent=43 // pred_check
        %p253 = pneg %p34
      $region46: #{basic_block_forward.1} parent=43 // pred_check_branch
        %255 = sbr.rel (%p253) target = $region48
      $region47: #{basic_block_forward.1} parent=43 // pred_region
        %p256 = scmp.lt.s32.totalorder %s14, 1
        %s257 = scalar_select %p256, %s14, 1
        %s258 = smul.addr %s257, 16
        %s259 = smul.addr %s258, 8
        %s260 = scalar_lea.vmem %s0, %s259
      $region48: #{basic_block_forward.1} parent=43 // pred_fallthru
        _
    $region44: #{basic_block_forward.1} parent=5 // pred_fallthru
      _
    %p261 = scmp.le.s32.totalorder 1, %s14
    %p262 = scmp.lt.s32.totalorder %s14, 3
    %p263 = pnand %p261, %p262
    %p264 = pneg %p263
    // Predicated region
    $region49: #{basic_block_forward.1} parent=5 // pred_check
      _
    $region50: #{basic_block_forward.1} parent=5 // pred_check_branch
      %266 = sbr.rel (%p263) target = $region52
    $region51: #{basic_block_forward.1} parent=5 // pred_region
      %s267 = ssub.s32 %s14, 1
      %p268 = scmp.lt.s32.totalorder %s19, 1
      %s269 = scalar_select %p268, %s19, 1
      %s270 = smul.addr %s269, 16
      %s271 = smul.addr %s270, 8
      %s272 = scalar_lea.vmem %s0, %s271
      %p273 = pneg %p40
      %p274 = pneg %p37
      %p275 = pneg %p61
      %p276 = pneg %p58
      %p277 = pneg %p82
      %p278 = pneg %p79
      %p279 = pneg %p103
      %p280 = pneg %p100
      %p281 = pneg %p124
      %p282 = pneg %p121
      %p283 = pneg %p145
      %p284 = pneg %p142
      %p285 = pneg %p166
      %p286 = pneg %p163
      %p287 = pneg %p187
      %p288 = pneg %p184
      %p289 = pneg %p213
      %p290 = pneg %p210
      %p291 = scmp.lt.s32.totalorder %s19, 1
      %s292 = scalar_select %p291, %s19, 1
      %s293 = smul.addr %s292, 16
      %s294 = smul.addr %s293, 8
      %s295 = scalar_lea.vmem %s8, %s294
      %p296 = scmp.lt.s32.totalorder %s19, 1
      %s297 = scalar_select %p296, %s19, 1
      %s298 = smul.addr %s297, 16
      %s299 = smul.addr %s298, 8
      %s300 = scalar_lea.vmem %s0, %s299
      %p301 = scmp.lt.s32.totalorder %s19, 1
      %s302 = scalar_select %p301, %s19, 1
      %s303 = smul.addr %s302, 16
      %s304 = smul.addr %s303, 8
      %s305 = scalar_lea.vmem %s8, %s304
      %307 = vst [vmem:[#allocation2] sm:$0xf] 0
      %308 = vst [vmem:[#allocation2 + $0x28] sm:$0xf] 0
      %309 = vst [vmem:[#allocation2 + $0x24] sm:$0xf] 0
      %310 = vst [vmem:[#allocation2 + $0x4c] sm:$0xf] 0
      %v311 = vld [vmem:[%s300] sm:$0xff]
      %v312 = vld [vmem:[%s300 + $0x8] sm:$0xff]
      %v313 = vld [vmem:[%s300 + $0x10] sm:$0xff]
      %v314 = vld [vmem:[%s300 + $0x18] sm:$0xff]
      %v315 = vld [vmem:[%s300 + $0x20] sm:$0xff]
      %v316 = vld [vmem:[%s300 + $0x28] sm:$0xff]
      %v317 = vld [vmem:[%s300 + $0x30] sm:$0xff]
      %v318 = vld [vmem:[%s300 + $0x38] sm:$0xff]
      %v319 = vld [vmem:[%s300 + $0x40] sm:$0xff]
      %v320 = vld [vmem:[%s300 + $0x48] sm:$0xff]
      %v321 = vld [vmem:[%s300 + $0x50] sm:$0xff]
      %v322 = vld [vmem:[%s300 + $0x58] sm:$0xff]
      %v323 = vld [vmem:[%s300 + $0x60] sm:$0xff]
      %v324 = vld [vmem:[%s300 + $0x68] sm:$0xff]
      %v325 = vld [vmem:[%s300 + $0x70] sm:$0xff]
      %v326 = vld [vmem:[%s300 + $0x78] sm:$0xff]
      %v327 = vpack.c.bf16 %v319, %v311
      %v328 = vpack.c.bf16 %v320, %v312
      %v329 = vpack.c.bf16 %v321, %v313
      %v330 = vpack.c.bf16 %v322, %v314
      %v331 = vpack.c.bf16 %v323, %v315
      %v332 = vpack.c.bf16 %v324, %v316
      %v333 = vpack.c.bf16 %v325, %v317
      %v334 = vpack.c.bf16 %v326, %v318
      %v343 = vunpack.c.l.b16 %v327
      %v344 = vunpack.c.l.b16 %v328
      %v345 = vunpack.c.l.b16 %v329
      %v346 = vunpack.c.l.b16 %v330
      %v347 = vunpack.c.l.b16 %v331
      %v348 = vunpack.c.l.b16 %v332
      %v349 = vunpack.c.l.b16 %v333
      %v350 = vunpack.c.l.b16 %v334
      %v351 = vunpack.c.h.b16 %v327
      %v352 = vunpack.c.h.b16 %v328
      %v353 = vunpack.c.h.b16 %v329
      %v354 = vunpack.c.h.b16 %v330
      %v355 = vunpack.c.h.b16 %v331
      %v356 = vunpack.c.h.b16 %v332
      %v357 = vunpack.c.h.b16 %v333
      %v358 = vunpack.c.h.b16 %v334
      %v359 = vpack.c.b16 %v344, %v343
      %v360 = vpack.c.b16 %v346, %v345
      %v361 = vpack.c.b16 %v348, %v347
      %v362 = vpack.c.b16 %v350, %v349
      %v363 = vpack.c.b16 %v352, %v351
      %v364 = vpack.c.b16 %v354, %v353
      %v365 = vpack.c.b16 %v356, %v355
      %v366 = vpack.c.b16 %v358, %v357
      %375 = vst [vmem:[#allocation2 + $0x4] sm:$0xff] %v359
      %376 = vst [vmem:[#allocation2 + $0xc] sm:$0xff] %v360
      %377 = vst [vmem:[#allocation2 + $0x14] sm:$0xff] %v361
      %378 = vst [vmem:[#allocation2 + $0x1c] sm:$0xff] %v362
      %379 = vst [vmem:[#allocation2 + $0x2c] sm:$0xff] %v363
      %380 = vst [vmem:[#allocation2 + $0x34] sm:$0xff] %v364
      %381 = vst [vmem:[#allocation2 + $0x3c] sm:$0xff] %v365
      %382 = vst [vmem:[#allocation2 + $0x44] sm:$0xff] %v366
      %v383 = vld [vmem:[#allocation2] sm:$0xff]
      %v384 = vld [vmem:[#allocation2 + $0x8] sm:$0xff]
      %v385 = vld [vmem:[#allocation2 + $0x10] sm:$0xff]
      %v386 = vld [vmem:[#allocation2 + $0x18] sm:$0xff]
      %v387 = vld [vmem:[#allocation2 + $0x20] sm:$0xf]
      %v388 = vld [vmem:[#allocation2 + $0x28] sm:$0xff]
      %v389 = vld [vmem:[#allocation2 + $0x30] sm:$0xff]
      %v390 = vld [vmem:[#allocation2 + $0x38] sm:$0xff]
      %v391 = vld [vmem:[#allocation2 + $0x40] sm:$0xff]
      %v392 = vld [vmem:[#allocation2 + $0x48] sm:$0xf]
      %v393 = vld [vmem:[%s1] sm:$0x11]
      %v394 = vld [vmem:[%s1 + $0x8] sm:$0x11]
      %v395 = vld [vmem:[%s1 + $0x10] sm:$0x11]
      %v396 = vld [vmem:[%s1 + $0x18] sm:$0x11]
      %v401 = vunpack.c.l.b16 %v393
      %v402 = vunpack.c.h.b16 %v393
      %v403 = vunpack.c.l.b16 %v394
      %v404 = vunpack.c.h.b16 %v394
      %v405 = vunpack.c.l.b16 %v395
      %v406 = vunpack.c.h.b16 %v395
      %v407 = vunpack.c.l.b16 %v396
      %v408 = vunpack.c.h.b16 %v396
      %v409 = vpack.c.b16 %v401, %v401
      %v410 = vpack.c.b16 %v402, %v402
      %v411 = vpack.c.b16 %v403, %v403
      %v412 = vpack.c.b16 %v404, %v404
      %v413 = vpack.c.b16 %v405, %v405
      %v414 = vpack.c.b16 %v406, %v406
      %v415 = vpack.c.b16 %v407, %v407
      %v416 = vpack.c.b16 %v408, %v408
      %v418 = vpack.i.b16 %v409, %v409
      %v420 = vlaneseq
      %v421 = vshrl.u32 %v420, 7
      %v422 = vsub.s32 0, %v421
      %v423 = vrot.slane %v418, %v422
      %v425 = vpack.i.b16 %v410, %v410
      %v427 = vlaneseq
      %v428 = vshrl.u32 %v427, 7
      %v429 = vsub.s32 0, %v428
      %v430 = vrot.slane %v425, %v429
      %v432 = vpack.i.b16 %v411, %v411
      %v434 = vlaneseq
      %v435 = vshrl.u32 %v434, 7
      %v436 = vsub.s32 0, %v435
      %v437 = vrot.slane %v432, %v436
      %v439 = vpack.i.b16 %v412, %v412
      %v441 = vlaneseq
      %v442 = vshrl.u32 %v441, 7
      %v443 = vsub.s32 0, %v442
      %v444 = vrot.slane %v439, %v443
      %v446 = vpack.i.b16 %v413, %v413
      %v448 = vlaneseq
      %v449 = vshrl.u32 %v448, 7
      %v450 = vsub.s32 0, %v449
      %v451 = vrot.slane %v446, %v450
      %v453 = vpack.i.b16 %v414, %v414
      %v455 = vlaneseq
      %v456 = vshrl.u32 %v455, 7
      %v457 = vsub.s32 0, %v456
      %v458 = vrot.slane %v453, %v457
      %v460 = vpack.i.b16 %v415, %v415
      %v462 = vlaneseq
      %v463 = vshrl.u32 %v462, 7
      %v464 = vsub.s32 0, %v463
      %v465 = vrot.slane %v460, %v464
      %v467 = vpack.i.b16 %v416, %v416
      %v469 = vlaneseq
      %v470 = vshrl.u32 %v469, 7
      %v471 = vsub.s32 0, %v470
      %v472 = vrot.slane %v467, %v471
      %v481 = vunpack.c.l.b16 %v423
      %v482 = vunpack.c.l.b16 %v430
      %v483 = vunpack.c.l.b16 %v437
      %v484 = vunpack.c.l.b16 %v444
      %v485 = vunpack.c.l.b16 %v451
      %v486 = vunpack.c.l.b16 %v458
      %v487 = vunpack.c.l.b16 %v465
      %v488 = vunpack.c.l.b16 %v472
      %v489 = vpack.c.b16 %v482, %v481
      %v490 = vpack.c.b16 %v484, %v483
      %v491 = vpack.c.b16 %v486, %v485
      %v492 = vpack.c.b16 %v488, %v487
      %493 = vrot.lane.b32.xlu0 %v489, 111
      %v494 = vpop.permute.xlu0 %493
      %495 = vrot.lane.b32.xlu0 %v490, 111
      %v496 = vpop.permute.xlu0 %495
      %497 = vrot.lane.b32.xlu0 %v491, 111
      %v498 = vpop.permute.xlu0 %497
      %499 = vrot.lane.b32.xlu0 %v492, 111
      %v500 = vpop.permute.xlu0 %499
      %v501 = vrot.slane %v494, 4
      %v502 = vrot.slane %v496, 4
      %v503 = vrot.slane %v498, 4
      %v504 = vrot.slane %v500, 4
      %vm505 = vcmask 908288
      %v506 = vsel %vm505, %v501, %v494
      %vm507 = vcmask 1043456
      %v508 = vsel %vm507, %v501, %v502
      %v509 = vsel %vm505, %v508, %v496
      %v510 = vsel %vm507, %v502, %v503
      %v511 = vsel %vm505, %v510, %v498
      %v512 = vsel %vm507, %v503, %v504
      %v513 = vsel %vm505, %v512, %v500
      %v519 = vmul.bf16 %v383, %v506
      %v520 = vmul.bf16 %v384, %v509
      %v521 = vmul.bf16 %v385, %v511
      %v522 = vmul.bf16 %v386, %v513
      %v523 = vmul.bf16 %v387, %v504
      %v524 = vmul.bf16 %v388, %v506
      %v525 = vmul.bf16 %v389, %v509
      %v526 = vmul.bf16 %v390, %v511
      %v527 = vmul.bf16 %v391, %v513
      %v528 = vmul.bf16 %v392, %v504
      %539 = vrot.lane.b32.xlu0 %v519, 17
      %v540 = vpop.permute.xlu0 %539
      %541 = vrot.lane.b32.xlu0 %v520, 17
      %v542 = vpop.permute.xlu0 %541
      %543 = vrot.lane.b32.xlu0 %v521, 17
      %v544 = vpop.permute.xlu0 %543
      %545 = vrot.lane.b32.xlu0 %v522, 17
      %v546 = vpop.permute.xlu0 %545
      %547 = vrot.lane.b32.xlu0 %v523, 17
      %v548 = vpop.permute.xlu0 %547
      %549 = vrot.lane.b32.xlu0 %v524, 17
      %v550 = vpop.permute.xlu0 %549
      %551 = vrot.lane.b32.xlu0 %v525, 17
      %v552 = vpop.permute.xlu0 %551
      %553 = vrot.lane.b32.xlu0 %v526, 17
      %v554 = vpop.permute.xlu0 %553
      %555 = vrot.lane.b32.xlu0 %v527, 17
      %v556 = vpop.permute.xlu0 %555
      %557 = vrot.lane.b32.xlu0 %v528, 17
      %v558 = vpop.permute.xlu0 %557
      %v559 = vrot.slane %v540, 4
      %v560 = vrot.slane %v542, 4
      %v561 = vrot.slane %v544, 4
      %v562 = vrot.slane %v546, 4
      %v563 = vrot.slane %v548, 4
      %v564 = vrot.slane %v550, 4
      %v565 = vrot.slane %v552, 4
      %v566 = vrot.slane %v554, 4
      %v567 = vrot.slane %v556, 4
      %v568 = vrot.slane %v558, 4
      %v569 = vsel %vm507, %v559, %v560
      %vm570 = vcmask 138240
      %v571 = vsel %vm570, %v540, %v569
      %v572 = vsel %vm507, %v560, %v561
      %v573 = vsel %vm570, %v542, %v572
      %v574 = vsel %vm507, %v561, %v562
      %v575 = vsel %vm570, %v544, %v574
      %v576 = vsel %vm507, %v562, %v563
      %v577 = vsel %vm570, %v546, %v576
      %v578 = vsel %vm507, %v564, %v565
      %v579 = vsel %vm570, %v550, %v578
      %v580 = vsel %vm507, %v565, %v566
      %v581 = vsel %vm570, %v552, %v580
      %v582 = vsel %vm507, %v566, %v567
      %v583 = vsel %vm570, %v554, %v582
      %v584 = vsel %vm507, %v567, %v568
      %v585 = vsel %vm570, %v556, %v584
      %594 = vst [vmem:[#allocation3] sm:$0xff] %v571
      %595 = vst [vmem:[#allocation3 + $0x8] sm:$0xff] %v573
      %596 = vst [vmem:[#allocation3 + $0x10] sm:$0xff] %v575
      %597 = vst [vmem:[#allocation3 + $0x18] sm:$0xff] %v577
      %598 = vst [vmem:[#allocation3 + $0x20] sm:$0xff] %v579
      %599 = vst [vmem:[#allocation3 + $0x28] sm:$0xff] %v581
      %600 = vst [vmem:[#allocation3 + $0x30] sm:$0xff] %v583
      %601 = vst [vmem:[#allocation3 + $0x38] sm:$0xff] %v585
      %v602 = vld [vmem:[#allocation2] sm:$0xff]
      %v603 = vld [vmem:[#allocation2 + $0x8] sm:$0xff]
      %v604 = vld [vmem:[#allocation2 + $0x10] sm:$0xff]
      %v605 = vld [vmem:[#allocation2 + $0x18] sm:$0xff]
      %v606 = vld [vmem:[#allocation2 + $0x20] sm:$0xf]
      %v607 = vld [vmem:[#allocation2 + $0x28] sm:$0xff]
      %v608 = vld [vmem:[#allocation2 + $0x30] sm:$0xff]
      %v609 = vld [vmem:[#allocation2 + $0x38] sm:$0xff]
      %v610 = vld [vmem:[#allocation2 + $0x40] sm:$0xff]
      %v611 = vld [vmem:[#allocation2 + $0x48] sm:$0xf]
      %v612 = vld [vmem:[%s1] sm:$0x11]
      %v613 = vld [vmem:[%s1 + $0x8] sm:$0x11]
      %v614 = vld [vmem:[%s1 + $0x10] sm:$0x11]
      %v615 = vld [vmem:[%s1 + $0x18] sm:$0x11]
      %v620 = vunpack.c.l.b16 %v612
      %v621 = vunpack.c.h.b16 %v612
      %v622 = vunpack.c.l.b16 %v613
      %v623 = vunpack.c.h.b16 %v613
      %v624 = vunpack.c.l.b16 %v614
      %v625 = vunpack.c.h.b16 %v614
      %v626 = vunpack.c.l.b16 %v615
      %v627 = vunpack.c.h.b16 %v615
      %v628 = vpack.c.b16 %v620, %v620
      %v629 = vpack.c.b16 %v621, %v621
      %v630 = vpack.c.b16 %v622, %v622
      %v631 = vpack.c.b16 %v623, %v623
      %v632 = vpack.c.b16 %v624, %v624
      %v633 = vpack.c.b16 %v625, %v625
      %v634 = vpack.c.b16 %v626, %v626
      %v635 = vpack.c.b16 %v627, %v627
      %v637 = vshrl.u32 %v628, 16
      %v638 = vpack.i.b16 %v637, %v637
      %v640 = vlaneseq
      %v641 = vshrl.u32 %v640, 7
      %v642 = vsub.s32 0, %v641
      %v643 = vrot.slane %v638, %v642
      %v645 = vshrl.u32 %v629, 16
      %v646 = vpack.i.b16 %v645, %v645
      %v648 = vlaneseq
      %v649 = vshrl.u32 %v648, 7
      %v650 = vsub.s32 0, %v649
      %v651 = vrot.slane %v646, %v650
      %v653 = vshrl.u32 %v630, 16
      %v654 = vpack.i.b16 %v653, %v653
      %v656 = vlaneseq
      %v657 = vshrl.u32 %v656, 7
      %v658 = vsub.s32 0, %v657
      %v659 = vrot.slane %v654, %v658
      %v661 = vshrl.u32 %v631, 16
      %v662 = vpack.i.b16 %v661, %v661
      %v664 = vlaneseq
      %v665 = vshrl.u32 %v664, 7
      %v666 = vsub.s32 0, %v665
      %v667 = vrot.slane %v662, %v666
      %v669 = vshrl.u32 %v632, 16
      %v670 = vpack.i.b16 %v669, %v669
      %v672 = vlaneseq
      %v673 = vshrl.u32 %v672, 7
      %v674 = vsub.s32 0, %v673
      %v675 = vrot.slane %v670, %v674
      %v677 = vshrl.u32 %v633, 16
      %v678 = vpack.i.b16 %v677, %v677
      %v680 = vlaneseq
      %v681 = vshrl.u32 %v680, 7
      %v682 = vsub.s32 0, %v681
      %v683 = vrot.slane %v678, %v682
      %v685 = vshrl.u32 %v634, 16
      %v686 = vpack.i.b16 %v685, %v685
      %v688 = vlaneseq
      %v689 = vshrl.u32 %v688, 7
      %v690 = vsub.s32 0, %v689
      %v691 = vrot.slane %v686, %v690
      %v693 = vshrl.u32 %v635, 16
      %v694 = vpack.i.b16 %v693, %v693
      %v696 = vlaneseq
      %v697 = vshrl.u32 %v696, 7
      %v698 = vsub.s32 0, %v697
      %v699 = vrot.slane %v694, %v698
      %v708 = vunpack.c.l.b16 %v643
      %v709 = vunpack.c.l.b16 %v651
      %v710 = vunpack.c.l.b16 %v659
      %v711 = vunpack.c.l.b16 %v667
      %v712 = vunpack.c.l.b16 %v675
      %v713 = vunpack.c.l.b16 %v683
      %v714 = vunpack.c.l.b16 %v691
      %v715 = vunpack.c.l.b16 %v699
      %v716 = vpack.c.b16 %v709, %v708
      %v717 = vpack.c.b16 %v711, %v710
      %v718 = vpack.c.b16 %v713, %v712
      %v719 = vpack.c.b16 %v715, %v714
      %720 = vrot.lane.b32.xlu0 %v716, 112
      %v721 = vpop.permute.xlu0 %720
      %722 = vrot.lane.b32.xlu0 %v717, 112
      %v723 = vpop.permute.xlu0 %722
      %724 = vrot.lane.b32.xlu0 %v718, 112
      %v725 = vpop.permute.xlu0 %724
      %726 = vrot.lane.b32.xlu0 %v719, 112
      %v727 = vpop.permute.xlu0 %726
      %v728 = vrot.slane %v721, 4
      %v729 = vrot.slane %v723, 4
      %v730 = vrot.slane %v725, 4
      %v731 = vrot.slane %v727, 4
      %vm732 = vcmask 916480
      %v733 = vsel %vm732, %v728, %v721
      %v734 = vsel %vm507, %v728, %v729
      %v735 = vsel %vm732, %v734, %v723
      %v736 = vsel %vm507, %v729, %v730
      %v737 = vsel %vm732, %v736, %v725
      %v738 = vsel %vm507, %v730, %v731
      %v739 = vsel %vm732, %v738, %v727
      %v745 = vmul.bf16 %v602, %v733
      %v746 = vmul.bf16 %v603, %v735
      %v747 = vmul.bf16 %v604, %v737
      %v748 = vmul.bf16 %v605, %v739
      %v749 = vmul.bf16 %v606, %v731
      %v750 = vmul.bf16 %v607, %v733
      %v751 = vmul.bf16 %v608, %v735
      %v752 = vmul.bf16 %v609, %v737
      %v753 = vmul.bf16 %v610, %v739
      %v754 = vmul.bf16 %v611, %v731
      %765 = vrot.lane.b32.xlu0 %v745, 16
      %v766 = vpop.permute.xlu0 %765
      %767 = vrot.lane.b32.xlu0 %v746, 16
      %v768 = vpop.permute.xlu0 %767
      %769 = vrot.lane.b32.xlu0 %v747, 16
      %v770 = vpop.permute.xlu0 %769
      %771 = vrot.lane.b32.xlu0 %v748, 16
      %v772 = vpop.permute.xlu0 %771
      %773 = vrot.lane.b32.xlu0 %v749, 16
      %v774 = vpop.permute.xlu0 %773
      %775 = vrot.lane.b32.xlu0 %v750, 16
      %v776 = vpop.permute.xlu0 %775
      %777 = vrot.lane.b32.xlu0 %v751, 16
      %v778 = vpop.permute.xlu0 %777
      %779 = vrot.lane.b32.xlu0 %v752, 16
      %v780 = vpop.permute.xlu0 %779
      %781 = vrot.lane.b32.xlu0 %v753, 16
      %v782 = vpop.permute.xlu0 %781
      %783 = vrot.lane.b32.xlu0 %v754, 16
      %v784 = vpop.permute.xlu0 %783
      %v785 = vrot.slane %v766, 4
      %v786 = vrot.slane %v768, 4
      %v787 = vrot.slane %v770, 4
      %v788 = vrot.slane %v772, 4
      %v789 = vrot.slane %v774, 4
      %v790 = vrot.slane %v776, 4
      %v791 = vrot.slane %v778, 4
      %v792 = vrot.slane %v780, 4
      %v793 = vrot.slane %v782, 4
      %v794 = vrot.slane %v784, 4
      %v795 = vsel %vm507, %v785, %v786
      %vm796 = vcmask 130048
      %v797 = vsel %vm796, %v766, %v795
      %v798 = vsel %vm507, %v786, %v787
      %v799 = vsel %vm796, %v768, %v798
      %v800 = vsel %vm507, %v787, %v788
      %v801 = vsel %vm796, %v770, %v800
      %v802 = vsel %vm507, %v788, %v789
      %v803 = vsel %vm796, %v772, %v802
      %v804 = vsel %vm507, %v790, %v791
      %v805 = vsel %vm796, %v776, %v804
      %v806 = vsel %vm507, %v791, %v792
      %v807 = vsel %vm796, %v778, %v806
      %v808 = vsel %vm507, %v792, %v793
      %v809 = vsel %vm796, %v780, %v808
      %v810 = vsel %vm507, %v793, %v794
      %v811 = vsel %vm796, %v782, %v810
      %820 = vst [vmem:[#allocation3 + $0x40] sm:$0xff] %v797
      %821 = vst [vmem:[#allocation3 + $0x48] sm:$0xff] %v799
      %822 = vst [vmem:[#allocation3 + $0x50] sm:$0xff] %v801
      %823 = vst [vmem:[#allocation3 + $0x58] sm:$0xff] %v803
      %824 = vst [vmem:[#allocation3 + $0x60] sm:$0xff] %v805
      %825 = vst [vmem:[#allocation3 + $0x68] sm:$0xff] %v807
      %826 = vst [vmem:[#allocation3 + $0x70] sm:$0xff] %v809
      %827 = vst [vmem:[#allocation3 + $0x78] sm:$0xff] %v811
      %v828 = vld [vmem:[#allocation2] sm:$0xff]
      %v829 = vld [vmem:[#allocation2 + $0x8] sm:$0xff]
      %v830 = vld [vmem:[#allocation2 + $0x10] sm:$0xff]
      %v831 = vld [vmem:[#allocation2 + $0x18] sm:$0xff]
      %v832 = vld [vmem:[#allocation2 + $0x20] sm:$0xf]
      %v833 = vld [vmem:[#allocation2 + $0x28] sm:$0xff]
      %v834 = vld [vmem:[#allocation2 + $0x30] sm:$0xff]
      %v835 = vld [vmem:[#allocation2 + $0x38] sm:$0xff]
      %v836 = vld [vmem:[#allocation2 + $0x40] sm:$0xff]
      %v837 = vld [vmem:[#allocation2 + $0x48] sm:$0xf]
      %v838 = vld [vmem:[%s1] sm:$0x22]
      %v839 = vld [vmem:[%s1 + $0x8] sm:$0x22]
      %v840 = vld [vmem:[%s1 + $0x10] sm:$0x22]
      %v841 = vld [vmem:[%s1 + $0x18] sm:$0x22]
      %v846 = vunpack.c.l.b16 %v838
      %v847 = vunpack.c.h.b16 %v838
      %v848 = vunpack.c.l.b16 %v839
      %v849 = vunpack.c.h.b16 %v839
      %v850 = vunpack.c.l.b16 %v840
      %v851 = vunpack.c.h.b16 %v840
      %v852 = vunpack.c.l.b16 %v841
      %v853 = vunpack.c.h.b16 %v841
      %v854 = vpack.c.b16 %v846, %v846
      %v855 = vpack.c.b16 %v847, %v847
      %v856 = vpack.c.b16 %v848, %v848
      %v857 = vpack.c.b16 %v849, %v849
      %v858 = vpack.c.b16 %v850, %v850
      %v859 = vpack.c.b16 %v851, %v851
      %v860 = vpack.c.b16 %v852, %v852
      %v861 = vpack.c.b16 %v853, %v853
      %v863 = vpack.i.b16 %v854, %v854
      %v865 = vlaneseq
      %v866 = vshrl.u32 %v865, 7
      %v867 = vsub.s32 1, %v866
      %v868 = vrot.slane %v863, %v867
      %v870 = vpack.i.b16 %v855, %v855
      %v872 = vlaneseq
      %v873 = vshrl.u32 %v872, 7
      %v874 = vsub.s32 1, %v873
      %v875 = vrot.slane %v870, %v874
      %v877 = vpack.i.b16 %v856, %v856
      %v879 = vlaneseq
      %v880 = vshrl.u32 %v879, 7
      %v881 = vsub.s32 1, %v880
      %v882 = vrot.slane %v877, %v881
      %v884 = vpack.i.b16 %v857, %v857
      %v886 = vlaneseq
      %v887 = vshrl.u32 %v886, 7
      %v888 = vsub.s32 1, %v887
      %v889 = vrot.slane %v884, %v888
      %v891 = vpack.i.b16 %v858, %v858
      %v893 = vlaneseq
      %v894 = vshrl.u32 %v893, 7
      %v895 = vsub.s32 1, %v894
      %v896 = vrot.slane %v891, %v895
      %v898 = vpack.i.b16 %v859, %v859
      %v900 = vlaneseq
      %v901 = vshrl.u32 %v900, 7
      %v902 = vsub.s32 1, %v901
      %v903 = vrot.slane %v898, %v902
      %v905 = vpack.i.b16 %v860, %v860
      %v907 = vlaneseq
      %v908 = vshrl.u32 %v907, 7
      %v909 = vsub.s32 1, %v908
      %v910 = vrot.slane %v905, %v909
      %v912 = vpack.i.b16 %v861, %v861
      %v914 = vlaneseq
      %v915 = vshrl.u32 %v914, 7
      %v916 = vsub.s32 1, %v915
      %v917 = vrot.slane %v912, %v916
      %v926 = vunpack.c.l.b16 %v868
      %v927 = vunpack.c.l.b16 %v875
      %v928 = vunpack.c.l.b16 %v882
      %v929 = vunpack.c.l.b16 %v889
      %v930 = vunpack.c.l.b16 %v896
      %v931 = vunpack.c.l.b16 %v903
      %v932 = vunpack.c.l.b16 %v910
      %v933 = vunpack.c.l.b16 %v917
      %v934 = vpack.c.b16 %v927, %v926
      %v935 = vpack.c.b16 %v929, %v928
      %v936 = vpack.c.b16 %v931, %v930
      %v937 = vpack.c.b16 %v933, %v932
      %938 = vrot.lane.b32.xlu0 %v934, 113
      %v939 = vpop.permute.xlu0 %938
      %940 = vrot.lane.b32.xlu0 %v935, 113
      %v941 = vpop.permute.xlu0 %940
      %942 = vrot.lane.b32.xlu0 %v936, 113
      %v943 = vpop.permute.xlu0 %942
      %944 = vrot.lane.b32.xlu0 %v937, 113
      %v945 = vpop.permute.xlu0 %944
      %v946 = vrot.slane %v939, 4
      %v947 = vrot.slane %v941, 4
      %v948 = vrot.slane %v943, 4
      %v949 = vrot.slane %v945, 4
      %vm950 = vcmask 924672
      %v951 = vsel %vm950, %v946, %v939
      %v952 = vsel %vm507, %v946, %v947
      %v953 = vsel %vm950, %v952, %v941
      %v954 = vsel %vm507, %v947, %v948
      %v955 = vsel %vm950, %v954, %v943
      %v956 = vsel %vm507, %v948, %v949
      %v957 = vsel %vm950, %v956, %v945
      %v963 = vmul.bf16 %v828, %v951
      %v964 = vmul.bf16 %v829, %v953
      %v965 = vmul.bf16 %v830, %v955
      %v966 = vmul.bf16 %v831, %v957
      %v967 = vmul.bf16 %v832, %v949
      %v968 = vmul.bf16 %v833, %v951
      %v969 = vmul.bf16 %v834, %v953
      %v970 = vmul.bf16 %v835, %v955
      %v971 = vmul.bf16 %v836, %v957
      %v972 = vmul.bf16 %v837, %v949
      %983 = vrot.lane.b32.xlu0 %v963, 15
      %v984 = vpop.permute.xlu0 %983
      %985 = vrot.lane.b32.xlu0 %v964, 15
      %v986 = vpop.permute.xlu0 %985
      %987 = vrot.lane.b32.xlu0 %v965, 15
      %v988 = vpop.permute.xlu0 %987
      %989 = vrot.lane.b32.xlu0 %v966, 15
      %v990 = vpop.permute.xlu0 %989
      %991 = vrot.lane.b32.xlu0 %v967, 15
      %v992 = vpop.permute.xlu0 %991
      %993 = vrot.lane.b32.xlu0 %v968, 15
      %v994 = vpop.permute.xlu0 %993
      %995 = vrot.lane.b32.xlu0 %v969, 15
      %v996 = vpop.permute.xlu0 %995
      %997 = vrot.lane.b32.xlu0 %v970, 15
      %v998 = vpop.permute.xlu0 %997
      %999 = vrot.lane.b32.xlu0 %v971, 15
      %v1000 = vpop.permute.xlu0 %999
      %1001 = vrot.lane.b32.xlu0 %v972, 15
      %v1002 = vpop.permute.xlu0 %1001
      %v1003 = vrot.slane %v984, 4
      %v1004 = vrot.slane %v986, 4
      %v1005 = vrot.slane %v988, 4
      %v1006 = vrot.slane %v990, 4
      %v1007 = vrot.slane %v992, 4
      %v1008 = vrot.slane %v994, 4
      %v1009 = vrot.slane %v996, 4
      %v1010 = vrot.slane %v998, 4
      %v1011 = vrot.slane %v1000, 4
      %v1012 = vrot.slane %v1002, 4
      %v1013 = vsel %vm507, %v1003, %v1004
      %vm1014 = vcmask 121856
      %v1015 = vsel %vm1014, %v984, %v1013
      %v1016 = vsel %vm507, %v1004, %v1005
      %v1017 = vsel %vm1014, %v986, %v1016
      %v1018 = vsel %vm507, %v1005, %v1006
      %v1019 = vsel %vm1014, %v988, %v1018
      %v1020 = vsel %vm507, %v1006, %v1007
      %v1021 = vsel %vm1014, %v990, %v1020
      %v1022 = vsel %vm507, %v1008, %v1009
      %v1023 = vsel %vm1014, %v994, %v1022
      %v1024 = vsel %vm507, %v1009, %v1010
      %v1025 = vsel %vm1014, %v996, %v1024
      %v1026 = vsel %vm507, %v1010, %v1011
      %v1027 = vsel %vm1014, %v998, %v1026
      %v1028 = vsel %vm507, %v1011, %v1012
      %v1029 = vsel %vm1014, %v1000, %v1028
      %1038 = vst [vmem:[#allocation3 + $0x80] sm:$0xff] %v1015
      %1039 = vst [vmem:[#allocation3 + $0x88] sm:$0xff] %v1017
      %1040 = vst [vmem:[#allocation3 + $0x90] sm:$0xff] %v1019
      %1041 = vst [vmem:[#allocation3 + $0x98] sm:$0xff] %v1021
      %1042 = vst [vmem:[#allocation3 + $0xa0] sm:$0xff] %v1023
      %1043 = vst [vmem:[#allocation3 + $0xa8] sm:$0xff] %v1025
      %1044 = vst [vmem:[#allocation3 + $0xb0] sm:$0xff] %v1027
      %1045 = vst [vmem:[#allocation3 + $0xb8] sm:$0xff] %v1029
      %v1046 = vld [vmem:[#allocation2] sm:$0xff]
      %v1047 = vld [vmem:[#allocation2 + $0x8] sm:$0xff]
      %v1048 = vld [vmem:[#allocation2 + $0x10] sm:$0xff]
      %v1049 = vld [vmem:[#allocation2 + $0x18] sm:$0xff]
      %v1050 = vld [vmem:[#allocation2 + $0x20] sm:$0xf]
      %v1051 = vld [vmem:[#allocation2 + $0x28] sm:$0xff]
      %v1052 = vld [vmem:[#allocation2 + $0x30] sm:$0xff]
      %v1053 = vld [vmem:[#allocation2 + $0x38] sm:$0xff]
      %v1054 = vld [vmem:[#allocation2 + $0x40] sm:$0xff]
      %v1055 = vld [vmem:[#allocation2 + $0x48] sm:$0xf]
      %v1056 = vld [vmem:[%s1] sm:$0x22]
      %v1057 = vld [vmem:[%s1 + $0x8] sm:$0x22]
      %v1058 = vld [vmem:[%s1 + $0x10] sm:$0x22]
      %v1059 = vld [vmem:[%s1 + $0x18] sm:$0x22]
      %v1064 = vunpack.c.l.b16 %v1056
      %v1065 = vunpack.c.h.b16 %v1056
      %v1066 = vunpack.c.l.b16 %v1057
      %v1067 = vunpack.c.h.b16 %v1057
      %v1068 = vunpack.c.l.b16 %v1058
      %v1069 = vunpack.c.h.b16 %v1058
      %v1070 = vunpack.c.l.b16 %v1059
      %v1071 = vunpack.c.h.b16 %v1059
      %v1072 = vpack.c.b16 %v1064, %v1064
      %v1073 = vpack.c.b16 %v1065, %v1065
      %v1074 = vpack.c.b16 %v1066, %v1066
      %v1075 = vpack.c.b16 %v1067, %v1067
      %v1076 = vpack.c.b16 %v1068, %v1068
      %v1077 = vpack.c.b16 %v1069, %v1069
      %v1078 = vpack.c.b16 %v1070, %v1070
      %v1079 = vpack.c.b16 %v1071, %v1071
      %v1081 = vshrl.u32 %v1072, 16
      %v1082 = vpack.i.b16 %v1081, %v1081
      %v1084 = vlaneseq
      %v1085 = vshrl.u32 %v1084, 7
      %v1086 = vsub.s32 1, %v1085
      %v1087 = vrot.slane %v1082, %v1086
      %v1089 = vshrl.u32 %v1073, 16
      %v1090 = vpack.i.b16 %v1089, %v1089
      %v1092 = vlaneseq
      %v1093 = vshrl.u32 %v1092, 7
      %v1094 = vsub.s32 1, %v1093
      %v1095 = vrot.slane %v1090, %v1094
      %v1097 = vshrl.u32 %v1074, 16
      %v1098 = vpack.i.b16 %v1097, %v1097
      %v1100 = vlaneseq
      %v1101 = vshrl.u32 %v1100, 7
      %v1102 = vsub.s32 1, %v1101
      %v1103 = vrot.slane %v1098, %v1102
      %v1105 = vshrl.u32 %v1075, 16
      %v1106 = vpack.i.b16 %v1105, %v1105
      %v1108 = vlaneseq
      %v1109 = vshrl.u32 %v1108, 7
      %v1110 = vsub.s32 1, %v1109
      %v1111 = vrot.slane %v1106, %v1110
      %v1113 = vshrl.u32 %v1076, 16
      %v1114 = vpack.i.b16 %v1113, %v1113
      %v1116 = vlaneseq
      %v1117 = vshrl.u32 %v1116, 7
      %v1118 = vsub.s32 1, %v1117
      %v1119 = vrot.slane %v1114, %v1118
      %v1121 = vshrl.u32 %v1077, 16
      %v1122 = vpack.i.b16 %v1121, %v1121
      %v1124 = vlaneseq
      %v1125 = vshrl.u32 %v1124, 7
      %v1126 = vsub.s32 1, %v1125
      %v1127 = vrot.slane %v1122, %v1126
      %v1129 = vshrl.u32 %v1078, 16
      %v1130 = vpack.i.b16 %v1129, %v1129
      %v1132 = vlaneseq
      %v1133 = vshrl.u32 %v1132, 7
      %v1134 = vsub.s32 1, %v1133
      %v1135 = vrot.slane %v1130, %v1134
      %v1137 = vshrl.u32 %v1079, 16
      %v1138 = vpack.i.b16 %v1137, %v1137
      %v1140 = vlaneseq
      %v1141 = vshrl.u32 %v1140, 7
      %v1142 = vsub.s32 1, %v1141
      %v1143 = vrot.slane %v1138, %v1142
      %v1152 = vunpack.c.l.b16 %v1087
      %v1153 = vunpack.c.l.b16 %v1095
      %v1154 = vunpack.c.l.b16 %v1103
      %v1155 = vunpack.c.l.b16 %v1111
      %v1156 = vunpack.c.l.b16 %v1119
      %v1157 = vunpack.c.l.b16 %v1127
      %v1158 = vunpack.c.l.b16 %v1135
      %v1159 = vunpack.c.l.b16 %v1143
      %v1160 = vpack.c.b16 %v1153, %v1152
      %v1161 = vpack.c.b16 %v1155, %v1154
      %v1162 = vpack.c.b16 %v1157, %v1156
      %v1163 = vpack.c.b16 %v1159, %v1158
      %1164 = vrot.lane.b32.xlu0 %v1160, 127
      %v1165 = vpop.permute.xlu0 %1164
      %1166 = vrot.lane.b32.xlu0 %v1161, 127
      %v1167 = vpop.permute.xlu0 %1166
      %1168 = vrot.lane.b32.xlu0 %v1162, 127
      %v1169 = vpop.permute.xlu0 %1168
      %1170 = vrot.lane.b32.xlu0 %v1163, 127
      %v1171 = vpop.permute.xlu0 %1170
      %v1172 = vrot.slane %v1165, 4
      %v1173 = vrot.slane %v1167, 4
      %v1174 = vrot.slane %v1169, 4
      %v1175 = vrot.slane %v1171, 4
      %vm1176 = vcmask 1039360
      %v1177 = vsel %vm1176, %v1172, %v1165
      %v1178 = vsel %vm507, %v1172, %v1173
      %v1179 = vsel %vm1176, %v1178, %v1167
      %v1180 = vsel %vm507, %v1173, %v1174
      %v1181 = vsel %vm1176, %v1180, %v1169
      %v1182 = vsel %vm507, %v1174, %v1175
      %v1183 = vsel %vm1176, %v1182, %v1171
      %v1189 = vmul.bf16 %v1046, %v1177
      %v1190 = vmul.bf16 %v1047, %v1179
      %v1191 = vmul.bf16 %v1048, %v1181
      %v1192 = vmul.bf16 %v1049, %v1183
      %v1193 = vmul.bf16 %v1050, %v1175
      %v1194 = vmul.bf16 %v1051, %v1177
      %v1195 = vmul.bf16 %v1052, %v1179
      %v1196 = vmul.bf16 %v1053, %v1181
      %v1197 = vmul.bf16 %v1054, %v1183
      %v1198 = vmul.bf16 %v1055, %v1175
      %1209 = vrot.lane.b32.xlu0 %v1189, 1
      %v1210 = vpop.permute.xlu0 %1209
      %1211 = vrot.lane.b32.xlu0 %v1190, 1
      %v1212 = vpop.permute.xlu0 %1211
      %1213 = vrot.lane.b32.xlu0 %v1191, 1
      %v1214 = vpop.permute.xlu0 %1213
      %1215 = vrot.lane.b32.xlu0 %v1192, 1
      %v1216 = vpop.permute.xlu0 %1215
      %1217 = vrot.lane.b32.xlu0 %v1193, 1
      %v1218 = vpop.permute.xlu0 %1217
      %1219 = vrot.lane.b32.xlu0 %v1194, 1
      %v1220 = vpop.permute.xlu0 %1219
      %1221 = vrot.lane.b32.xlu0 %v1195, 1
      %v1222 = vpop.permute.xlu0 %1221
      %1223 = vrot.lane.b32.xlu0 %v1196, 1
      %v1224 = vpop.permute.xlu0 %1223
      %1225 = vrot.lane.b32.xlu0 %v1197, 1
      %v1226 = vpop.permute.xlu0 %1225
      %1227 = vrot.lane.b32.xlu0 %v1198, 1
      %v1228 = vpop.permute.xlu0 %1227
      %v1229 = vrot.slane %v1210, 4
      %v1230 = vrot.slane %v1212, 4
      %v1231 = vrot.slane %v1214, 4
      %v1232 = vrot.slane %v1216, 4
      %v1233 = vrot.slane %v1218, 4
      %v1234 = vrot.slane %v1220, 4
      %v1235 = vrot.slane %v1222, 4
      %v1236 = vrot.slane %v1224, 4
      %v1237 = vrot.slane %v1226, 4
      %v1238 = vrot.slane %v1228, 4
      %v1239 = vsel %vm507, %v1229, %v1230
      %vm1240 = vcmask 7168
      %v1241 = vsel %vm1240, %v1210, %v1239
      %v1242 = vsel %vm507, %v1230, %v1231
      %v1243 = vsel %vm1240, %v1212, %v1242
      %v1244 = vsel %vm507, %v1231, %v1232
      %v1245 = vsel %vm1240, %v1214, %v1244
      %v1246 = vsel %vm507, %v1232, %v1233
      %v1247 = vsel %vm1240, %v1216, %v1246
      %v1248 = vsel %vm507, %v1234, %v1235
      %v1249 = vsel %vm1240, %v1220, %v1248
      %v1250 = vsel %vm507, %v1235, %v1236
      %v1251 = vsel %vm1240, %v1222, %v1250
      %v1252 = vsel %vm507, %v1236, %v1237
      %v1253 = vsel %vm1240, %v1224, %v1252
      %v1254 = vsel %vm507, %v1237, %v1238
      %v1255 = vsel %vm1240, %v1226, %v1254
      %1264 = vst [vmem:[#allocation3 + $0xc0] sm:$0xff] %v1241
      %1265 = vst [vmem:[#allocation3 + $0xc8] sm:$0xff] %v1243
      %1266 = vst [vmem:[#allocation3 + $0xd0] sm:$0xff] %v1245
      %1267 = vst [vmem:[#allocation3 + $0xd8] sm:$0xff] %v1247
      %1268 = vst [vmem:[#allocation3 + $0xe0] sm:$0xff] %v1249
      %1269 = vst [vmem:[#allocation3 + $0xe8] sm:$0xff] %v1251
      %1270 = vst [vmem:[#allocation3 + $0xf0] sm:$0xff] %v1253
      %1271 = vst [vmem:[#allocation3 + $0xf8] sm:$0xff] %v1255
      %v1272 = vld [vmem:[#allocation2 + $0x4] sm:$0xff]
      %v1273 = vld [vmem:[#allocation2 + $0xc] sm:$0xff]
      %v1274 = vld [vmem:[#allocation2 + $0x14] sm:$0xff]
      %v1275 = vld [vmem:[#allocation2 + $0x1c] sm:$0xff]
      %v1276 = vld [vmem:[#allocation2 + $0x2c] sm:$0xff]
      %v1277 = vld [vmem:[#allocation2 + $0x34] sm:$0xff]
      %v1278 = vld [vmem:[#allocation2 + $0x3c] sm:$0xff]
      %v1279 = vld [vmem:[#allocation2 + $0x44] sm:$0xff]
      %1280 = vst [vmem:[#allocation3 + $0x100] sm:$0xff] %v1272
      %1281 = vst [vmem:[#allocation3 + $0x108] sm:$0xff] %v1273
      %1282 = vst [vmem:[#allocation3 + $0x110] sm:$0xff] %v1274
      %1283 = vst [vmem:[#allocation3 + $0x118] sm:$0xff] %v1275
      %1284 = vst [vmem:[#allocation3 + $0x120] sm:$0xff] %v1276
      %1285 = vst [vmem:[#allocation3 + $0x128] sm:$0xff] %v1277
      %1286 = vst [vmem:[#allocation3 + $0x130] sm:$0xff] %v1278
      %1287 = vst [vmem:[#allocation3 + $0x138] sm:$0xff] %v1279
      %v1288 = vld [vmem:[#allocation2 + $0x4] sm:$0xff]
      %v1289 = vld [vmem:[#allocation2 + $0xc] sm:$0xff]
      %v1290 = vld [vmem:[#allocation2 + $0x14] sm:$0xff]
      %v1291 = vld [vmem:[#allocation2 + $0x1c] sm:$0xff]
      %v1292 = vld [vmem:[#allocation2 + $0x24] sm:$0xf]
      %v1293 = vld [vmem:[#allocation2 + $0x2c] sm:$0xff]
      %v1294 = vld [vmem:[#allocation2 + $0x34] sm:$0xff]
      %v1295 = vld [vmem:[#allocation2 + $0x3c] sm:$0xff]
      %v1296 = vld [vmem:[#allocation2 + $0x44] sm:$0xff]
      %v1297 = vld [vmem:[#allocation2 + $0x4c] sm:$0xf]
      %v1298 = vld [vmem:[%s1] sm:$0x44]
      %v1299 = vld [vmem:[%s1 + $0x8] sm:$0x44]
      %v1300 = vld [vmem:[%s1 + $0x10] sm:$0x44]
      %v1301 = vld [vmem:[%s1 + $0x18] sm:$0x44]
      %v1306 = vunpack.c.l.b16 %v1298
      %v1307 = vunpack.c.h.b16 %v1298
      %v1308 = vunpack.c.l.b16 %v1299
      %v1309 = vunpack.c.h.b16 %v1299
      %v1310 = vunpack.c.l.b16 %v1300
      %v1311 = vunpack.c.h.b16 %v1300
      %v1312 = vunpack.c.l.b16 %v1301
      %v1313 = vunpack.c.h.b16 %v1301
      %v1314 = vpack.c.b16 %v1306, %v1306
      %v1315 = vpack.c.b16 %v1307, %v1307
      %v1316 = vpack.c.b16 %v1308, %v1308
      %v1317 = vpack.c.b16 %v1309, %v1309
      %v1318 = vpack.c.b16 %v1310, %v1310
      %v1319 = vpack.c.b16 %v1311, %v1311
      %v1320 = vpack.c.b16 %v1312, %v1312
      %v1321 = vpack.c.b16 %v1313, %v1313
      %v1323 = vshrl.u32 %v1314, 16
      %v1324 = vpack.i.b16 %v1323, %v1323
      %v1326 = vlaneseq
      %v1327 = vshrl.u32 %v1326, 7
      %v1328 = vsub.s32 2, %v1327
      %v1329 = vrot.slane %v1324, %v1328
      %v1331 = vshrl.u32 %v1315, 16
      %v1332 = vpack.i.b16 %v1331, %v1331
      %v1334 = vlaneseq
      %v1335 = vshrl.u32 %v1334, 7
      %v1336 = vsub.s32 2, %v1335
      %v1337 = vrot.slane %v1332, %v1336
      %v1339 = vshrl.u32 %v1316, 16
      %v1340 = vpack.i.b16 %v1339, %v1339
      %v1342 = vlaneseq
      %v1343 = vshrl.u32 %v1342, 7
      %v1344 = vsub.s32 2, %v1343
      %v1345 = vrot.slane %v1340, %v1344
      %v1347 = vshrl.u32 %v1317, 16
      %v1348 = vpack.i.b16 %v1347, %v1347
      %v1350 = vlaneseq
      %v1351 = vshrl.u32 %v1350, 7
      %v1352 = vsub.s32 2, %v1351
      %v1353 = vrot.slane %v1348, %v1352
      %v1355 = vshrl.u32 %v1318, 16
      %v1356 = vpack.i.b16 %v1355, %v1355
      %v1358 = vlaneseq
      %v1359 = vshrl.u32 %v1358, 7
      %v1360 = vsub.s32 2, %v1359
      %v1361 = vrot.slane %v1356, %v1360
      %v1363 = vshrl.u32 %v1319, 16
      %v1364 = vpack.i.b16 %v1363, %v1363
      %v1366 = vlaneseq
      %v1367 = vshrl.u32 %v1366, 7
      %v1368 = vsub.s32 2, %v1367
      %v1369 = vrot.slane %v1364, %v1368
      %v1371 = vshrl.u32 %v1320, 16
      %v1372 = vpack.i.b16 %v1371, %v1371
      %v1374 = vlaneseq
      %v1375 = vshrl.u32 %v1374, 7
      %v1376 = vsub.s32 2, %v1375
      %v1377 = vrot.slane %v1372, %v1376
      %v1379 = vshrl.u32 %v1321, 16
      %v1380 = vpack.i.b16 %v1379, %v1379
      %v1382 = vlaneseq
      %v1383 = vshrl.u32 %v1382, 7
      %v1384 = vsub.s32 2, %v1383
      %v1385 = vrot.slane %v1380, %v1384
      %v1394 = vunpack.c.l.b16 %v1329
      %v1395 = vunpack.c.l.b16 %v1337
      %v1396 = vunpack.c.l.b16 %v1345
      %v1397 = vunpack.c.l.b16 %v1353
      %v1398 = vunpack.c.l.b16 %v1361
      %v1399 = vunpack.c.l.b16 %v1369
      %v1400 = vunpack.c.l.b16 %v1377
      %v1401 = vunpack.c.l.b16 %v1385
      %v1402 = vpack.c.b16 %v1395, %v1394
      %v1403 = vpack.c.b16 %v1397, %v1396
      %v1404 = vpack.c.b16 %v1399, %v1398
      %v1405 = vpack.c.b16 %v1401, %v1400
      %1406 = vrot.lane.b32.xlu0 %v1402, 1
      %v1407 = vpop.permute.xlu0 %1406
      %1408 = vrot.lane.b32.xlu0 %v1403, 1
      %v1409 = vpop.permute.xlu0 %1408
      %1410 = vrot.lane.b32.xlu0 %v1404, 1
      %v1411 = vpop.permute.xlu0 %1410
      %1412 = vrot.lane.b32.xlu0 %v1405, 1
      %v1413 = vpop.permute.xlu0 %1412
      %v1414 = vrot.slane %v1407, 4
      %v1415 = vrot.slane %v1409, 4
      %v1416 = vrot.slane %v1411, 4
      %v1417 = vrot.slane %v1413, 4
      %v1418 = vsel %vm1240, %v1414, %v1407
      %v1419 = vsel %vm507, %v1414, %v1415
      %v1420 = vsel %vm1240, %v1419, %v1409
      %v1421 = vsel %vm507, %v1415, %v1416
      %v1422 = vsel %vm1240, %v1421, %v1411
      %v1423 = vsel %vm507, %v1416, %v1417
      %v1424 = vsel %vm1240, %v1423, %v1413
      %v1430 = vmul.bf16 %v1288, %v1418
      %v1431 = vmul.bf16 %v1289, %v1420
      %v1432 = vmul.bf16 %v1290, %v1422
      %v1433 = vmul.bf16 %v1291, %v1424
      %v1434 = vmul.bf16 %v1292, %v1417
      %v1435 = vmul.bf16 %v1293, %v1418
      %v1436 = vmul.bf16 %v1294, %v1420
      %v1437 = vmul.bf16 %v1295, %v1422
      %v1438 = vmul.bf16 %v1296, %v1424
      %v1439 = vmul.bf16 %v1297, %v1417
      %1450 = vrot.lane.b32.xlu0 %v1430, 127
      %v1451 = vpop.permute.xlu0 %1450
      %1452 = vrot.lane.b32.xlu0 %v1431, 127
      %v1453 = vpop.permute.xlu0 %1452
      %1454 = vrot.lane.b32.xlu0 %v1432, 127
      %v1455 = vpop.permute.xlu0 %1454
      %1456 = vrot.lane.b32.xlu0 %v1433, 127
      %v1457 = vpop.permute.xlu0 %1456
      %1458 = vrot.lane.b32.xlu0 %v1434, 127
      %v1459 = vpop.permute.xlu0 %1458
      %1460 = vrot.lane.b32.xlu0 %v1435, 127
      %v1461 = vpop.permute.xlu0 %1460
      %1462 = vrot.lane.b32.xlu0 %v1436, 127
      %v1463 = vpop.permute.xlu0 %1462
      %1464 = vrot.lane.b32.xlu0 %v1437, 127
      %v1465 = vpop.permute.xlu0 %1464
      %1466 = vrot.lane.b32.xlu0 %v1438, 127
      %v1467 = vpop.permute.xlu0 %1466
      %1468 = vrot.lane.b32.xlu0 %v1439, 127
      %v1469 = vpop.permute.xlu0 %1468
      %v1470 = vrot.slane %v1451, 4
      %v1471 = vrot.slane %v1453, 4
      %v1472 = vrot.slane %v1455, 4
      %v1473 = vrot.slane %v1457, 4
      %v1474 = vrot.slane %v1459, 4
      %v1475 = vrot.slane %v1461, 4
      %v1476 = vrot.slane %v1463, 4
      %v1477 = vrot.slane %v1465, 4
      %v1478 = vrot.slane %v1467, 4
      %v1479 = vrot.slane %v1469, 4
      %v1480 = vsel %vm507, %v1470, %v1471
      %v1481 = vsel %vm1176, %v1451, %v1480
      %v1482 = vsel %vm507, %v1471, %v1472
      %v1483 = vsel %vm1176, %v1453, %v1482
      %v1484 = vsel %vm507, %v1472, %v1473
      %v1485 = vsel %vm1176, %v1455, %v1484
      %v1486 = vsel %vm507, %v1473, %v1474
      %v1487 = vsel %vm1176, %v1457, %v1486
      %v1488 = vsel %vm507, %v1475, %v1476
      %v1489 = vsel %vm1176, %v1461, %v1488
      %v1490 = vsel %vm507, %v1476, %v1477
      %v1491 = vsel %vm1176, %v1463, %v1490
      %v1492 = vsel %vm507, %v1477, %v1478
      %v1493 = vsel %vm1176, %v1465, %v1492
      %v1494 = vsel %vm507, %v1478, %v1479
      %v1495 = vsel %vm1176, %v1467, %v1494
      %1504 = vst [vmem:[#allocation3 + $0x140] sm:$0xff] %v1481
      %1505 = vst [vmem:[#allocation3 + $0x148] sm:$0xff] %v1483
      %1506 = vst [vmem:[#allocation3 + $0x150] sm:$0xff] %v1485
      %1507 = vst [vmem:[#allocation3 + $0x158] sm:$0xff] %v1487
      %1508 = vst [vmem:[#allocation3 + $0x160] sm:$0xff] %v1489
      %1509 = vst [vmem:[#allocation3 + $0x168] sm:$0xff] %v1491
      %1510 = vst [vmem:[#allocation3 + $0x170] sm:$0xff] %v1493
      %1511 = vst [vmem:[#allocation3 + $0x178] sm:$0xff] %v1495
      %v1512 = vld [vmem:[#allocation2 + $0x4] sm:$0xff]
      %v1513 = vld [vmem:[#allocation2 + $0xc] sm:$0xff]
      %v1514 = vld [vmem:[#allocation2 + $0x14] sm:$0xff]
      %v1515 = vld [vmem:[#allocation2 + $0x1c] sm:$0xff]
      %v1516 = vld [vmem:[#allocation2 + $0x24] sm:$0xf]
      %v1517 = vld [vmem:[#allocation2 + $0x2c] sm:$0xff]
      %v1518 = vld [vmem:[#allocation2 + $0x34] sm:$0xff]
      %v1519 = vld [vmem:[#allocation2 + $0x3c] sm:$0xff]
      %v1520 = vld [vmem:[#allocation2 + $0x44] sm:$0xff]
      %v1521 = vld [vmem:[#allocation2 + $0x4c] sm:$0xf]
      %v1522 = vld [vmem:[%s1] sm:$0x88]
      %v1523 = vld [vmem:[%s1 + $0x8] sm:$0x88]
      %v1524 = vld [vmem:[%s1 + $0x10] sm:$0x88]
      %v1525 = vld [vmem:[%s1 + $0x18] sm:$0x88]
      %v1530 = vunpack.c.l.b16 %v1522
      %v1531 = vunpack.c.h.b16 %v1522
      %v1532 = vunpack.c.l.b16 %v1523
      %v1533 = vunpack.c.h.b16 %v1523
      %v1534 = vunpack.c.l.b16 %v1524
      %v1535 = vunpack.c.h.b16 %v1524
      %v1536 = vunpack.c.l.b16 %v1525
      %v1537 = vunpack.c.h.b16 %v1525
      %v1538 = vpack.c.b16 %v1530, %v1530
      %v1539 = vpack.c.b16 %v1531, %v1531
      %v1540 = vpack.c.b16 %v1532, %v1532
      %v1541 = vpack.c.b16 %v1533, %v1533
      %v1542 = vpack.c.b16 %v1534, %v1534
      %v1543 = vpack.c.b16 %v1535, %v1535
      %v1544 = vpack.c.b16 %v1536, %v1536
      %v1545 = vpack.c.b16 %v1537, %v1537
      %v1547 = vpack.i.b16 %v1538, %v1538
      %v1549 = vlaneseq
      %v1550 = vshrl.u32 %v1549, 7
      %v1551 = vsub.s32 3, %v1550
      %v1552 = vrot.slane %v1547, %v1551
      %v1554 = vpack.i.b16 %v1539, %v1539
      %v1556 = vlaneseq
      %v1557 = vshrl.u32 %v1556, 7
      %v1558 = vsub.s32 3, %v1557
      %v1559 = vrot.slane %v1554, %v1558
      %v1561 = vpack.i.b16 %v1540, %v1540
      %v1563 = vlaneseq
      %v1564 = vshrl.u32 %v1563, 7
      %v1565 = vsub.s32 3, %v1564
      %v1566 = vrot.slane %v1561, %v1565
      %v1568 = vpack.i.b16 %v1541, %v1541
      %v1570 = vlaneseq
      %v1571 = vshrl.u32 %v1570, 7
      %v1572 = vsub.s32 3, %v1571
      %v1573 = vrot.slane %v1568, %v1572
      %v1575 = vpack.i.b16 %v1542, %v1542
      %v1577 = vlaneseq
      %v1578 = vshrl.u32 %v1577, 7
      %v1579 = vsub.s32 3, %v1578
      %v1580 = vrot.slane %v1575, %v1579
      %v1582 = vpack.i.b16 %v1543, %v1543
      %v1584 = vlaneseq
      %v1585 = vshrl.u32 %v1584, 7
      %v1586 = vsub.s32 3, %v1585
      %v1587 = vrot.slane %v1582, %v1586
      %v1589 = vpack.i.b16 %v1544, %v1544
      %v1591 = vlaneseq
      %v1592 = vshrl.u32 %v1591, 7
      %v1593 = vsub.s32 3, %v1592
      %v1594 = vrot.slane %v1589, %v1593
      %v1596 = vpack.i.b16 %v1545, %v1545
      %v1598 = vlaneseq
      %v1599 = vshrl.u32 %v1598, 7
      %v1600 = vsub.s32 3, %v1599
      %v1601 = vrot.slane %v1596, %v1600
      %v1610 = vunpack.c.l.b16 %v1552
      %v1611 = vunpack.c.l.b16 %v1559
      %v1612 = vunpack.c.l.b16 %v1566
      %v1613 = vunpack.c.l.b16 %v1573
      %v1614 = vunpack.c.l.b16 %v1580
      %v1615 = vunpack.c.l.b16 %v1587
      %v1616 = vunpack.c.l.b16 %v1594
      %v1617 = vunpack.c.l.b16 %v1601
      %v1618 = vpack.c.b16 %v1611, %v1610
      %v1619 = vpack.c.b16 %v1613, %v1612
      %v1620 = vpack.c.b16 %v1615, %v1614
      %v1621 = vpack.c.b16 %v1617, %v1616
      %1622 = vrot.lane.b32.xlu0 %v1618, 15
      %v1623 = vpop.permute.xlu0 %1622
      %1624 = vrot.lane.b32.xlu0 %v1619, 15
      %v1625 = vpop.permute.xlu0 %1624
      %1626 = vrot.lane.b32.xlu0 %v1620, 15
      %v1627 = vpop.permute.xlu0 %1626
      %1628 = vrot.lane.b32.xlu0 %v1621, 15
      %v1629 = vpop.permute.xlu0 %1628
      %v1630 = vrot.slane %v1623, 4
      %v1631 = vrot.slane %v1625, 4
      %v1632 = vrot.slane %v1627, 4
      %v1633 = vrot.slane %v1629, 4
      %v1634 = vsel %vm1014, %v1630, %v1623
      %v1635 = vsel %vm507, %v1630, %v1631
      %v1636 = vsel %vm1014, %v1635, %v1625
      %v1637 = vsel %vm507, %v1631, %v1632
      %v1638 = vsel %vm1014, %v1637, %v1627
      %v1639 = vsel %vm507, %v1632, %v1633
      %v1640 = vsel %vm1014, %v1639, %v1629
      %v1646 = vmul.bf16 %v1512, %v1634
      %v1647 = vmul.bf16 %v1513, %v1636
      %v1648 = vmul.bf16 %v1514, %v1638
      %v1649 = vmul.bf16 %v1515, %v1640
      %v1650 = vmul.bf16 %v1516, %v1633
      %v1651 = vmul.bf16 %v1517, %v1634
      %v1652 = vmul.bf16 %v1518, %v1636
      %v1653 = vmul.bf16 %v1519, %v1638
      %v1654 = vmul.bf16 %v1520, %v1640
      %v1655 = vmul.bf16 %v1521, %v1633
      %1666 = vrot.lane.b32.xlu0 %v1646, 113
      %v1667 = vpop.permute.xlu0 %1666
      %1668 = vrot.lane.b32.xlu0 %v1647, 113
      %v1669 = vpop.permute.xlu0 %1668
      %1670 = vrot.lane.b32.xlu0 %v1648, 113
      %v1671 = vpop.permute.xlu0 %1670
      %1672 = vrot.lane.b32.xlu0 %v1649, 113
      %v1673 = vpop.permute.xlu0 %1672
      %1674 = vrot.lane.b32.xlu0 %v1650, 113
      %v1675 = vpop.permute.xlu0 %1674
      %1676 = vrot.lane.b32.xlu0 %v1651, 113
      %v1677 = vpop.permute.xlu0 %1676
      %1678 = vrot.lane.b32.xlu0 %v1652, 113
      %v1679 = vpop.permute.xlu0 %1678
      %1680 = vrot.lane.b32.xlu0 %v1653, 113
      %v1681 = vpop.permute.xlu0 %1680
      %1682 = vrot.lane.b32.xlu0 %v1654, 113
      %v1683 = vpop.permute.xlu0 %1682
      %1684 = vrot.lane.b32.xlu0 %v1655, 113
      %v1685 = vpop.permute.xlu0 %1684
      %v1686 = vrot.slane %v1667, 4
      %v1687 = vrot.slane %v1669, 4
      %v1688 = vrot.slane %v1671, 4
      %v1689 = vrot.slane %v1673, 4
      %v1690 = vrot.slane %v1675, 4
      %v1691 = vrot.slane %v1677, 4
      %v1692 = vrot.slane %v1679, 4
      %v1693 = vrot.slane %v1681, 4
      %v1694 = vrot.slane %v1683, 4
      %v1695 = vrot.slane %v1685, 4
      %v1696 = vsel %vm507, %v1686, %v1687
      %v1697 = vsel %vm950, %v1667, %v1696
      %v1698 = vsel %vm507, %v1687, %v1688
      %v1699 = vsel %vm950, %v1669, %v1698
      %v1700 = vsel %vm507, %v1688, %v1689
      %v1701 = vsel %vm950, %v1671, %v1700
      %v1702 = vsel %vm507, %v1689, %v1690
      %v1703 = vsel %vm950, %v1673, %v1702
      %v1704 = vsel %vm507, %v1691, %v1692
      %v1705 = vsel %vm950, %v1677, %v1704
      %v1706 = vsel %vm507, %v1692, %v1693
      %v1707 = vsel %vm950, %v1679, %v1706
      %v1708 = vsel %vm507, %v1693, %v1694
      %v1709 = vsel %vm950, %v1681, %v1708
      %v1710 = vsel %vm507, %v1694, %v1695
      %v1711 = vsel %vm950, %v1683, %v1710
      %1720 = vst [vmem:[#allocation3 + $0x180] sm:$0xff] %v1697
      %1721 = vst [vmem:[#allocation3 + $0x188] sm:$0xff] %v1699
      %1722 = vst [vmem:[#allocation3 + $0x190] sm:$0xff] %v1701
      %1723 = vst [vmem:[#allocation3 + $0x198] sm:$0xff] %v1703
      %1724 = vst [vmem:[#allocation3 + $0x1a0] sm:$0xff] %v1705
      %1725 = vst [vmem:[#allocation3 + $0x1a8] sm:$0xff] %v1707
      %1726 = vst [vmem:[#allocation3 + $0x1b0] sm:$0xff] %v1709
      %1727 = vst [vmem:[#allocation3 + $0x1b8] sm:$0xff] %v1711
      %v1728 = vld [vmem:[#allocation2 + $0x4] sm:$0xff]
      %v1729 = vld [vmem:[#allocation2 + $0xc] sm:$0xff]
      %v1730 = vld [vmem:[#allocation2 + $0x14] sm:$0xff]
      %v1731 = vld [vmem:[#allocation2 + $0x1c] sm:$0xff]
      %v1732 = vld [vmem:[#allocation2 + $0x24] sm:$0xf]
      %v1733 = vld [vmem:[#allocation2 + $0x2c] sm:$0xff]
      %v1734 = vld [vmem:[#allocation2 + $0x34] sm:$0xff]
      %v1735 = vld [vmem:[#allocation2 + $0x3c] sm:$0xff]
      %v1736 = vld [vmem:[#allocation2 + $0x44] sm:$0xff]
      %v1737 = vld [vmem:[#allocation2 + $0x4c] sm:$0xf]
      %v1738 = vld [vmem:[%s1] sm:$0x88]
      %v1739 = vld [vmem:[%s1 + $0x8] sm:$0x88]
      %v1740 = vld [vmem:[%s1 + $0x10] sm:$0x88]
      %v1741 = vld [vmem:[%s1 + $0x18] sm:$0x88]
      %v1746 = vunpack.c.l.b16 %v1738
      %v1747 = vunpack.c.h.b16 %v1738
      %v1748 = vunpack.c.l.b16 %v1739
      %v1749 = vunpack.c.h.b16 %v1739
      %v1750 = vunpack.c.l.b16 %v1740
      %v1751 = vunpack.c.h.b16 %v1740
      %v1752 = vunpack.c.l.b16 %v1741
      %v1753 = vunpack.c.h.b16 %v1741
      %v1754 = vpack.c.b16 %v1746, %v1746
      %v1755 = vpack.c.b16 %v1747, %v1747
      %v1756 = vpack.c.b16 %v1748, %v1748
      %v1757 = vpack.c.b16 %v1749, %v1749
      %v1758 = vpack.c.b16 %v1750, %v1750
      %v1759 = vpack.c.b16 %v1751, %v1751
      %v1760 = vpack.c.b16 %v1752, %v1752
      %v1761 = vpack.c.b16 %v1753, %v1753
      %v1763 = vshrl.u32 %v1754, 16
      %v1764 = vpack.i.b16 %v1763, %v1763
      %v1766 = vlaneseq
      %v1767 = vshrl.u32 %v1766, 7
      %v1768 = vsub.s32 3, %v1767
      %v1769 = vrot.slane %v1764, %v1768
      %v1771 = vshrl.u32 %v1755, 16
      %v1772 = vpack.i.b16 %v1771, %v1771
      %v1774 = vlaneseq
      %v1775 = vshrl.u32 %v1774, 7
      %v1776 = vsub.s32 3, %v1775
      %v1777 = vrot.slane %v1772, %v1776
      %v1779 = vshrl.u32 %v1756, 16
      %v1780 = vpack.i.b16 %v1779, %v1779
      %v1782 = vlaneseq
      %v1783 = vshrl.u32 %v1782, 7
      %v1784 = vsub.s32 3, %v1783
      %v1785 = vrot.slane %v1780, %v1784
      %v1787 = vshrl.u32 %v1757, 16
      %v1788 = vpack.i.b16 %v1787, %v1787
      %v1790 = vlaneseq
      %v1791 = vshrl.u32 %v1790, 7
      %v1792 = vsub.s32 3, %v1791
      %v1793 = vrot.slane %v1788, %v1792
      %v1795 = vshrl.u32 %v1758, 16
      %v1796 = vpack.i.b16 %v1795, %v1795
      %v1798 = vlaneseq
      %v1799 = vshrl.u32 %v1798, 7
      %v1800 = vsub.s32 3, %v1799
      %v1801 = vrot.slane %v1796, %v1800
      %v1803 = vshrl.u32 %v1759, 16
      %v1804 = vpack.i.b16 %v1803, %v1803
      %v1806 = vlaneseq
      %v1807 = vshrl.u32 %v1806, 7
      %v1808 = vsub.s32 3, %v1807
      %v1809 = vrot.slane %v1804, %v1808
      %v1811 = vshrl.u32 %v1760, 16
      %v1812 = vpack.i.b16 %v1811, %v1811
      %v1814 = vlaneseq
      %v1815 = vshrl.u32 %v1814, 7
      %v1816 = vsub.s32 3, %v1815
      %v1817 = vrot.slane %v1812, %v1816
      %v1819 = vshrl.u32 %v1761, 16
      %v1820 = vpack.i.b16 %v1819, %v1819
      %v1822 = vlaneseq
      %v1823 = vshrl.u32 %v1822, 7
      %v1824 = vsub.s32 3, %v1823
      %v1825 = vrot.slane %v1820, %v1824
      %v1834 = vunpack.c.l.b16 %v1769
      %v1835 = vunpack.c.l.b16 %v1777
      %v1836 = vunpack.c.l.b16 %v1785
      %v1837 = vunpack.c.l.b16 %v1793
      %v1838 = vunpack.c.l.b16 %v1801
      %v1839 = vunpack.c.l.b16 %v1809
      %v1840 = vunpack.c.l.b16 %v1817
      %v1841 = vunpack.c.l.b16 %v1825
      %v1842 = vpack.c.b16 %v1835, %v1834
      %v1843 = vpack.c.b16 %v1837, %v1836
      %v1844 = vpack.c.b16 %v1839, %v1838
      %v1845 = vpack.c.b16 %v1841, %v1840
      %1846 = vrot.lane.b32.xlu0 %v1842, 16
      %v1847 = vpop.permute.xlu0 %1846
      %1848 = vrot.lane.b32.xlu0 %v1843, 16
      %v1849 = vpop.permute.xlu0 %1848
      %1850 = vrot.lane.b32.xlu0 %v1844, 16
      %v1851 = vpop.permute.xlu0 %1850
      %1852 = vrot.lane.b32.xlu0 %v1845, 16
      %v1853 = vpop.permute.xlu0 %1852
      %v1854 = vrot.slane %v1847, 4
      %v1855 = vrot.slane %v1849, 4
      %v1856 = vrot.slane %v1851, 4
      %v1857 = vrot.slane %v1853, 4
      %v1858 = vsel %vm796, %v1854, %v1847
      %v1859 = vsel %vm507, %v1854, %v1855
      %v1860 = vsel %vm796, %v1859, %v1849
      %v1861 = vsel %vm507, %v1855, %v1856
      %v1862 = vsel %vm796, %v1861, %v1851
      %v1863 = vsel %vm507, %v1856, %v1857
      %v1864 = vsel %vm796, %v1863, %v1853
      %v1870 = vmul.bf16 %v1728, %v1858
      %v1871 = vmul.bf16 %v1729, %v1860
      %v1872 = vmul.bf16 %v1730, %v1862
      %v1873 = vmul.bf16 %v1731, %v1864
      %v1874 = vmul.bf16 %v1732, %v1857
      %v1875 = vmul.bf16 %v1733, %v1858
      %v1876 = vmul.bf16 %v1734, %v1860
      %v1877 = vmul.bf16 %v1735, %v1862
      %v1878 = vmul.bf16 %v1736, %v1864
      %v1879 = vmul.bf16 %v1737, %v1857
      %1890 = vrot.lane.b32.xlu0 %v1870, 112
      %v1891 = vpop.permute.xlu0 %1890
      %1892 = vrot.lane.b32.xlu0 %v1871, 112
      %v1893 = vpop.permute.xlu0 %1892
      %1894 = vrot.lane.b32.xlu0 %v1872, 112
      %v1895 = vpop.permute.xlu0 %1894
      %1896 = vrot.lane.b32.xlu0 %v1873, 112
      %v1897 = vpop.permute.xlu0 %1896
      %1898 = vrot.lane.b32.xlu0 %v1874, 112
      %v1899 = vpop.permute.xlu0 %1898
      %1900 = vrot.lane.b32.xlu0 %v1875, 112
      %v1901 = vpop.permute.xlu0 %1900
      %1902 = vrot.lane.b32.xlu0 %v1876, 112
      %v1903 = vpop.permute.xlu0 %1902
      %1904 = vrot.lane.b32.xlu0 %v1877, 112
      %v1905 = vpop.permute.xlu0 %1904
      %1906 = vrot.lane.b32.xlu0 %v1878, 112
      %v1907 = vpop.permute.xlu0 %1906
      %1908 = vrot.lane.b32.xlu0 %v1879, 112
      %v1909 = vpop.permute.xlu0 %1908
      %v1910 = vrot.slane %v1891, 4
      %v1911 = vrot.slane %v1893, 4
      %v1912 = vrot.slane %v1895, 4
      %v1913 = vrot.slane %v1897, 4
      %v1914 = vrot.slane %v1899, 4
      %v1915 = vrot.slane %v1901, 4
      %v1916 = vrot.slane %v1903, 4
      %v1917 = vrot.slane %v1905, 4
      %v1918 = vrot.slane %v1907, 4
      %v1919 = vrot.slane %v1909, 4
      %v1920 = vsel %vm507, %v1910, %v1911
      %v1921 = vsel %vm732, %v1891, %v1920
      %v1922 = vsel %vm507, %v1911, %v1912
      %v1923 = vsel %vm732, %v1893, %v1922
      %v1924 = vsel %vm507, %v1912, %v1913
      %v1925 = vsel %vm732, %v1895, %v1924
      %v1926 = vsel %vm507, %v1913, %v1914
      %v1927 = vsel %vm732, %v1897, %v1926
      %v1928 = vsel %vm507, %v1915, %v1916
      %v1929 = vsel %vm732, %v1901, %v1928
      %v1930 = vsel %vm507, %v1916, %v1917
      %v1931 = vsel %vm732, %v1903, %v1930
      %v1932 = vsel %vm507, %v1917, %v1918
      %v1933 = vsel %vm732, %v1905, %v1932
      %v1934 = vsel %vm507, %v1918, %v1919
      %v1935 = vsel %vm732, %v1907, %v1934
      %1944 = vst [vmem:[#allocation3 + $0x1c0] sm:$0xff] %v1921
      %1945 = vst [vmem:[#allocation3 + $0x1c8] sm:$0xff] %v1923
      %1946 = vst [vmem:[#allocation3 + $0x1d0] sm:$0xff] %v1925
      %1947 = vst [vmem:[#allocation3 + $0x1d8] sm:$0xff] %v1927
      %1948 = vst [vmem:[#allocation3 + $0x1e0] sm:$0xff] %v1929
      %1949 = vst [vmem:[#allocation3 + $0x1e8] sm:$0xff] %v1931
      %1950 = vst [vmem:[#allocation3 + $0x1f0] sm:$0xff] %v1933
      %1951 = vst [vmem:[#allocation3 + $0x1f8] sm:$0xff] %v1935
      %v1952 = vld [vmem:[#allocation2 + $0x4] sm:$0xff]
      %v1953 = vld [vmem:[#allocation2 + $0xc] sm:$0xff]
      %v1954 = vld [vmem:[#allocation2 + $0x14] sm:$0xff]
      %v1955 = vld [vmem:[#allocation2 + $0x1c] sm:$0xff]
      %v1956 = vld [vmem:[#allocation2 + $0x24] sm:$0xf]
      %v1957 = vld [vmem:[#allocation2 + $0x2c] sm:$0xff]
      %v1958 = vld [vmem:[#allocation2 + $0x34] sm:$0xff]
      %v1959 = vld [vmem:[#allocation2 + $0x3c] sm:$0xff]
      %v1960 = vld [vmem:[#allocation2 + $0x44] sm:$0xff]
      %v1961 = vld [vmem:[#allocation2 + $0x4c] sm:$0xf]
      %v1962 = vld [vmem:[%s1 + $0x20] sm:$0x11]
      %v1963 = vld [vmem:[%s1 + $0x28] sm:$0x11]
      %v1964 = vld [vmem:[%s1 + $0x30] sm:$0x11]
      %v1965 = vld [vmem:[%s1 + $0x38] sm:$0x11]
      %v1970 = vunpack.c.l.b16 %v1962
      %v1971 = vunpack.c.h.b16 %v1962
      %v1972 = vunpack.c.l.b16 %v1963
      %v1973 = vunpack.c.h.b16 %v1963
      %v1974 = vunpack.c.l.b16 %v1964
      %v1975 = vunpack.c.h.b16 %v1964
      %v1976 = vunpack.c.l.b16 %v1965
      %v1977 = vunpack.c.h.b16 %v1965
      %v1978 = vpack.c.b16 %v1970, %v1970
      %v1979 = vpack.c.b16 %v1971, %v1971
      %v1980 = vpack.c.b16 %v1972, %v1972
      %v1981 = vpack.c.b16 %v1973, %v1973
      %v1982 = vpack.c.b16 %v1974, %v1974
      %v1983 = vpack.c.b16 %v1975, %v1975
      %v1984 = vpack.c.b16 %v1976, %v1976
      %v1985 = vpack.c.b16 %v1977, %v1977
      %v1987 = vpack.i.b16 %v1978, %v1978
      %v1989 = vlaneseq
      %v1990 = vshrl.u32 %v1989, 7
      %v1991 = vsub.s32 0, %v1990
      %v1992 = vrot.slane %v1987, %v1991
      %v1994 = vpack.i.b16 %v1979, %v1979
      %v1996 = vlaneseq
      %v1997 = vshrl.u32 %v1996, 7
      %v1998 = vsub.s32 0, %v1997
      %v1999 = vrot.slane %v1994, %v1998
      %v2001 = vpack.i.b16 %v1980, %v1980
      %v2003 = vlaneseq
      %v2004 = vshrl.u32 %v2003, 7
      %v2005 = vsub.s32 0, %v2004
      %v2006 = vrot.slane %v2001, %v2005
      %v2008 = vpack.i.b16 %v1981, %v1981
      %v2010 = vlaneseq
      %v2011 = vshrl.u32 %v2010, 7
      %v2012 = vsub.s32 0, %v2011
      %v2013 = vrot.slane %v2008, %v2012
      %v2015 = vpack.i.b16 %v1982, %v1982
      %v2017 = vlaneseq
      %v2018 = vshrl.u32 %v2017, 7
      %v2019 = vsub.s32 0, %v2018
      %v2020 = vrot.slane %v2015, %v2019
      %v2022 = vpack.i.b16 %v1983, %v1983
      %v2024 = vlaneseq
      %v2025 = vshrl.u32 %v2024, 7
      %v2026 = vsub.s32 0, %v2025
      %v2027 = vrot.slane %v2022, %v2026
      %v2029 = vpack.i.b16 %v1984, %v1984
      %v2031 = vlaneseq
      %v2032 = vshrl.u32 %v2031, 7
      %v2033 = vsub.s32 0, %v2032
      %v2034 = vrot.slane %v2029, %v2033
      %v2036 = vpack.i.b16 %v1985, %v1985
      %v2038 = vlaneseq
      %v2039 = vshrl.u32 %v2038, 7
      %v2040 = vsub.s32 0, %v2039
      %v2041 = vrot.slane %v2036, %v2040
      %v2050 = vunpack.c.l.b16 %v1992
      %v2051 = vunpack.c.l.b16 %v1999
      %v2052 = vunpack.c.l.b16 %v2006
      %v2053 = vunpack.c.l.b16 %v2013
      %v2054 = vunpack.c.l.b16 %v2020
      %v2055 = vunpack.c.l.b16 %v2027
      %v2056 = vunpack.c.l.b16 %v2034
      %v2057 = vunpack.c.l.b16 %v2041
      %v2058 = vpack.c.b16 %v2051, %v2050
      %v2059 = vpack.c.b16 %v2053, %v2052
      %v2060 = vpack.c.b16 %v2055, %v2054
      %v2061 = vpack.c.b16 %v2057, %v2056
      %2062 = vrot.lane.b32.xlu0 %v2058, 17
      %v2063 = vpop.permute.xlu0 %2062
      %2064 = vrot.lane.b32.xlu0 %v2059, 17
      %v2065 = vpop.permute.xlu0 %2064
      %2066 = vrot.lane.b32.xlu0 %v2060, 17
      %v2067 = vpop.permute.xlu0 %2066
      %2068 = vrot.lane.b32.xlu0 %v2061, 17
      %v2069 = vpop.permute.xlu0 %2068
      %v2070 = vrot.slane %v2063, 4
      %v2071 = vrot.slane %v2065, 4
      %v2072 = vrot.slane %v2067, 4
      %v2073 = vrot.slane %v2069, 4
      %v2074 = vsel %vm570, %v2070, %v2063
      %v2075 = vsel %vm507, %v2070, %v2071
      %v2076 = vsel %vm570, %v2075, %v2065
      %v2077 = vsel %vm507, %v2071, %v2072
      %v2078 = vsel %vm570, %v2077, %v2067
      %v2079 = vsel %vm507, %v2072, %v2073
      %v2080 = vsel %vm570, %v2079, %v2069
      %v2086 = vmul.bf16 %v1952, %v2074
      %v2087 = vmul.bf16 %v1953, %v2076
      %v2088 = vmul.bf16 %v1954, %v2078
      %v2089 = vmul.bf16 %v1955, %v2080
      %v2090 = vmul.bf16 %v1956, %v2073
      %v2091 = vmul.bf16 %v1957, %v2074
      %v2092 = vmul.bf16 %v1958, %v2076
      %v2093 = vmul.bf16 %v1959, %v2078
      %v2094 = vmul.bf16 %v1960, %v2080
      %v2095 = vmul.bf16 %v1961, %v2073
      %2106 = vrot.lane.b32.xlu0 %v2086, 111
      %v2107 = vpop.permute.xlu0 %2106
      %2108 = vrot.lane.b32.xlu0 %v2087, 111
      %v2109 = vpop.permute.xlu0 %2108
      %2110 = vrot.lane.b32.xlu0 %v2088, 111
      %v2111 = vpop.permute.xlu0 %2110
      %2112 = vrot.lane.b32.xlu0 %v2089, 111
      %v2113 = vpop.permute.xlu0 %2112
      %2114 = vrot.lane.b32.xlu0 %v2090, 111
      %v2115 = vpop.permute.xlu0 %2114
      %2116 = vrot.lane.b32.xlu0 %v2091, 111
      %v2117 = vpop.permute.xlu0 %2116
      %2118 = vrot.lane.b32.xlu0 %v2092, 111
      %v2119 = vpop.permute.xlu0 %2118
      %2120 = vrot.lane.b32.xlu0 %v2093, 111
      %v2121 = vpop.permute.xlu0 %2120
      %2122 = vrot.lane.b32.xlu0 %v2094, 111
      %v2123 = vpop.permute.xlu0 %2122
      %2124 = vrot.lane.b32.xlu0 %v2095, 111
      %v2125 = vpop.permute.xlu0 %2124
      %v2126 = vrot.slane %v2107, 4
      %v2127 = vrot.slane %v2109, 4
      %v2128 = vrot.slane %v2111, 4
      %v2129 = vrot.slane %v2113, 4
      %v2130 = vrot.slane %v2115, 4
      %v2131 = vrot.slane %v2117, 4
      %v2132 = vrot.slane %v2119, 4
      %v2133 = vrot.slane %v2121, 4
      %v2134 = vrot.slane %v2123, 4
      %v2135 = vrot.slane %v2125, 4
      %v2136 = vsel %vm507, %v2126, %v2127
      %v2137 = vsel %vm505, %v2107, %v2136
      %v2138 = vsel %vm507, %v2127, %v2128
      %v2139 = vsel %vm505, %v2109, %v2138
      %v2140 = vsel %vm507, %v2128, %v2129
      %v2141 = vsel %vm505, %v2111, %v2140
      %v2142 = vsel %vm507, %v2129, %v2130
      %v2143 = vsel %vm505, %v2113, %v2142
      %v2144 = vsel %vm507, %v2131, %v2132
      %v2145 = vsel %vm505, %v2117, %v2144
      %v2146 = vsel %vm507, %v2132, %v2133
      %v2147 = vsel %vm505, %v2119, %v2146
      %v2148 = vsel %vm507, %v2133, %v2134
      %v2149 = vsel %vm505, %v2121, %v2148
      %v2150 = vsel %vm507, %v2134, %v2135
      %v2151 = vsel %vm505, %v2123, %v2150
      %2160 = vst [vmem:[#allocation3 + $0x200] sm:$0xff] %v2137
      %2161 = vst [vmem:[#allocation3 + $0x208] sm:$0xff] %v2139
      %2162 = vst [vmem:[#allocation3 + $0x210] sm:$0xff] %v2141
      %2163 = vst [vmem:[#allocation3 + $0x218] sm:$0xff] %v2143
      %2164 = vst [vmem:[#allocation3 + $0x220] sm:$0xff] %v2145
      %2165 = vst [vmem:[#allocation3 + $0x228] sm:$0xff] %v2147
      %2166 = vst [vmem:[#allocation3 + $0x230] sm:$0xff] %v2149
      %2167 = vst [vmem:[#allocation3 + $0x238] sm:$0xff] %v2151
      %v2168 = vld [vmem:[%s2] sm:$0xff]
      %v2169 = vld [vmem:[%s2 + $0x8] sm:$0xff]
      %v2170 = vld [vmem:[#allocation3] sm:$0xff]
      %v2171 = vld [vmem:[#allocation3 + $0x8] sm:$0xff]
      %v2172 = vld [vmem:[#allocation3 + $0x10] sm:$0xff]
      %v2173 = vld [vmem:[#allocation3 + $0x18] sm:$0xff]
      %v2174 = vld [vmem:[#allocation3 + $0x20] sm:$0xff]
      %v2175 = vld [vmem:[#allocation3 + $0x28] sm:$0xff]
      %v2176 = vld [vmem:[#allocation3 + $0x30] sm:$0xff]
      %v2177 = vld [vmem:[#allocation3 + $0x38] sm:$0xff]
      %v2178 = vld [vmem:[#allocation3 + $0x40] sm:$0xff]
      %v2179 = vld [vmem:[#allocation3 + $0x48] sm:$0xff]
      %v2180 = vld [vmem:[#allocation3 + $0x50] sm:$0xff]
      %v2181 = vld [vmem:[#allocation3 + $0x58] sm:$0xff]
      %v2182 = vld [vmem:[#allocation3 + $0x60] sm:$0xff]
      %v2183 = vld [vmem:[#allocation3 + $0x68] sm:$0xff]
      %v2184 = vld [vmem:[#allocation3 + $0x70] sm:$0xff]
      %v2185 = vld [vmem:[#allocation3 + $0x78] sm:$0xff]
      %v2186 = vld [vmem:[#allocation3 + $0x80] sm:$0xff]
      %v2187 = vld [vmem:[#allocation3 + $0x88] sm:$0xff]
      %v2188 = vld [vmem:[#allocation3 + $0x90] sm:$0xff]
      %v2189 = vld [vmem:[#allocation3 + $0x98] sm:$0xff]
      %v2190 = vld [vmem:[#allocation3 + $0xa0] sm:$0xff]
      %v2191 = vld [vmem:[#allocation3 + $0xa8] sm:$0xff]
      %v2192 = vld [vmem:[#allocation3 + $0xb0] sm:$0xff]
      %v2193 = vld [vmem:[#allocation3 + $0xb8] sm:$0xff]
      %v2194 = vld [vmem:[#allocation3 + $0xc0] sm:$0xff]
      %v2195 = vld [vmem:[#allocation3 + $0xc8] sm:$0xff]
      %v2196 = vld [vmem:[#allocation3 + $0xd0] sm:$0xff]
      %v2197 = vld [vmem:[#allocation3 + $0xd8] sm:$0xff]
      %v2198 = vld [vmem:[#allocation3 + $0xe0] sm:$0xff]
      %v2199 = vld [vmem:[#allocation3 + $0xe8] sm:$0xff]
      %v2200 = vld [vmem:[#allocation3 + $0xf0] sm:$0xff]
      %v2201 = vld [vmem:[#allocation3 + $0xf8] sm:$0xff]
      %v2202 = vld [vmem:[#allocation3 + $0x100] sm:$0xff]
      %v2203 = vld [vmem:[#allocation3 + $0x108] sm:$0xff]
      %v2204 = vld [vmem:[#allocation3 + $0x110] sm:$0xff]
      %v2205 = vld [vmem:[#allocation3 + $0x118] sm:$0xff]
      %v2206 = vld [vmem:[#allocation3 + $0x120] sm:$0xff]
      %v2207 = vld [vmem:[#allocation3 + $0x128] sm:$0xff]
      %v2208 = vld [vmem:[#allocation3 + $0x130] sm:$0xff]
      %v2209 = vld [vmem:[#allocation3 + $0x138] sm:$0xff]
      %v2210 = vld [vmem:[#allocation3 + $0x140] sm:$0xff]
      %v2211 = vld [vmem:[#allocation3 + $0x148] sm:$0xff]
      %v2212 = vld [vmem:[#allocation3 + $0x150] sm:$0xff]
      %v2213 = vld [vmem:[#allocation3 + $0x158] sm:$0xff]
      %v2214 = vld [vmem:[#allocation3 + $0x160] sm:$0xff]
      %v2215 = vld [vmem:[#allocation3 + $0x168] sm:$0xff]
      %v2216 = vld [vmem:[#allocation3 + $0x170] sm:$0xff]
      %v2217 = vld [vmem:[#allocation3 + $0x178] sm:$0xff]
      %v2218 = vld [vmem:[#allocation3 + $0x180] sm:$0xff]
      %v2219 = vld [vmem:[#allocation3 + $0x188] sm:$0xff]
      %v2220 = vld [vmem:[#allocation3 + $0x190] sm:$0xff]
      %v2221 = vld [vmem:[#allocation3 + $0x198] sm:$0xff]
      %v2222 = vld [vmem:[#allocation3 + $0x1a0] sm:$0xff]
      %v2223 = vld [vmem:[#allocation3 + $0x1a8] sm:$0xff]
      %v2224 = vld [vmem:[#allocation3 + $0x1b0] sm:$0xff]
      %v2225 = vld [vmem:[#allocation3 + $0x1b8] sm:$0xff]
      %v2226 = vld [vmem:[#allocation3 + $0x1c0] sm:$0xff]
      %v2227 = vld [vmem:[#allocation3 + $0x1c8] sm:$0xff]
      %v2228 = vld [vmem:[#allocation3 + $0x1d0] sm:$0xff]
      %v2229 = vld [vmem:[#allocation3 + $0x1d8] sm:$0xff]
      %v2230 = vld [vmem:[#allocation3 + $0x1e0] sm:$0xff]
      %v2231 = vld [vmem:[#allocation3 + $0x1e8] sm:$0xff]
      %v2232 = vld [vmem:[#allocation3 + $0x1f0] sm:$0xff]
      %v2233 = vld [vmem:[#allocation3 + $0x1f8] sm:$0xff]
      %v2234 = vld [vmem:[#allocation3 + $0x200] sm:$0xff]
      %v2235 = vld [vmem:[#allocation3 + $0x208] sm:$0xff]
      %v2236 = vld [vmem:[#allocation3 + $0x210] sm:$0xff]
      %v2237 = vld [vmem:[#allocation3 + $0x218] sm:$0xff]
      %v2238 = vld [vmem:[#allocation3 + $0x220] sm:$0xff]
      %v2239 = vld [vmem:[#allocation3 + $0x228] sm:$0xff]
      %v2240 = vld [vmem:[#allocation3 + $0x230] sm:$0xff]
      %v2241 = vld [vmem:[#allocation3 + $0x238] sm:$0xff]
      %v2244 = vunpack.c.l.b16 %v2168
      %v2245 = vunpack.c.h.b16 %v2168
      %v2246 = vunpack.c.l.b16 %v2169
      %v2247 = vunpack.c.h.b16 %v2169
      %v2248 = vpack.c.b16 %v2246, %v2244
      %v2249 = vpack.c.b16 %v2247, %v2245
      %v2323 = vunpack.c.l.b16 %v2170
      %v2324 = vunpack.c.h.b16 %v2170
      %v2325 = vunpack.c.l.b16 %v2171
      %v2326 = vunpack.c.h.b16 %v2171
      %v2327 = vunpack.c.l.b16 %v2172
      %v2328 = vunpack.c.h.b16 %v2172
      %v2329 = vunpack.c.l.b16 %v2173
      %v2330 = vunpack.c.h.b16 %v2173
      %v2331 = vunpack.c.l.b16 %v2174
      %v2332 = vunpack.c.h.b16 %v2174
      %v2333 = vunpack.c.l.b16 %v2175
      %v2334 = vunpack.c.h.b16 %v2175
      %v2335 = vunpack.c.l.b16 %v2176
      %v2336 = vunpack.c.h.b16 %v2176
      %v2337 = vunpack.c.l.b16 %v2177
      %v2338 = vunpack.c.h.b16 %v2177
      %v2339 = vunpack.c.l.b16 %v2178
      %v2340 = vunpack.c.h.b16 %v2178
      %v2341 = vunpack.c.l.b16 %v2179
      %v2342 = vunpack.c.h.b16 %v2179
      %v2343 = vunpack.c.l.b16 %v2180
      %v2344 = vunpack.c.h.b16 %v2180
      %v2345 = vunpack.c.l.b16 %v2181
      %v2346 = vunpack.c.h.b16 %v2181
      %v2347 = vunpack.c.l.b16 %v2182
      %v2348 = vunpack.c.h.b16 %v2182
      %v2349 = vunpack.c.l.b16 %v2183
      %v2350 = vunpack.c.h.b16 %v2183
      %v2351 = vunpack.c.l.b16 %v2184
      %v2352 = vunpack.c.h.b16 %v2184
      %v2353 = vunpack.c.l.b16 %v2185
      %v2354 = vunpack.c.h.b16 %v2185
      %v2355 = vunpack.c.l.b16 %v2186
      %v2356 = vunpack.c.h.b16 %v2186
      %v2357 = vunpack.c.l.b16 %v2187
      %v2358 = vunpack.c.h.b16 %v2187
      %v2359 = vunpack.c.l.b16 %v2188
      %v2360 = vunpack.c.h.b16 %v2188
      %v2361 = vunpack.c.l.b16 %v2189
      %v2362 = vunpack.c.h.b16 %v2189
      %v2363 = vunpack.c.l.b16 %v2190
      %v2364 = vunpack.c.h.b16 %v2190
      %v2365 = vunpack.c.l.b16 %v2191
      %v2366 = vunpack.c.h.b16 %v2191
      %v2367 = vunpack.c.l.b16 %v2192
      %v2368 = vunpack.c.h.b16 %v2192
      %v2369 = vunpack.c.l.b16 %v2193
      %v2370 = vunpack.c.h.b16 %v2193
      %v2371 = vunpack.c.l.b16 %v2194
      %v2372 = vunpack.c.h.b16 %v2194
      %v2373 = vunpack.c.l.b16 %v2195
      %v2374 = vunpack.c.h.b16 %v2195
      %v2375 = vunpack.c.l.b16 %v2196
      %v2376 = vunpack.c.h.b16 %v2196
      %v2377 = vunpack.c.l.b16 %v2197
      %v2378 = vunpack.c.h.b16 %v2197
      %v2379 = vunpack.c.l.b16 %v2198
      %v2380 = vunpack.c.h.b16 %v2198
      %v2381 = vunpack.c.l.b16 %v2199
      %v2382 = vunpack.c.h.b16 %v2199
      %v2383 = vunpack.c.l.b16 %v2200
      %v2384 = vunpack.c.h.b16 %v2200
      %v2385 = vunpack.c.l.b16 %v2201
      %v2386 = vunpack.c.h.b16 %v2201
      %v2387 = vunpack.c.l.b16 %v2202
      %v2388 = vunpack.c.h.b16 %v2202
      %v2389 = vunpack.c.l.b16 %v2203
      %v2390 = vunpack.c.h.b16 %v2203
      %v2391 = vunpack.c.l.b16 %v2204
      %v2392 = vunpack.c.h.b16 %v2204
      %v2393 = vunpack.c.l.b16 %v2205
      %v2394 = vunpack.c.h.b16 %v2205
      %v2395 = vunpack.c.l.b16 %v2206
      %v2396 = vunpack.c.h.b16 %v2206
      %v2397 = vunpack.c.l.b16 %v2207
      %v2398 = vunpack.c.h.b16 %v2207
      %v2399 = vunpack.c.l.b16 %v2208
      %v2400 = vunpack.c.h.b16 %v2208
      %v2401 = vunpack.c.l.b16 %v2209
      %v2402 = vunpack.c.h.b16 %v2209
      %v2403 = vunpack.c.l.b16 %v2210
      %v2404 = vunpack.c.h.b16 %v2210
      %v2405 = vunpack.c.l.b16 %v2211
      %v2406 = vunpack.c.h.b16 %v2211
      %v2407 = vunpack.c.l.b16 %v2212
      %v2408 = vunpack.c.h.b16 %v2212
      %v2409 = vunpack.c.l.b16 %v2213
      %v2410 = vunpack.c.h.b16 %v2213
      %v2411 = vunpack.c.l.b16 %v2214
      %v2412 = vunpack.c.h.b16 %v2214
      %v2413 = vunpack.c.l.b16 %v2215
      %v2414 = vunpack.c.h.b16 %v2215
      %v2415 = vunpack.c.l.b16 %v2216
      %v2416 = vunpack.c.h.b16 %v2216
      %v2417 = vunpack.c.l.b16 %v2217
      %v2418 = vunpack.c.h.b16 %v2217
      %v2419 = vunpack.c.l.b16 %v2218
      %v2420 = vunpack.c.h.b16 %v2218
      %v2421 = vunpack.c.l.b16 %v2219
      %v2422 = vunpack.c.h.b16 %v2219
      %v2423 = vunpack.c.l.b16 %v2220
      %v2424 = vunpack.c.h.b16 %v2220
      %v2425 = vunpack.c.l.b16 %v2221
      %v2426 = vunpack.c.h.b16 %v2221
      %v2427 = vunpack.c.l.b16 %v2222
      %v2428 = vunpack.c.h.b16 %v2222
      %v2429 = vunpack.c.l.b16 %v2223
      %v2430 = vunpack.c.h.b16 %v2223
      %v2431 = vunpack.c.l.b16 %v2224
      %v2432 = vunpack.c.h.b16 %v2224
      %v2433 = vunpack.c.l.b16 %v2225
      %v2434 = vunpack.c.h.b16 %v2225
      %v2435 = vunpack.c.l.b16 %v2226
      %v2436 = vunpack.c.h.b16 %v2226
      %v2437 = vunpack.c.l.b16 %v2227
      %v2438 = vunpack.c.h.b16 %v2227
      %v2439 = vunpack.c.l.b16 %v2228
      %v2440 = vunpack.c.h.b16 %v2228
      %v2441 = vunpack.c.l.b16 %v2229
      %v2442 = vunpack.c.h.b16 %v2229
      %v2443 = vunpack.c.l.b16 %v2230
      %v2444 = vunpack.c.h.b16 %v2230
      %v2445 = vunpack.c.l.b16 %v2231
      %v2446 = vunpack.c.h.b16 %v2231
      %v2447 = vunpack.c.l.b16 %v2232
      %v2448 = vunpack.c.h.b16 %v2232
      %v2449 = vunpack.c.l.b16 %v2233
      %v2450 = vunpack.c.h.b16 %v2233
      %v2451 = vunpack.c.l.b16 %v2234
      %v2452 = vunpack.c.h.b16 %v2234
      %v2453 = vunpack.c.l.b16 %v2235
      %v2454 = vunpack.c.h.b16 %v2235
      %v2455 = vunpack.c.l.b16 %v2236
      %v2456 = vunpack.c.h.b16 %v2236
      %v2457 = vunpack.c.l.b16 %v2237
      %v2458 = vunpack.c.h.b16 %v2237
      %v2459 = vunpack.c.l.b16 %v2238
      %v2460 = vunpack.c.h.b16 %v2238
      %v2461 = vunpack.c.l.b16 %v2239
      %v2462 = vunpack.c.h.b16 %v2239
      %v2463 = vunpack.c.l.b16 %v2240
      %v2464 = vunpack.c.h.b16 %v2240
      %v2465 = vunpack.c.l.b16 %v2241
      %v2466 = vunpack.c.h.b16 %v2241
      %v2467 = vpack.c.b16 %v2331, %v2323
      %v2468 = vpack.c.b16 %v2332, %v2324
      %v2469 = vpack.c.b16 %v2333, %v2325
      %v2470 = vpack.c.b16 %v2334, %v2326
      %v2471 = vpack.c.b16 %v2335, %v2327
      %v2472 = vpack.c.b16 %v2336, %v2328
      %v2473 = vpack.c.b16 %v2337, %v2329
      %v2474 = vpack.c.b16 %v2338, %v2330
      %v2475 = vpack.c.b16 %v2347, %v2339
      %v2476 = vpack.c.b16 %v2348, %v2340
      %v2477 = vpack.c.b16 %v2349, %v2341
      %v2478 = vpack.c.b16 %v2350, %v2342
      %v2479 = vpack.c.b16 %v2351, %v2343
      %v2480 = vpack.c.b16 %v2352, %v2344
      %v2481 = vpack.c.b16 %v2353, %v2345
      %v2482 = vpack.c.b16 %v2354, %v2346
      %v2483 = vpack.c.b16 %v2363, %v2355
      %v2484 = vpack.c.b16 %v2364, %v2356
      %v2485 = vpack.c.b16 %v2365, %v2357
      %v2486 = vpack.c.b16 %v2366, %v2358
      %v2487 = vpack.c.b16 %v2367, %v2359
      %v2488 = vpack.c.b16 %v2368, %v2360
      %v2489 = vpack.c.b16 %v2369, %v2361
      %v2490 = vpack.c.b16 %v2370, %v2362
      %v2491 = vpack.c.b16 %v2379, %v2371
      %v2492 = vpack.c.b16 %v2380, %v2372
      %v2493 = vpack.c.b16 %v2381, %v2373
      %v2494 = vpack.c.b16 %v2382, %v2374
      %v2495 = vpack.c.b16 %v2383, %v2375
      %v2496 = vpack.c.b16 %v2384, %v2376
      %v2497 = vpack.c.b16 %v2385, %v2377
      %v2498 = vpack.c.b16 %v2386, %v2378
      %v2499 = vpack.c.b16 %v2395, %v2387
      %v2500 = vpack.c.b16 %v2396, %v2388
      %v2501 = vpack.c.b16 %v2397, %v2389
      %v2502 = vpack.c.b16 %v2398, %v2390
      %v2503 = vpack.c.b16 %v2399, %v2391
      %v2504 = vpack.c.b16 %v2400, %v2392
      %v2505 = vpack.c.b16 %v2401, %v2393
      %v2506 = vpack.c.b16 %v2402, %v2394
      %v2507 = vpack.c.b16 %v2411, %v2403
      %v2508 = vpack.c.b16 %v2412, %v2404
      %v2509 = vpack.c.b16 %v2413, %v2405
      %v2510 = vpack.c.b16 %v2414, %v2406
      %v2511 = vpack.c.b16 %v2415, %v2407
      %v2512 = vpack.c.b16 %v2416, %v2408
      %v2513 = vpack.c.b16 %v2417, %v2409
      %v2514 = vpack.c.b16 %v2418, %v2410
      %v2515 = vpack.c.b16 %v2427, %v2419
      %v2516 = vpack.c.b16 %v2428, %v2420
      %v2517 = vpack.c.b16 %v2429, %v2421
      %v2518 = vpack.c.b16 %v2430, %v2422
      %v2519 = vpack.c.b16 %v2431, %v2423
      %v2520 = vpack.c.b16 %v2432, %v2424
      %v2521 = vpack.c.b16 %v2433, %v2425
      %v2522 = vpack.c.b16 %v2434, %v2426
      %v2523 = vpack.c.b16 %v2443, %v2435
      %v2524 = vpack.c.b16 %v2444, %v2436
      %v2525 = vpack.c.b16 %v2445, %v2437
      %v2526 = vpack.c.b16 %v2446, %v2438
      %v2527 = vpack.c.b16 %v2447, %v2439
      %v2528 = vpack.c.b16 %v2448, %v2440
      %v2529 = vpack.c.b16 %v2449, %v2441
      %v2530 = vpack.c.b16 %v2450, %v2442
      %v2531 = vpack.c.b16 %v2459, %v2451
      %v2532 = vpack.c.b16 %v2460, %v2452
      %v2533 = vpack.c.b16 %v2461, %v2453
      %v2534 = vpack.c.b16 %v2462, %v2454
      %v2535 = vpack.c.b16 %v2463, %v2455
      %v2536 = vpack.c.b16 %v2464, %v2456
      %v2537 = vpack.c.b16 %v2465, %v2457
      %v2538 = vpack.c.b16 %v2466, %v2458
      %vm2611 = vcmask 130048
      %v2613 = vsel %vm2611, %v2249, 0
      %2615 = vmatprep.subr.bf16.mxu0 %v2524
      %2616 = vmatpush1.bf16.msra.mxu0 %v2523
      %2617 = vmatprep.subr.bf16.mxu0 %v2516
      %2618 = vmatpush1.bf16.msra.mxu0 %v2515
      %2619 = vmatprep.subr.bf16.mxu0 %v2508
      %2620 = vmatpush1.bf16.msra.mxu0 %v2507
      %2621 = vmatprep.subr.bf16.mxu0 %v2500
      %2622 = vmatpush1.bf16.msra.mxu0 %v2499
      %2623 = vmatprep.subr.bf16.mxu0 %v2492
      %2624 = vmatpush1.bf16.msra.mxu0 %v2491
      %2625 = vmatprep.subr.bf16.mxu0 %v2484
      %2626 = vmatpush1.bf16.msra.mxu0 %v2483
      %2627 = vmatprep.subr.bf16.mxu0 %v2476
      %2628 = vmatpush1.bf16.msra.mxu0 %v2475
      %2629 = vmatprep.subr.bf16.mxu0 %v2468
      %2630 = vmatpush1.bf16.msra.mxu0 %v2467
      %2631 = vmatprep.subr.bf16.mxu0 0
      %2632 = vmatpush2.bf16.msra.mxu0 0
      %2633 = vmatprep.subr.bf16.mxu0 0
      %2634 = vmatpush2.bf16.msra.mxu0 0
      %2635 = vmatprep.subr.bf16.mxu0 0
      %2636 = vmatpush2.bf16.msra.mxu0 0
      %2637 = vmatprep.subr.bf16.mxu0 0
      %2638 = vmatpush2.bf16.msra.mxu0 0
      %2639 = vmatprep.subr.bf16.mxu0 0
      %2640 = vmatpush2.bf16.msra.mxu0 0
      %2641 = vmatprep.subr.bf16.mxu0 0
      %2642 = vmatpush2.bf16.msra.mxu0 0
      %2643 = vmatprep.subr.bf16.mxu0 0
      %2644 = vmatpush2.bf16.msra.mxu0 0
      %2645 = vmatprep.subr.bf16.mxu0 %v2532
      %2646 = vmatpush2.bf16.msra.mxu0 %v2531
      %2647 = vmatprep.mubr.bf16.mxu0 %v2613
      %2648 = vmatmul.mubr.bf16.gmra.mxu0 %v2248
      %v2649 = vpop.f32.mrf.mxu0
      %v2650 = vadd.f32 0.0, %v2649
      %v2651 = vpop.f32.mrf.mxu0
      %v2652 = vadd.f32 0.0, %v2651
      %v2653 = vpop.f32.mrf.mxu0
      %v2654 = vadd.f32 0.0, %v2653
      %v2655 = vpop.f32.mrf.mxu0
      %v2656 = vadd.f32 0.0, %v2655
      %2657 = vdwg.mxu0
      %2658 = vmatprep.subr.bf16.mxu0 %v2526
      %2659 = vmatpush1.bf16.msra.mxu0 %v2525
      %2660 = vmatprep.subr.bf16.mxu0 %v2518
      %2661 = vmatpush1.bf16.msra.mxu0 %v2517
      %2662 = vmatprep.subr.bf16.mxu0 %v2510
      %2663 = vmatpush1.bf16.msra.mxu0 %v2509
      %2664 = vmatprep.subr.bf16.mxu0 %v2502
      %2665 = vmatpush1.bf16.msra.mxu0 %v2501
      %2666 = vmatprep.subr.bf16.mxu0 %v2494
      %2667 = vmatpush1.bf16.msra.mxu0 %v2493
      %2668 = vmatprep.subr.bf16.mxu0 %v2486
      %2669 = vmatpush1.bf16.msra.mxu0 %v2485
      %2670 = vmatprep.subr.bf16.mxu0 %v2478
      %2671 = vmatpush1.bf16.msra.mxu0 %v2477
      %2672 = vmatprep.subr.bf16.mxu0 %v2470
      %2673 = vmatpush1.bf16.msra.mxu0 %v2469
      %2674 = vmatprep.subr.bf16.mxu0 0
      %2675 = vmatpush2.bf16.msra.mxu0 0
      %2676 = vmatprep.subr.bf16.mxu0 0
      %2677 = vmatpush2.bf16.msra.mxu0 0
      %2678 = vmatprep.subr.bf16.mxu0 0
      %2679 = vmatpush2.bf16.msra.mxu0 0
      %2680 = vmatprep.subr.bf16.mxu0 0
      %2681 = vmatpush2.bf16.msra.mxu0 0
      %2682 = vmatprep.subr.bf16.mxu0 0
      %2683 = vmatpush2.bf16.msra.mxu0 0
      %2684 = vmatprep.subr.bf16.mxu0 0
      %2685 = vmatpush2.bf16.msra.mxu0 0
      %2686 = vmatprep.subr.bf16.mxu0 0
      %2687 = vmatpush2.bf16.msra.mxu0 0
      %2688 = vmatprep.subr.bf16.mxu0 %v2534
      %2689 = vmatpush2.bf16.msra.mxu0 %v2533
      %2690 = vmatprep.mubr.bf16.mxu0 %v2613
      %2691 = vmatmul.mubr.bf16.gmra.mxu0 %v2248
      %v2692 = vpop.f32.mrf.mxu0
      %v2693 = vadd.f32 0.0, %v2692
      %v2694 = vpop.f32.mrf.mxu0
      %v2695 = vadd.f32 0.0, %v2694
      %v2696 = vpop.f32.mrf.mxu0
      %v2697 = vadd.f32 0.0, %v2696
      %v2698 = vpop.f32.mrf.mxu0
      %v2699 = vadd.f32 0.0, %v2698
      %2700 = vdwg.mxu0
      %2701 = vmatprep.subr.bf16.mxu0 %v2528
      %2702 = vmatpush1.bf16.msra.mxu0 %v2527
      %2703 = vmatprep.subr.bf16.mxu0 %v2520
      %2704 = vmatpush1.bf16.msra.mxu0 %v2519
      %2705 = vmatprep.subr.bf16.mxu0 %v2512
      %2706 = vmatpush1.bf16.msra.mxu0 %v2511
      %2707 = vmatprep.subr.bf16.mxu0 %v2504
      %2708 = vmatpush1.bf16.msra.mxu0 %v2503
      %2709 = vmatprep.subr.bf16.mxu0 %v2496
      %2710 = vmatpush1.bf16.msra.mxu0 %v2495
      %2711 = vmatprep.subr.bf16.mxu0 %v2488
      %2712 = vmatpush1.bf16.msra.mxu0 %v2487
      %2713 = vmatprep.subr.bf16.mxu0 %v2480
      %2714 = vmatpush1.bf16.msra.mxu0 %v2479
      %2715 = vmatprep.subr.bf16.mxu0 %v2472
      %2716 = vmatpush1.bf16.msra.mxu0 %v2471
      %2717 = vmatprep.subr.bf16.mxu0 0
      %2718 = vmatpush2.bf16.msra.mxu0 0
      %2719 = vmatprep.subr.bf16.mxu0 0
      %2720 = vmatpush2.bf16.msra.mxu0 0
      %2721 = vmatprep.subr.bf16.mxu0 0
      %2722 = vmatpush2.bf16.msra.mxu0 0
      %2723 = vmatprep.subr.bf16.mxu0 0
      %2724 = vmatpush2.bf16.msra.mxu0 0
      %2725 = vmatprep.subr.bf16.mxu0 0
      %2726 = vmatpush2.bf16.msra.mxu0 0
      %2727 = vmatprep.subr.bf16.mxu0 0
      %2728 = vmatpush2.bf16.msra.mxu0 0
      %2729 = vmatprep.subr.bf16.mxu0 0
      %2730 = vmatpush2.bf16.msra.mxu0 0
      %2731 = vmatprep.subr.bf16.mxu0 %v2536
      %2732 = vmatpush2.bf16.msra.mxu0 %v2535
      %2733 = vmatprep.mubr.bf16.mxu0 %v2613
      %2734 = vmatmul.mubr.bf16.gmra.mxu0 %v2248
      %v2735 = vpop.f32.mrf.mxu0
      %v2736 = vadd.f32 0.0, %v2735
      %v2737 = vpop.f32.mrf.mxu0
      %v2738 = vadd.f32 0.0, %v2737
      %v2739 = vpop.f32.mrf.mxu0
      %v2740 = vadd.f32 0.0, %v2739
      %v2741 = vpop.f32.mrf.mxu0
      %v2742 = vadd.f32 0.0, %v2741
      %2743 = vdwg.mxu0
      %2744 = vmatprep.subr.bf16.mxu0 %v2530
      %2745 = vmatpush1.bf16.msra.mxu0 %v2529
      %2746 = vmatprep.subr.bf16.mxu0 %v2522
      %2747 = vmatpush1.bf16.msra.mxu0 %v2521
      %2748 = vmatprep.subr.bf16.mxu0 %v2514
      %2749 = vmatpush1.bf16.msra.mxu0 %v2513
      %2750 = vmatprep.subr.bf16.mxu0 %v2506
      %2751 = vmatpush1.bf16.msra.mxu0 %v2505
      %2752 = vmatprep.subr.bf16.mxu0 %v2498
      %2753 = vmatpush1.bf16.msra.mxu0 %v2497
      %2754 = vmatprep.subr.bf16.mxu0 %v2490
      %2755 = vmatpush1.bf16.msra.mxu0 %v2489
      %2756 = vmatprep.subr.bf16.mxu0 %v2482
      %2757 = vmatpush1.bf16.msra.mxu0 %v2481
      %2758 = vmatprep.subr.bf16.mxu0 %v2474
      %2759 = vmatpush1.bf16.msra.mxu0 %v2473
      %2760 = vmatprep.subr.bf16.mxu0 0
      %2761 = vmatpush2.bf16.msra.mxu0 0
      %2762 = vmatprep.subr.bf16.mxu0 0
      %2763 = vmatpush2.bf16.msra.mxu0 0
      %2764 = vmatprep.subr.bf16.mxu0 0
      %2765 = vmatpush2.bf16.msra.mxu0 0
      %2766 = vmatprep.subr.bf16.mxu0 0
      %2767 = vmatpush2.bf16.msra.mxu0 0
      %2768 = vmatprep.subr.bf16.mxu0 0
      %2769 = vmatpush2.bf16.msra.mxu0 0
      %2770 = vmatprep.subr.bf16.mxu0 0
      %2771 = vmatpush2.bf16.msra.mxu0 0
      %2772 = vmatprep.subr.bf16.mxu0 0
      %2773 = vmatpush2.bf16.msra.mxu0 0
      %2774 = vmatprep.subr.bf16.mxu0 %v2538
      %2775 = vmatpush2.bf16.msra.mxu0 %v2537
      %2776 = vmatprep.mubr.bf16.mxu0 %v2613
      %2777 = vmatmul.mubr.bf16.gmra.mxu0 %v2248
      %v2778 = vpop.f32.mrf.mxu0
      %v2779 = vadd.f32 0.0, %v2778
      %v2780 = vpop.f32.mrf.mxu0
      %v2781 = vadd.f32 0.0, %v2780
      %v2782 = vpop.f32.mrf.mxu0
      %v2783 = vadd.f32 0.0, %v2782
      %v2784 = vpop.f32.mrf.mxu0
      %v2785 = vadd.f32 0.0, %v2784
      %2786 = vdwg.mxu0
      %v2787 = vld [vmem:[%s3] sm:$0xff]
      %v2788 = vld [vmem:[%s3 + $0x8] sm:$0xff]
      %2790 = vset.pattern.permute.xlu0 0
      %2791 = vperm.xlu0 %2790, %v2787
      %v2792 = vpop.permute.xlu0 %2791
      %2795 = vset.pattern.permute.xlu0 0
      %2796 = vperm.xlu0 %2795, %v2788
      %v2797 = vpop.permute.xlu0 %2796
      %v2799 = vmul.f32 %v2650, %v2792
      %v2800 = vmul.f32 %v2652, %v2792
      %v2801 = vmul.f32 %v2693, %v2792
      %v2802 = vmul.f32 %v2695, %v2792
      %v2803 = vmul.f32 %v2736, %v2792
      %v2804 = vmul.f32 %v2738, %v2792
      %v2805 = vmul.f32 %v2779, %v2792
      %v2806 = vmul.f32 %v2781, %v2792
      %v2807 = vmul.f32 %v2654, %v2797
      %v2808 = vmul.f32 %v2656, %v2797
      %v2809 = vmul.f32 %v2697, %v2797
      %v2810 = vmul.f32 %v2699, %v2797
      %v2811 = vmul.f32 %v2740, %v2797
      %v2812 = vmul.f32 %v2742, %v2797
      %v2813 = vmul.f32 %v2783, %v2797
      %v2814 = vmul.f32 %v2785, %v2797
      %v2815 = vld [vmem:[%s4] sm:$0xff]
      %v2816 = vld [vmem:[%s4 + $0x8] sm:$0xff]
      %2818 = vset.pattern.permute.xlu0 0
      %2819 = vperm.xlu0 %2818, %v2815
      %v2820 = vpop.permute.xlu0 %2819
      %2823 = vset.pattern.permute.xlu0 0
      %2824 = vperm.xlu0 %2823, %v2816
      %v2825 = vpop.permute.xlu0 %2824
      %v2827 = vadd.f32 %v2799, %v2820
      %v2828 = vadd.f32 %v2800, %v2820
      %v2829 = vadd.f32 %v2801, %v2820
      %v2830 = vadd.f32 %v2802, %v2820
      %v2831 = vadd.f32 %v2803, %v2820
      %v2832 = vadd.f32 %v2804, %v2820
      %v2833 = vadd.f32 %v2805, %v2820
      %v2834 = vadd.f32 %v2806, %v2820
      %v2835 = vadd.f32 %v2807, %v2825
      %v2836 = vadd.f32 %v2808, %v2825
      %v2837 = vadd.f32 %v2809, %v2825
      %v2838 = vadd.f32 %v2810, %v2825
      %v2839 = vadd.f32 %v2811, %v2825
      %v2840 = vadd.f32 %v2812, %v2825
      %v2841 = vadd.f32 %v2813, %v2825
      %v2842 = vadd.f32 %v2814, %v2825
      %v2843 = vmax.f32 %v2827, 0.0
      %v2844 = vmax.f32 %v2828, 0.0
      %v2845 = vmax.f32 %v2829, 0.0
      %v2846 = vmax.f32 %v2830, 0.0
      %v2847 = vmax.f32 %v2831, 0.0
      %v2848 = vmax.f32 %v2832, 0.0
      %v2849 = vmax.f32 %v2833, 0.0
      %v2850 = vmax.f32 %v2834, 0.0
      %v2851 = vmax.f32 %v2835, 0.0
      %v2852 = vmax.f32 %v2836, 0.0
      %v2853 = vmax.f32 %v2837, 0.0
      %v2854 = vmax.f32 %v2838, 0.0
      %v2855 = vmax.f32 %v2839, 0.0
      %v2856 = vmax.f32 %v2840, 0.0
      %v2857 = vmax.f32 %v2841, 0.0
      %v2858 = vmax.f32 %v2842, 0.0
      %v2859 = vpack.c.bf16 %v2851, %v2843
      %v2860 = vpack.c.bf16 %v2852, %v2844
      %v2861 = vpack.c.bf16 %v2853, %v2845
      %v2862 = vpack.c.bf16 %v2854, %v2846
      %v2863 = vpack.c.bf16 %v2855, %v2847
      %v2864 = vpack.c.bf16 %v2856, %v2848
      %v2865 = vpack.c.bf16 %v2857, %v2849
      %v2866 = vpack.c.bf16 %v2858, %v2850
      %v2875 = vunpack.c.l.b16 %v2859
      %v2876 = vunpack.c.l.b16 %v2860
      %v2877 = vunpack.c.l.b16 %v2861
      %v2878 = vunpack.c.l.b16 %v2862
      %v2879 = vunpack.c.l.b16 %v2863
      %v2880 = vunpack.c.l.b16 %v2864
      %v2881 = vunpack.c.l.b16 %v2865
      %v2882 = vunpack.c.l.b16 %v2866
      %v2883 = vunpack.c.h.b16 %v2859
      %v2884 = vunpack.c.h.b16 %v2860
      %v2885 = vunpack.c.h.b16 %v2861
      %v2886 = vunpack.c.h.b16 %v2862
      %v2887 = vunpack.c.h.b16 %v2863
      %v2888 = vunpack.c.h.b16 %v2864
      %v2889 = vunpack.c.h.b16 %v2865
      %v2890 = vunpack.c.h.b16 %v2866
      %v2891 = vpack.c.b16 %v2876, %v2875
      %v2892 = vpack.c.b16 %v2878, %v2877
      %v2893 = vpack.c.b16 %v2880, %v2879
      %v2894 = vpack.c.b16 %v2882, %v2881
      %v2895 = vpack.c.b16 %v2884, %v2883
      %v2896 = vpack.c.b16 %v2886, %v2885
      %v2897 = vpack.c.b16 %v2888, %v2887
      %v2898 = vpack.c.b16 %v2890, %v2889
      %2907 = vst [vmem:[#allocation2 + $0x4] sm:$0xff] %v2891
      %2908 = vst [vmem:[#allocation2 + $0xc] sm:$0xff] %v2892
      %2909 = vst [vmem:[#allocation2 + $0x14] sm:$0xff] %v2893
      %2910 = vst [vmem:[#allocation2 + $0x1c] sm:$0xff] %v2894
      %2911 = vst [vmem:[#allocation2 + $0x2c] sm:$0xff] %v2895
      %2912 = vst [vmem:[#allocation2 + $0x34] sm:$0xff] %v2896
      %2913 = vst [vmem:[#allocation2 + $0x3c] sm:$0xff] %v2897
      %2914 = vst [vmem:[#allocation2 + $0x44] sm:$0xff] %v2898
      %v2915 = vld [vmem:[#allocation2] sm:$0xff]
      %v2916 = vld [vmem:[#allocation2 + $0x8] sm:$0xff]
      %v2917 = vld [vmem:[#allocation2 + $0x10] sm:$0xff]
      %v2918 = vld [vmem:[#allocation2 + $0x18] sm:$0xff]
      %v2919 = vld [vmem:[#allocation2 + $0x20] sm:$0xf]
      %v2920 = vld [vmem:[#allocation2 + $0x28] sm:$0xff]
      %v2921 = vld [vmem:[#allocation2 + $0x30] sm:$0xff]
      %v2922 = vld [vmem:[#allocation2 + $0x38] sm:$0xff]
      %v2923 = vld [vmem:[#allocation2 + $0x40] sm:$0xff]
      %v2924 = vld [vmem:[#allocation2 + $0x48] sm:$0xf]
      %v2925 = vld [vmem:[%s1] sm:$0x11]
      %v2926 = vld [vmem:[%s1 + $0x8] sm:$0x11]
      %v2927 = vld [vmem:[%s1 + $0x10] sm:$0x11]
      %v2928 = vld [vmem:[%s1 + $0x18] sm:$0x11]
      %v2933 = vunpack.c.l.b16 %v2925
      %v2934 = vunpack.c.h.b16 %v2925
      %v2935 = vunpack.c.l.b16 %v2926
      %v2936 = vunpack.c.h.b16 %v2926
      %v2937 = vunpack.c.l.b16 %v2927
      %v2938 = vunpack.c.h.b16 %v2927
      %v2939 = vunpack.c.l.b16 %v2928
      %v2940 = vunpack.c.h.b16 %v2928
      %v2941 = vpack.c.b16 %v2933, %v2933
      %v2942 = vpack.c.b16 %v2934, %v2934
      %v2943 = vpack.c.b16 %v2935, %v2935
      %v2944 = vpack.c.b16 %v2936, %v2936
      %v2945 = vpack.c.b16 %v2937, %v2937
      %v2946 = vpack.c.b16 %v2938, %v2938
      %v2947 = vpack.c.b16 %v2939, %v2939
      %v2948 = vpack.c.b16 %v2940, %v2940
      %v2950 = vpack.i.b16 %v2941, %v2941
      %v2952 = vlaneseq
      %v2953 = vshrl.u32 %v2952, 7
      %v2954 = vsub.s32 0, %v2953
      %v2955 = vrot.slane %v2950, %v2954
      %v2957 = vpack.i.b16 %v2942, %v2942
      %v2959 = vlaneseq
      %v2960 = vshrl.u32 %v2959, 7
      %v2961 = vsub.s32 0, %v2960
      %v2962 = vrot.slane %v2957, %v2961
      %v2964 = vpack.i.b16 %v2943, %v2943
      %v2966 = vlaneseq
      %v2967 = vshrl.u32 %v2966, 7
      %v2968 = vsub.s32 0, %v2967
      %v2969 = vrot.slane %v2964, %v2968
      %v2971 = vpack.i.b16 %v2944, %v2944
      %v2973 = vlaneseq
      %v2974 = vshrl.u32 %v2973, 7
      %v2975 = vsub.s32 0, %v2974
      %v2976 = vrot.slane %v2971, %v2975
      %v2978 = vpack.i.b16 %v2945, %v2945
      %v2980 = vlaneseq
      %v2981 = vshrl.u32 %v2980, 7
      %v2982 = vsub.s32 0, %v2981
      %v2983 = vrot.slane %v2978, %v2982
      %v2985 = vpack.i.b16 %v2946, %v2946
      %v2987 = vlaneseq
      %v2988 = vshrl.u32 %v2987, 7
      %v2989 = vsub.s32 0, %v2988
      %v2990 = vrot.slane %v2985, %v2989
      %v2992 = vpack.i.b16 %v2947, %v2947
      %v2994 = vlaneseq
      %v2995 = vshrl.u32 %v2994, 7
      %v2996 = vsub.s32 0, %v2995
      %v2997 = vrot.slane %v2992, %v2996
      %v2999 = vpack.i.b16 %v2948, %v2948
      %v3001 = vlaneseq
      %v3002 = vshrl.u32 %v3001, 7
      %v3003 = vsub.s32 0, %v3002
      %v3004 = vrot.slane %v2999, %v3003
      %v3013 = vunpack.c.l.b16 %v2955
      %v3014 = vunpack.c.l.b16 %v2962
      %v3015 = vunpack.c.l.b16 %v2969
      %v3016 = vunpack.c.l.b16 %v2976
      %v3017 = vunpack.c.l.b16 %v2983
      %v3018 = vunpack.c.l.b16 %v2990
      %v3019 = vunpack.c.l.b16 %v2997
      %v3020 = vunpack.c.l.b16 %v3004
      %v3021 = vpack.c.b16 %v3014, %v3013
      %v3022 = vpack.c.b16 %v3016, %v3015
      %v3023 = vpack.c.b16 %v3018, %v3017
      %v3024 = vpack.c.b16 %v3020, %v3019
      %3025 = vrot.lane.b32.xlu0 %v3021, 111
      %v3026 = vpop.permute.xlu0 %3025
      %3027 = vrot.lane.b32.xlu0 %v3022, 111
      %v3028 = vpop.permute.xlu0 %3027
      %3029 = vrot.lane.b32.xlu0 %v3023, 111
      %v3030 = vpop.permute.xlu0 %3029
      %3031 = vrot.lane.b32.xlu0 %v3024, 111
      %v3032 = vpop.permute.xlu0 %3031
      %v3033 = vrot.slane %v3026, 4
      %v3034 = vrot.slane %v3028, 4
      %v3035 = vrot.slane %v3030, 4
      %v3036 = vrot.slane %v3032, 4
      %v3037 = vsel %vm505, %v3033, %v3026
      %v3038 = vsel %vm507, %v3033, %v3034
      %v3039 = vsel %vm505, %v3038, %v3028
      %v3040 = vsel %vm507, %v3034, %v3035
      %v3041 = vsel %vm505, %v3040, %v3030
      %v3042 = vsel %vm507, %v3035, %v3036
      %v3043 = vsel %vm505, %v3042, %v3032
      %v3049 = vmul.bf16 %v2915, %v3037
      %v3050 = vmul.bf16 %v2916, %v3039
      %v3051 = vmul.bf16 %v2917, %v3041
      %v3052 = vmul.bf16 %v2918, %v3043
      %v3053 = vmul.bf16 %v2919, %v3036
      %v3054 = vmul.bf16 %v2920, %v3037
      %v3055 = vmul.bf16 %v2921, %v3039
      %v3056 = vmul.bf16 %v2922, %v3041
      %v3057 = vmul.bf16 %v2923, %v3043
      %v3058 = vmul.bf16 %v2924, %v3036
      %3069 = vrot.lane.b32.xlu0 %v3049, 17
      %v3070 = vpop.permute.xlu0 %3069
      %3071 = vrot.lane.b32.xlu0 %v3050, 17
      %v3072 = vpop.permute.xlu0 %3071
      %3073 = vrot.lane.b32.xlu0 %v3051, 17
      %v3074 = vpop.permute.xlu0 %3073
      %3075 = vrot.lane.b32.xlu0 %v3052, 17
      %v3076 = vpop.permute.xlu0 %3075
      %3077 = vrot.lane.b32.xlu0 %v3053, 17
      %v3078 = vpop.permute.xlu0 %3077
      %3079 = vrot.lane.b32.xlu0 %v3054, 17
      %v3080 = vpop.permute.xlu0 %3079
      %3081 = vrot.lane.b32.xlu0 %v3055, 17
      %v3082 = vpop.permute.xlu0 %3081
      %3083 = vrot.lane.b32.xlu0 %v3056, 17
      %v3084 = vpop.permute.xlu0 %3083
      %3085 = vrot.lane.b32.xlu0 %v3057, 17
      %v3086 = vpop.permute.xlu0 %3085
      %3087 = vrot.lane.b32.xlu0 %v3058, 17
      %v3088 = vpop.permute.xlu0 %3087
      %v3089 = vrot.slane %v3070, 4
      %v3090 = vrot.slane %v3072, 4
      %v3091 = vrot.slane %v3074, 4
      %v3092 = vrot.slane %v3076, 4
      %v3093 = vrot.slane %v3078, 4
      %v3094 = vrot.slane %v3080, 4
      %v3095 = vrot.slane %v3082, 4
      %v3096 = vrot.slane %v3084, 4
      %v3097 = vrot.slane %v3086, 4
      %v3098 = vrot.slane %v3088, 4
      %v3099 = vsel %vm507, %v3089, %v3090
      %v3100 = vsel %vm570, %v3070, %v3099
      %v3101 = vsel %vm507, %v3090, %v3091
      %v3102 = vsel %vm570, %v3072, %v3101
      %v3103 = vsel %vm507, %v3091, %v3092
      %v3104 = vsel %vm570, %v3074, %v3103
      %v3105 = vsel %vm507, %v3092, %v3093
      %v3106 = vsel %vm570, %v3076, %v3105
      %v3107 = vsel %vm507, %v3094, %v3095
      %v3108 = vsel %vm570, %v3080, %v3107
      %v3109 = vsel %vm507, %v3095, %v3096
      %v3110 = vsel %vm570, %v3082, %v3109
      %v3111 = vsel %vm507, %v3096, %v3097
      %v3112 = vsel %vm570, %v3084, %v3111
      %v3113 = vsel %vm507, %v3097, %v3098
      %v3114 = vsel %vm570, %v3086, %v3113
      %3123 = vst [vmem:[#allocation3] sm:$0xff] %v3100
      %3124 = vst [vmem:[#allocation3 + $0x8] sm:$0xff] %v3102
      %3125 = vst [vmem:[#allocation3 + $0x10] sm:$0xff] %v3104
      %3126 = vst [vmem:[#allocation3 + $0x18] sm:$0xff] %v3106
      %3127 = vst [vmem:[#allocation3 + $0x20] sm:$0xff] %v3108
      %3128 = vst [vmem:[#allocation3 + $0x28] sm:$0xff] %v3110
      %3129 = vst [vmem:[#allocation3 + $0x30] sm:$0xff] %v3112
      %3130 = vst [vmem:[#allocation3 + $0x38] sm:$0xff] %v3114
      %v3131 = vld [vmem:[#allocation2] sm:$0xff]
      %v3132 = vld [vmem:[#allocation2 + $0x8] sm:$0xff]
      %v3133 = vld [vmem:[#allocation2 + $0x10] sm:$0xff]
      %v3134 = vld [vmem:[#allocation2 + $0x18] sm:$0xff]
      %v3135 = vld [vmem:[#allocation2 + $0x20] sm:$0xf]
      %v3136 = vld [vmem:[#allocation2 + $0x28] sm:$0xff]
      %v3137 = vld [vmem:[#allocation2 + $0x30] sm:$0xff]
      %v3138 = vld [vmem:[#allocation2 + $0x38] sm:$0xff]
      %v3139 = vld [vmem:[#allocation2 + $0x40] sm:$0xff]
      %v3140 = vld [vmem:[#allocation2 + $0x48] sm:$0xf]
      %v3141 = vld [vmem:[%s1] sm:$0x11]
      %v3142 = vld [vmem:[%s1 + $0x8] sm:$0x11]
      %v3143 = vld [vmem:[%s1 + $0x10] sm:$0x11]
      %v3144 = vld [vmem:[%s1 + $0x18] sm:$0x11]
      %v3149 = vunpack.c.l.b16 %v3141
      %v3150 = vunpack.c.h.b16 %v3141
      %v3151 = vunpack.c.l.b16 %v3142
      %v3152 = vunpack.c.h.b16 %v3142
      %v3153 = vunpack.c.l.b16 %v3143
      %v3154 = vunpack.c.h.b16 %v3143
      %v3155 = vunpack.c.l.b16 %v3144
      %v3156 = vunpack.c.h.b16 %v3144
      %v3157 = vpack.c.b16 %v3149, %v3149
      %v3158 = vpack.c.b16 %v3150, %v3150
      %v3159 = vpack.c.b16 %v3151, %v3151
      %v3160 = vpack.c.b16 %v3152, %v3152
      %v3161 = vpack.c.b16 %v3153, %v3153
      %v3162 = vpack.c.b16 %v3154, %v3154
      %v3163 = vpack.c.b16 %v3155, %v3155
      %v3164 = vpack.c.b16 %v3156, %v3156
      %v3166 = vshrl.u32 %v3157, 16
      %v3167 = vpack.i.b16 %v3166, %v3166
      %v3169 = vlaneseq
      %v3170 = vshrl.u32 %v3169, 7
      %v3171 = vsub.s32 0, %v3170
      %v3172 = vrot.slane %v3167, %v3171
      %v3174 = vshrl.u32 %v3158, 16
      %v3175 = vpack.i.b16 %v3174, %v3174
      %v3177 = vlaneseq
      %v3178 = vshrl.u32 %v3177, 7
      %v3179 = vsub.s32 0, %v3178
      %v3180 = vrot.slane %v3175, %v3179
      %v3182 = vshrl.u32 %v3159, 16
      %v3183 = vpack.i.b16 %v3182, %v3182
      %v3185 = vlaneseq
      %v3186 = vshrl.u32 %v3185, 7
      %v3187 = vsub.s32 0, %v3186
      %v3188 = vrot.slane %v3183, %v3187
      %v3190 = vshrl.u32 %v3160, 16
      %v3191 = vpack.i.b16 %v3190, %v3190
      %v3193 = vlaneseq
      %v3194 = vshrl.u32 %v3193, 7
      %v3195 = vsub.s32 0, %v3194
      %v3196 = vrot.slane %v3191, %v3195
      %v3198 = vshrl.u32 %v3161, 16
      %v3199 = vpack.i.b16 %v3198, %v3198
      %v3201 = vlaneseq
      %v3202 = vshrl.u32 %v3201, 7
      %v3203 = vsub.s32 0, %v3202
      %v3204 = vrot.slane %v3199, %v3203
      %v3206 = vshrl.u32 %v3162, 16
      %v3207 = vpack.i.b16 %v3206, %v3206
      %v3209 = vlaneseq
      %v3210 = vshrl.u32 %v3209, 7
      %v3211 = vsub.s32 0, %v3210
      %v3212 = vrot.slane %v3207, %v3211
      %v3214 = vshrl.u32 %v3163, 16
      %v3215 = vpack.i.b16 %v3214, %v3214
      %v3217 = vlaneseq
      %v3218 = vshrl.u32 %v3217, 7
      %v3219 = vsub.s32 0, %v3218
      %v3220 = vrot.slane %v3215, %v3219
      %v3222 = vshrl.u32 %v3164, 16
      %v3223 = vpack.i.b16 %v3222, %v3222
      %v3225 = vlaneseq
      %v3226 = vshrl.u32 %v3225, 7
      %v3227 = vsub.s32 0, %v3226
      %v3228 = vrot.slane %v3223, %v3227
      %v3237 = vunpack.c.l.b16 %v3172
      %v3238 = vunpack.c.l.b16 %v3180
      %v3239 = vunpack.c.l.b16 %v3188
      %v3240 = vunpack.c.l.b16 %v3196
      %v3241 = vunpack.c.l.b16 %v3204
      %v3242 = vunpack.c.l.b16 %v3212
      %v3243 = vunpack.c.l.b16 %v3220
      %v3244 = vunpack.c.l.b16 %v3228
      %v3245 = vpack.c.b16 %v3238, %v3237
      %v3246 = vpack.c.b16 %v3240, %v3239
      %v3247 = vpack.c.b16 %v3242, %v3241
      %v3248 = vpack.c.b16 %v3244, %v3243
      %3249 = vrot.lane.b32.xlu0 %v3245, 112
      %v3250 = vpop.permute.xlu0 %3249
      %3251 = vrot.lane.b32.xlu0 %v3246, 112
      %v3252 = vpop.permute.xlu0 %3251
      %3253 = vrot.lane.b32.xlu0 %v3247, 112
      %v3254 = vpop.permute.xlu0 %3253
      %3255 = vrot.lane.b32.xlu0 %v3248, 112
      %v3256 = vpop.permute.xlu0 %3255
      %v3257 = vrot.slane %v3250, 4
      %v3258 = vrot.slane %v3252, 4
      %v3259 = vrot.slane %v3254, 4
      %v3260 = vrot.slane %v3256, 4
      %v3261 = vsel %vm732, %v3257, %v3250
      %v3262 = vsel %vm507, %v3257, %v3258
      %v3263 = vsel %vm732, %v3262, %v3252
      %v3264 = vsel %vm507, %v3258, %v3259
      %v3265 = vsel %vm732, %v3264, %v3254
      %v3266 = vsel %vm507, %v3259, %v3260
      %v3267 = vsel %vm732, %v3266, %v3256
      %v3273 = vmul.bf16 %v3131, %v3261
      %v3274 = vmul.bf16 %v3132, %v3263
      %v3275 = vmul.bf16 %v3133, %v3265
      %v3276 = vmul.bf16 %v3134, %v3267
      %v3277 = vmul.bf16 %v3135, %v3260
      %v3278 = vmul.bf16 %v3136, %v3261
      %v3279 = vmul.bf16 %v3137, %v3263
      %v3280 = vmul.bf16 %v3138, %v3265
      %v3281 = vmul.bf16 %v3139, %v3267
      %v3282 = vmul.bf16 %v3140, %v3260
      %3293 = vrot.lane.b32.xlu0 %v3273, 16
      %v3294 = vpop.permute.xlu0 %3293
      %3295 = vrot.lane.b32.xlu0 %v3274, 16
      %v3296 = vpop.permute.xlu0 %3295
      %3297 = vrot.lane.b32.xlu0 %v3275, 16
      %v3298 = vpop.permute.xlu0 %3297
      %3299 = vrot.lane.b32.xlu0 %v3276, 16
      %v3300 = vpop.permute.xlu0 %3299
      %3301 = vrot.lane.b32.xlu0 %v3277, 16
      %v3302 = vpop.permute.xlu0 %3301
      %3303 = vrot.lane.b32.xlu0 %v3278, 16
      %v3304 = vpop.permute.xlu0 %3303
      %3305 = vrot.lane.b32.xlu0 %v3279, 16
      %v3306 = vpop.permute.xlu0 %3305
      %3307 = vrot.lane.b32.xlu0 %v3280, 16
      %v3308 = vpop.permute.xlu0 %3307
      %3309 = vrot.lane.b32.xlu0 %v3281, 16
      %v3310 = vpop.permute.xlu0 %3309
      %3311 = vrot.lane.b32.xlu0 %v3282, 16
      %v3312 = vpop.permute.xlu0 %3311
      %v3313 = vrot.slane %v3294, 4
      %v3314 = vrot.slane %v3296, 4
      %v3315 = vrot.slane %v3298, 4
      %v3316 = vrot.slane %v3300, 4
      %v3317 = vrot.slane %v3302, 4
      %v3318 = vrot.slane %v3304, 4
      %v3319 = vrot.slane %v3306, 4
      %v3320 = vrot.slane %v3308, 4
      %v3321 = vrot.slane %v3310, 4
      %v3322 = vrot.slane %v3312, 4
      %v3323 = vsel %vm507, %v3313, %v3314
      %v3324 = vsel %vm796, %v3294, %v3323
      %v3325 = vsel %vm507, %v3314, %v3315
      %v3326 = vsel %vm796, %v3296, %v3325
      %v3327 = vsel %vm507, %v3315, %v3316
      %v3328 = vsel %vm796, %v3298, %v3327
      %v3329 = vsel %vm507, %v3316, %v3317
      %v3330 = vsel %vm796, %v3300, %v3329
      %v3331 = vsel %vm507, %v3318, %v3319
      %v3332 = vsel %vm796, %v3304, %v3331
      %v3333 = vsel %vm507, %v3319, %v3320
      %v3334 = vsel %vm796, %v3306, %v3333
      %v3335 = vsel %vm507, %v3320, %v3321
      %v3336 = vsel %vm796, %v3308, %v3335
      %v3337 = vsel %vm507, %v3321, %v3322
      %v3338 = vsel %vm796, %v3310, %v3337
      %3347 = vst [vmem:[#allocation3 + $0x40] sm:$0xff] %v3324
      %3348 = vst [vmem:[#allocation3 + $0x48] sm:$0xff] %v3326
      %3349 = vst [vmem:[#allocation3 + $0x50] sm:$0xff] %v3328
      %3350 = vst [vmem:[#allocation3 + $0x58] sm:$0xff] %v3330
      %3351 = vst [vmem:[#allocation3 + $0x60] sm:$0xff] %v3332
      %3352 = vst [vmem:[#allocation3 + $0x68] sm:$0xff] %v3334
      %3353 = vst [vmem:[#allocation3 + $0x70] sm:$0xff] %v3336
      %3354 = vst [vmem:[#allocation3 + $0x78] sm:$0xff] %v3338
      %v3355 = vld [vmem:[#allocation2] sm:$0xff]
      %v3356 = vld [vmem:[#allocation2 + $0x8] sm:$0xff]
      %v3357 = vld [vmem:[#allocation2 + $0x10] sm:$0xff]
      %v3358 = vld [vmem:[#allocation2 + $0x18] sm:$0xff]
      %v3359 = vld [vmem:[#allocation2 + $0x20] sm:$0xf]
      %v3360 = vld [vmem:[#allocation2 + $0x28] sm:$0xff]
      %v3361 = vld [vmem:[#allocation2 + $0x30] sm:$0xff]
      %v3362 = vld [vmem:[#allocation2 + $0x38] sm:$0xff]
      %v3363 = vld [vmem:[#allocation2 + $0x40] sm:$0xff]
      %v3364 = vld [vmem:[#allocation2 + $0x48] sm:$0xf]
      %v3365 = vld [vmem:[%s1] sm:$0x22]
      %v3366 = vld [vmem:[%s1 + $0x8] sm:$0x22]
      %v3367 = vld [vmem:[%s1 + $0x10] sm:$0x22]
      %v3368 = vld [vmem:[%s1 + $0x18] sm:$0x22]
      %v3373 = vunpack.c.l.b16 %v3365
      %v3374 = vunpack.c.h.b16 %v3365
      %v3375 = vunpack.c.l.b16 %v3366
      %v3376 = vunpack.c.h.b16 %v3366
      %v3377 = vunpack.c.l.b16 %v3367
      %v3378 = vunpack.c.h.b16 %v3367
      %v3379 = vunpack.c.l.b16 %v3368
      %v3380 = vunpack.c.h.b16 %v3368
      %v3381 = vpack.c.b16 %v3373, %v3373
      %v3382 = vpack.c.b16 %v3374, %v3374
      %v3383 = vpack.c.b16 %v3375, %v3375
      %v3384 = vpack.c.b16 %v3376, %v3376
      %v3385 = vpack.c.b16 %v3377, %v3377
      %v3386 = vpack.c.b16 %v3378, %v3378
      %v3387 = vpack.c.b16 %v3379, %v3379
      %v3388 = vpack.c.b16 %v3380, %v3380
      %v3390 = vpack.i.b16 %v3381, %v3381
      %v3392 = vlaneseq
      %v3393 = vshrl.u32 %v3392, 7
      %v3394 = vsub.s32 1, %v3393
      %v3395 = vrot.slane %v3390, %v3394
      %v3397 = vpack.i.b16 %v3382, %v3382
      %v3399 = vlaneseq
      %v3400 = vshrl.u32 %v3399, 7
      %v3401 = vsub.s32 1, %v3400
      %v3402 = vrot.slane %v3397, %v3401
      %v3404 = vpack.i.b16 %v3383, %v3383
      %v3406 = vlaneseq
      %v3407 = vshrl.u32 %v3406, 7
      %v3408 = vsub.s32 1, %v3407
      %v3409 = vrot.slane %v3404, %v3408
      %v3411 = vpack.i.b16 %v3384, %v3384
      %v3413 = vlaneseq
      %v3414 = vshrl.u32 %v3413, 7
      %v3415 = vsub.s32 1, %v3414
      %v3416 = vrot.slane %v3411, %v3415
      %v3418 = vpack.i.b16 %v3385, %v3385
      %v3420 = vlaneseq
      %v3421 = vshrl.u32 %v3420, 7
      %v3422 = vsub.s32 1, %v3421
      %v3423 = vrot.slane %v3418, %v3422
      %v3425 = vpack.i.b16 %v3386, %v3386
      %v3427 = vlaneseq
      %v3428 = vshrl.u32 %v3427, 7
      %v3429 = vsub.s32 1, %v3428
      %v3430 = vrot.slane %v3425, %v3429
      %v3432 = vpack.i.b16 %v3387, %v3387
      %v3434 = vlaneseq
      %v3435 = vshrl.u32 %v3434, 7
      %v3436 = vsub.s32 1, %v3435
      %v3437 = vrot.slane %v3432, %v3436
      %v3439 = vpack.i.b16 %v3388, %v3388
      %v3441 = vlaneseq
      %v3442 = vshrl.u32 %v3441, 7
      %v3443 = vsub.s32 1, %v3442
      %v3444 = vrot.slane %v3439, %v3443
      %v3453 = vunpack.c.l.b16 %v3395
      %v3454 = vunpack.c.l.b16 %v3402
      %v3455 = vunpack.c.l.b16 %v3409
      %v3456 = vunpack.c.l.b16 %v3416
      %v3457 = vunpack.c.l.b16 %v3423
      %v3458 = vunpack.c.l.b16 %v3430
      %v3459 = vunpack.c.l.b16 %v3437
      %v3460 = vunpack.c.l.b16 %v3444
      %v3461 = vpack.c.b16 %v3454, %v3453
      %v3462 = vpack.c.b16 %v3456, %v3455
      %v3463 = vpack.c.b16 %v3458, %v3457
      %v3464 = vpack.c.b16 %v3460, %v3459
      %3465 = vrot.lane.b32.xlu0 %v3461, 113
      %v3466 = vpop.permute.xlu0 %3465
      %3467 = vrot.lane.b32.xlu0 %v3462, 113
      %v3468 = vpop.permute.xlu0 %3467
      %3469 = vrot.lane.b32.xlu0 %v3463, 113
      %v3470 = vpop.permute.xlu0 %3469
      %3471 = vrot.lane.b32.xlu0 %v3464, 113
      %v3472 = vpop.permute.xlu0 %3471
      %v3473 = vrot.slane %v3466, 4
      %v3474 = vrot.slane %v3468, 4
      %v3475 = vrot.slane %v3470, 4
      %v3476 = vrot.slane %v3472, 4
      %v3477 = vsel %vm950, %v3473, %v3466
      %v3478 = vsel %vm507, %v3473, %v3474
      %v3479 = vsel %vm950, %v3478, %v3468
      %v3480 = vsel %vm507, %v3474, %v3475
      %v3481 = vsel %vm950, %v3480, %v3470
      %v3482 = vsel %vm507, %v3475, %v3476
      %v3483 = vsel %vm950, %v3482, %v3472
      %v3489 = vmul.bf16 %v3355, %v3477
      %v3490 = vmul.bf16 %v3356, %v3479
      %v3491 = vmul.bf16 %v3357, %v3481
      %v3492 = vmul.bf16 %v3358, %v3483
      %v3493 = vmul.bf16 %v3359, %v3476
      %v3494 = vmul.bf16 %v3360, %v3477
      %v3495 = vmul.bf16 %v3361, %v3479
      %v3496 = vmul.bf16 %v3362, %v3481
      %v3497 = vmul.bf16 %v3363, %v3483
      %v3498 = vmul.bf16 %v3364, %v3476
      %3509 = vrot.lane.b32.xlu0 %v3489, 15
      %v3510 = vpop.permute.xlu0 %3509
      %3511 = vrot.lane.b32.xlu0 %v3490, 15
      %v3512 = vpop.permute.xlu0 %3511
      %3513 = vrot.lane.b32.xlu0 %v3491, 15
      %v3514 = vpop.permute.xlu0 %3513
      %3515 = vrot.lane.b32.xlu0 %v3492, 15
      %v3516 = vpop.permute.xlu0 %3515
      %3517 = vrot.lane.b32.xlu0 %v3493, 15
      %v3518 = vpop.permute.xlu0 %3517
      %3519 = vrot.lane.b32.xlu0 %v3494, 15
      %v3520 = vpop.permute.xlu0 %3519
      %3521 = vrot.lane.b32.xlu0 %v3495, 15
      %v3522 = vpop.permute.xlu0 %3521
      %3523 = vrot.lane.b32.xlu0 %v3496, 15
      %v3524 = vpop.permute.xlu0 %3523
      %3525 = vrot.lane.b32.xlu0 %v3497, 15
      %v3526 = vpop.permute.xlu0 %3525
      %3527 = vrot.lane.b32.xlu0 %v3498, 15
      %v3528 = vpop.permute.xlu0 %3527
      %v3529 = vrot.slane %v3510, 4
      %v3530 = vrot.slane %v3512, 4
      %v3531 = vrot.slane %v3514, 4
      %v3532 = vrot.slane %v3516, 4
      %v3533 = vrot.slane %v3518, 4
      %v3534 = vrot.slane %v3520, 4
      %v3535 = vrot.slane %v3522, 4
      %v3536 = vrot.slane %v3524, 4
      %v3537 = vrot.slane %v3526, 4
      %v3538 = vrot.slane %v3528, 4
      %v3539 = vsel %vm507, %v3529, %v3530
      %v3540 = vsel %vm1014, %v3510, %v3539
      %v3541 = vsel %vm507, %v3530, %v3531
      %v3542 = vsel %vm1014, %v3512, %v3541
      %v3543 = vsel %vm507, %v3531, %v3532
      %v3544 = vsel %vm1014, %v3514, %v3543
      %v3545 = vsel %vm507, %v3532, %v3533
      %v3546 = vsel %vm1014, %v3516, %v3545
      %v3547 = vsel %vm507, %v3534, %v3535
      %v3548 = vsel %vm1014, %v3520, %v3547
      %v3549 = vsel %vm507, %v3535, %v3536
      %v3550 = vsel %vm1014, %v3522, %v3549
      %v3551 = vsel %vm507, %v3536, %v3537
      %v3552 = vsel %vm1014, %v3524, %v3551
      %v3553 = vsel %vm507, %v3537, %v3538
      %v3554 = vsel %vm1014, %v3526, %v3553
      %3563 = vst [vmem:[#allocation3 + $0x80] sm:$0xff] %v3540
      %3564 = vst [vmem:[#allocation3 + $0x88] sm:$0xff] %v3542
      %3565 = vst [vmem:[#allocation3 + $0x90] sm:$0xff] %v3544
      %3566 = vst [vmem:[#allocation3 + $0x98] sm:$0xff] %v3546
      %3567 = vst [vmem:[#allocation3 + $0xa0] sm:$0xff] %v3548
      %3568 = vst [vmem:[#allocation3 + $0xa8] sm:$0xff] %v3550
      %3569 = vst [vmem:[#allocation3 + $0xb0] sm:$0xff] %v3552
      %3570 = vst [vmem:[#allocation3 + $0xb8] sm:$0xff] %v3554
      %v3571 = vld [vmem:[#allocation2] sm:$0xff]
      %v3572 = vld [vmem:[#allocation2 + $0x8] sm:$0xff]
      %v3573 = vld [vmem:[#allocation2 + $0x10] sm:$0xff]
      %v3574 = vld [vmem:[#allocation2 + $0x18] sm:$0xff]
      %v3575 = vld [vmem:[#allocation2 + $0x20] sm:$0xf]
      %v3576 = vld [vmem:[#allocation2 + $0x28] sm:$0xff]
      %v3577 = vld [vmem:[#allocation2 + $0x30] sm:$0xff]
      %v3578 = vld [vmem:[#allocation2 + $0x38] sm:$0xff]
      %v3579 = vld [vmem:[#allocation2 + $0x40] sm:$0xff]
      %v3580 = vld [vmem:[#allocation2 + $0x48] sm:$0xf]
      %v3581 = vld [vmem:[%s1] sm:$0x22]
      %v3582 = vld [vmem:[%s1 + $0x8] sm:$0x22]
      %v3583 = vld [vmem:[%s1 + $0x10] sm:$0x22]
      %v3584 = vld [vmem:[%s1 + $0x18] sm:$0x22]
      %v3589 = vunpack.c.l.b16 %v3581
      %v3590 = vunpack.c.h.b16 %v3581
      %v3591 = vunpack.c.l.b16 %v3582
      %v3592 = vunpack.c.h.b16 %v3582
      %v3593 = vunpack.c.l.b16 %v3583
      %v3594 = vunpack.c.h.b16 %v3583
      %v3595 = vunpack.c.l.b16 %v3584
      %v3596 = vunpack.c.h.b16 %v3584
      %v3597 = vpack.c.b16 %v3589, %v3589
      %v3598 = vpack.c.b16 %v3590, %v3590
      %v3599 = vpack.c.b16 %v3591, %v3591
      %v3600 = vpack.c.b16 %v3592, %v3592
      %v3601 = vpack.c.b16 %v3593, %v3593
      %v3602 = vpack.c.b16 %v3594, %v3594
      %v3603 = vpack.c.b16 %v3595, %v3595
      %v3604 = vpack.c.b16 %v3596, %v3596
      %v3606 = vshrl.u32 %v3597, 16
      %v3607 = vpack.i.b16 %v3606, %v3606
      %v3609 = vlaneseq
      %v3610 = vshrl.u32 %v3609, 7
      %v3611 = vsub.s32 1, %v3610
      %v3612 = vrot.slane %v3607, %v3611
      %v3614 = vshrl.u32 %v3598, 16
      %v3615 = vpack.i.b16 %v3614, %v3614
      %v3617 = vlaneseq
      %v3618 = vshrl.u32 %v3617, 7
      %v3619 = vsub.s32 1, %v3618
      %v3620 = vrot.slane %v3615, %v3619
      %v3622 = vshrl.u32 %v3599, 16
      %v3623 = vpack.i.b16 %v3622, %v3622
      %v3625 = vlaneseq
      %v3626 = vshrl.u32 %v3625, 7
      %v3627 = vsub.s32 1, %v3626
      %v3628 = vrot.slane %v3623, %v3627
      %v3630 = vshrl.u32 %v3600, 16
      %v3631 = vpack.i.b16 %v3630, %v3630
      %v3633 = vlaneseq
      %v3634 = vshrl.u32 %v3633, 7
      %v3635 = vsub.s32 1, %v3634
      %v3636 = vrot.slane %v3631, %v3635
      %v3638 = vshrl.u32 %v3601, 16
      %v3639 = vpack.i.b16 %v3638, %v3638
      %v3641 = vlaneseq
      %v3642 = vshrl.u32 %v3641, 7
      %v3643 = vsub.s32 1, %v3642
      %v3644 = vrot.slane %v3639, %v3643
      %v3646 = vshrl.u32 %v3602, 16
      %v3647 = vpack.i.b16 %v3646, %v3646
      %v3649 = vlaneseq
      %v3650 = vshrl.u32 %v3649, 7
      %v3651 = vsub.s32 1, %v3650
      %v3652 = vrot.slane %v3647, %v3651
      %v3654 = vshrl.u32 %v3603, 16
      %v3655 = vpack.i.b16 %v3654, %v3654
      %v3657 = vlaneseq
      %v3658 = vshrl.u32 %v3657, 7
      %v3659 = vsub.s32 1, %v3658
      %v3660 = vrot.slane %v3655, %v3659
      %v3662 = vshrl.u32 %v3604, 16
      %v3663 = vpack.i.b16 %v3662, %v3662
      %v3665 = vlaneseq
      %v3666 = vshrl.u32 %v3665, 7
      %v3667 = vsub.s32 1, %v3666
      %v3668 = vrot.slane %v3663, %v3667
      %v3677 = vunpack.c.l.b16 %v3612
      %v3678 = vunpack.c.l.b16 %v3620
      %v3679 = vunpack.c.l.b16 %v3628
      %v3680 = vunpack.c.l.b16 %v3636
      %v3681 = vunpack.c.l.b16 %v3644
      %v3682 = vunpack.c.l.b16 %v3652
      %v3683 = vunpack.c.l.b16 %v3660
      %v3684 = vunpack.c.l.b16 %v3668
      %v3685 = vpack.c.b16 %v3678, %v3677
      %v3686 = vpack.c.b16 %v3680, %v3679
      %v3687 = vpack.c.b16 %v3682, %v3681
      %v3688 = vpack.c.b16 %v3684, %v3683
      %3689 = vrot.lane.b32.xlu0 %v3685, 127
      %v3690 = vpop.permute.xlu0 %3689
      %3691 = vrot.lane.b32.xlu0 %v3686, 127
      %v3692 = vpop.permute.xlu0 %3691
      %3693 = vrot.lane.b32.xlu0 %v3687, 127
      %v3694 = vpop.permute.xlu0 %3693
      %3695 = vrot.lane.b32.xlu0 %v3688, 127
      %v3696 = vpop.permute.xlu0 %3695
      %v3697 = vrot.slane %v3690, 4
      %v3698 = vrot.slane %v3692, 4
      %v3699 = vrot.slane %v3694, 4
      %v3700 = vrot.slane %v3696, 4
      %v3701 = vsel %vm1176, %v3697, %v3690
      %v3702 = vsel %vm507, %v3697, %v3698
      %v3703 = vsel %vm1176, %v3702, %v3692
      %v3704 = vsel %vm507, %v3698, %v3699
      %v3705 = vsel %vm1176, %v3704, %v3694
      %v3706 = vsel %vm507, %v3699, %v3700
      %v3707 = vsel %vm1176, %v3706, %v3696
      %v3713 = vmul.bf16 %v3571, %v3701
      %v3714 = vmul.bf16 %v3572, %v3703
      %v3715 = vmul.bf16 %v3573, %v3705
      %v3716 = vmul.bf16 %v3574, %v3707
      %v3717 = vmul.bf16 %v3575, %v3700
      %v3718 = vmul.bf16 %v3576, %v3701
      %v3719 = vmul.bf16 %v3577, %v3703
      %v3720 = vmul.bf16 %v3578, %v3705
      %v3721 = vmul.bf16 %v3579, %v3707
      %v3722 = vmul.bf16 %v3580, %v3700
      %3733 = vrot.lane.b32.xlu0 %v3713, 1
      %v3734 = vpop.permute.xlu0 %3733
      %3735 = vrot.lane.b32.xlu0 %v3714, 1
      %v3736 = vpop.permute.xlu0 %3735
      %3737 = vrot.lane.b32.xlu0 %v3715, 1
      %v3738 = vpop.permute.xlu0 %3737
      %3739 = vrot.lane.b32.xlu0 %v3716, 1
      %v3740 = vpop.permute.xlu0 %3739
      %3741 = vrot.lane.b32.xlu0 %v3717, 1
      %v3742 = vpop.permute.xlu0 %3741
      %3743 = vrot.lane.b32.xlu0 %v3718, 1
      %v3744 = vpop.permute.xlu0 %3743
      %3745 = vrot.lane.b32.xlu0 %v3719, 1
      %v3746 = vpop.permute.xlu0 %3745
      %3747 = vrot.lane.b32.xlu0 %v3720, 1
      %v3748 = vpop.permute.xlu0 %3747
      %3749 = vrot.lane.b32.xlu0 %v3721, 1
      %v3750 = vpop.permute.xlu0 %3749
      %3751 = vrot.lane.b32.xlu0 %v3722, 1
      %v3752 = vpop.permute.xlu0 %3751
      %v3753 = vrot.slane %v3734, 4
      %v3754 = vrot.slane %v3736, 4
      %v3755 = vrot.slane %v3738, 4
      %v3756 = vrot.slane %v3740, 4
      %v3757 = vrot.slane %v3742, 4
      %v3758 = vrot.slane %v3744, 4
      %v3759 = vrot.slane %v3746, 4
      %v3760 = vrot.slane %v3748, 4
      %v3761 = vrot.slane %v3750, 4
      %v3762 = vrot.slane %v3752, 4
      %v3763 = vsel %vm507, %v3753, %v3754
      %v3764 = vsel %vm1240, %v3734, %v3763
      %v3765 = vsel %vm507, %v3754, %v3755
      %v3766 = vsel %vm1240, %v3736, %v3765
      %v3767 = vsel %vm507, %v3755, %v3756
      %v3768 = vsel %vm1240, %v3738, %v3767
      %v3769 = vsel %vm507, %v3756, %v3757
      %v3770 = vsel %vm1240, %v3740, %v3769
      %v3771 = vsel %vm507, %v3758, %v3759
      %v3772 = vsel %vm1240, %v3744, %v3771
      %v3773 = vsel %vm507, %v3759, %v3760
      %v3774 = vsel %vm1240, %v3746, %v3773
      %v3775 = vsel %vm507, %v3760, %v3761
      %v3776 = vsel %vm1240, %v3748, %v3775
      %v3777 = vsel %vm507, %v3761, %v3762
      %v3778 = vsel %vm1240, %v3750, %v3777
      %3787 = vst [vmem:[#allocation3 + $0xc0] sm:$0xff] %v3764
      %3788 = vst [vmem:[#allocation3 + $0xc8] sm:$0xff] %v3766
      %3789 = vst [vmem:[#allocation3 + $0xd0] sm:$0xff] %v3768
      %3790 = vst [vmem:[#allocation3 + $0xd8] sm:$0xff] %v3770
      %3791 = vst [vmem:[#allocation3 + $0xe0] sm:$0xff] %v3772
      %3792 = vst [vmem:[#allocation3 + $0xe8] sm:$0xff] %v3774
      %3793 = vst [vmem:[#allocation3 + $0xf0] sm:$0xff] %v3776
      %3794 = vst [vmem:[#allocation3 + $0xf8] sm:$0xff] %v3778
      %v3795 = vld [vmem:[#allocation2 + $0x4] sm:$0xff]
      %v3796 = vld [vmem:[#allocation2 + $0xc] sm:$0xff]
      %v3797 = vld [vmem:[#allocation2 + $0x14] sm:$0xff]
      %v3798 = vld [vmem:[#allocation2 + $0x1c] sm:$0xff]
      %v3799 = vld [vmem:[#allocation2 + $0x2c] sm:$0xff]
      %v3800 = vld [vmem:[#allocation2 + $0x34] sm:$0xff]
      %v3801 = vld [vmem:[#allocation2 + $0x3c] sm:$0xff]
      %v3802 = vld [vmem:[#allocation2 + $0x44] sm:$0xff]
      %3803 = vst [vmem:[#allocation3 + $0x100] sm:$0xff] %v3795
      %3804 = vst [vmem:[#allocation3 + $0x108] sm:$0xff] %v3796
      %3805 = vst [vmem:[#allocation3 + $0x110] sm:$0xff] %v3797
      %3806 = vst [vmem:[#allocation3 + $0x118] sm:$0xff] %v3798
      %3807 = vst [vmem:[#allocation3 + $0x120] sm:$0xff] %v3799
      %3808 = vst [vmem:[#allocation3 + $0x128] sm:$0xff] %v3800
      %3809 = vst [vmem:[#allocation3 + $0x130] sm:$0xff] %v3801
      %3810 = vst [vmem:[#allocation3 + $0x138] sm:$0xff] %v3802
      %v3811 = vld [vmem:[#allocation2 + $0x4] sm:$0xff]
      %v3812 = vld [vmem:[#allocation2 + $0xc] sm:$0xff]
      %v3813 = vld [vmem:[#allocation2 + $0x14] sm:$0xff]
      %v3814 = vld [vmem:[#allocation2 + $0x1c] sm:$0xff]
      %v3815 = vld [vmem:[#allocation2 + $0x24] sm:$0xf]
      %v3816 = vld [vmem:[#allocation2 + $0x2c] sm:$0xff]
      %v3817 = vld [vmem:[#allocation2 + $0x34] sm:$0xff]
      %v3818 = vld [vmem:[#allocation2 + $0x3c] sm:$0xff]
      %v3819 = vld [vmem:[#allocation2 + $0x44] sm:$0xff]
      %v3820 = vld [vmem:[#allocation2 + $0x4c] sm:$0xf]
      %v3821 = vld [vmem:[%s1] sm:$0x44]
      %v3822 = vld [vmem:[%s1 + $0x8] sm:$0x44]
      %v3823 = vld [vmem:[%s1 + $0x10] sm:$0x44]
      %v3824 = vld [vmem:[%s1 + $0x18] sm:$0x44]
      %v3829 = vunpack.c.l.b16 %v3821
      %v3830 = vunpack.c.h.b16 %v3821
      %v3831 = vunpack.c.l.b16 %v3822
      %v3832 = vunpack.c.h.b16 %v3822
      %v3833 = vunpack.c.l.b16 %v3823
      %v3834 = vunpack.c.h.b16 %v3823
      %v3835 = vunpack.c.l.b16 %v3824
      %v3836 = vunpack.c.h.b16 %v3824
      %v3837 = vpack.c.b16 %v3829, %v3829
      %v3838 = vpack.c.b16 %v3830, %v3830
      %v3839 = vpack.c.b16 %v3831, %v3831
      %v3840 = vpack.c.b16 %v3832, %v3832
      %v3841 = vpack.c.b16 %v3833, %v3833
      %v3842 = vpack.c.b16 %v3834, %v3834
      %v3843 = vpack.c.b16 %v3835, %v3835
      %v3844 = vpack.c.b16 %v3836, %v3836
      %v3846 = vshrl.u32 %v3837, 16
      %v3847 = vpack.i.b16 %v3846, %v3846
      %v3849 = vlaneseq
      %v3850 = vshrl.u32 %v3849, 7
      %v3851 = vsub.s32 2, %v3850
      %v3852 = vrot.slane %v3847, %v3851
      %v3854 = vshrl.u32 %v3838, 16
      %v3855 = vpack.i.b16 %v3854, %v3854
      %v3857 = vlaneseq
      %v3858 = vshrl.u32 %v3857, 7
      %v3859 = vsub.s32 2, %v3858
      %v3860 = vrot.slane %v3855, %v3859
      %v3862 = vshrl.u32 %v3839, 16
      %v3863 = vpack.i.b16 %v3862, %v3862
      %v3865 = vlaneseq
      %v3866 = vshrl.u32 %v3865, 7
      %v3867 = vsub.s32 2, %v3866
      %v3868 = vrot.slane %v3863, %v3867
      %v3870 = vshrl.u32 %v3840, 16
      %v3871 = vpack.i.b16 %v3870, %v3870
      %v3873 = vlaneseq
      %v3874 = vshrl.u32 %v3873, 7
      %v3875 = vsub.s32 2, %v3874
      %v3876 = vrot.slane %v3871, %v3875
      %v3878 = vshrl.u32 %v3841, 16
      %v3879 = vpack.i.b16 %v3878, %v3878
      %v3881 = vlaneseq
      %v3882 = vshrl.u32 %v3881, 7
      %v3883 = vsub.s32 2, %v3882
      %v3884 = vrot.slane %v3879, %v3883
      %v3886 = vshrl.u32 %v3842, 16
      %v3887 = vpack.i.b16 %v3886, %v3886
      %v3889 = vlaneseq
      %v3890 = vshrl.u32 %v3889, 7
      %v3891 = vsub.s32 2, %v3890
      %v3892 = vrot.slane %v3887, %v3891
      %v3894 = vshrl.u32 %v3843, 16
      %v3895 = vpack.i.b16 %v3894, %v3894
      %v3897 = vlaneseq
      %v3898 = vshrl.u32 %v3897, 7
      %v3899 = vsub.s32 2, %v3898
      %v3900 = vrot.slane %v3895, %v3899
      %v3902 = vshrl.u32 %v3844, 16
      %v3903 = vpack.i.b16 %v3902, %v3902
      %v3905 = vlaneseq
      %v3906 = vshrl.u32 %v3905, 7
      %v3907 = vsub.s32 2, %v3906
      %v3908 = vrot.slane %v3903, %v3907
      %v3917 = vunpack.c.l.b16 %v3852
      %v3918 = vunpack.c.l.b16 %v3860
      %v3919 = vunpack.c.l.b16 %v3868
      %v3920 = vunpack.c.l.b16 %v3876
      %v3921 = vunpack.c.l.b16 %v3884
      %v3922 = vunpack.c.l.b16 %v3892
      %v3923 = vunpack.c.l.b16 %v3900
      %v3924 = vunpack.c.l.b16 %v3908
      %v3925 = vpack.c.b16 %v3918, %v3917
      %v3926 = vpack.c.b16 %v3920, %v3919
      %v3927 = vpack.c.b16 %v3922, %v3921
      %v3928 = vpack.c.b16 %v3924, %v3923
      %3929 = vrot.lane.b32.xlu0 %v3925, 1
      %v3930 = vpop.permute.xlu0 %3929
      %3931 = vrot.lane.b32.xlu0 %v3926, 1
      %v3932 = vpop.permute.xlu0 %3931
      %3933 = vrot.lane.b32.xlu0 %v3927, 1
      %v3934 = vpop.permute.xlu0 %3933
      %3935 = vrot.lane.b32.xlu0 %v3928, 1
      %v3936 = vpop.permute.xlu0 %3935
      %v3937 = vrot.slane %v3930, 4
      %v3938 = vrot.slane %v3932, 4
      %v3939 = vrot.slane %v3934, 4
      %v3940 = vrot.slane %v3936, 4
      %v3941 = vsel %vm1240, %v3937, %v3930
      %v3942 = vsel %vm507, %v3937, %v3938
      %v3943 = vsel %vm1240, %v3942, %v3932
      %v3944 = vsel %vm507, %v3938, %v3939
      %v3945 = vsel %vm1240, %v3944, %v3934
      %v3946 = vsel %vm507, %v3939, %v3940
      %v3947 = vsel %vm1240, %v3946, %v3936
      %v3953 = vmul.bf16 %v3811, %v3941
      %v3954 = vmul.bf16 %v3812, %v3943
      %v3955 = vmul.bf16 %v3813, %v3945
      %v3956 = vmul.bf16 %v3814, %v3947
      %v3957 = vmul.bf16 %v3815, %v3940
      %v3958 = vmul.bf16 %v3816, %v3941
      %v3959 = vmul.bf16 %v3817, %v3943
      %v3960 = vmul.bf16 %v3818, %v3945
      %v3961 = vmul.bf16 %v3819, %v3947
      %v3962 = vmul.bf16 %v3820, %v3940
      %3973 = vrot.lane.b32.xlu0 %v3953, 127
      %v3974 = vpop.permute.xlu0 %3973
      %3975 = vrot.lane.b32.xlu0 %v3954, 127
      %v3976 = vpop.permute.xlu0 %3975
      %3977 = vrot.lane.b32.xlu0 %v3955, 127
      %v3978 = vpop.permute.xlu0 %3977
      %3979 = vrot.lane.b32.xlu0 %v3956, 127
      %v3980 = vpop.permute.xlu0 %3979
      %3981 = vrot.lane.b32.xlu0 %v3957, 127
      %v3982 = vpop.permute.xlu0 %3981
      %3983 = vrot.lane.b32.xlu0 %v3958, 127
      %v3984 = vpop.permute.xlu0 %3983
      %3985 = vrot.lane.b32.xlu0 %v3959, 127
      %v3986 = vpop.permute.xlu0 %3985
      %3987 = vrot.lane.b32.xlu0 %v3960, 127
      %v3988 = vpop.permute.xlu0 %3987
      %3989 = vrot.lane.b32.xlu0 %v3961, 127
      %v3990 = vpop.permute.xlu0 %3989
      %3991 = vrot.lane.b32.xlu0 %v3962, 127
      %v3992 = vpop.permute.xlu0 %3991
      %v3993 = vrot.slane %v3974, 4
      %v3994 = vrot.slane %v3976, 4
      %v3995 = vrot.slane %v3978, 4
      %v3996 = vrot.slane %v3980, 4
      %v3997 = vrot.slane %v3982, 4
      %v3998 = vrot.slane %v3984, 4
      %v3999 = vrot.slane %v3986, 4
      %v4000 = vrot.slane %v3988, 4
      %v4001 = vrot.slane %v3990, 4
      %v4002 = vrot.slane %v3992, 4
      %v4003 = vsel %vm507, %v3993, %v3994
      %v4004 = vsel %vm1176, %v3974, %v4003
      %v4005 = vsel %vm507, %v3994, %v3995
      %v4006 = vsel %vm1176, %v3976, %v4005
      %v4007 = vsel %vm507, %v3995, %v3996
      %v4008 = vsel %vm1176, %v3978, %v4007
      %v4009 = vsel %vm507, %v3996, %v3997
      %v4010 = vsel %vm1176, %v3980, %v4009
      %v4011 = vsel %vm507, %v3998, %v3999
      %v4012 = vsel %vm1176, %v3984, %v4011
      %v4013 = vsel %vm507, %v3999, %v4000
      %v4014 = vsel %vm1176, %v3986, %v4013
      %v4015 = vsel %vm507, %v4000, %v4001
      %v4016 = vsel %vm1176, %v3988, %v4015
      %v4017 = vsel %vm507, %v4001, %v4002
      %v4018 = vsel %vm1176, %v3990, %v4017
      %4027 = vst [vmem:[#allocation3 + $0x140] sm:$0xff] %v4004
      %4028 = vst [vmem:[#allocation3 + $0x148] sm:$0xff] %v4006
      %4029 = vst [vmem:[#allocation3 + $0x150] sm:$0xff] %v4008
      %4030 = vst [vmem:[#allocation3 + $0x158] sm:$0xff] %v4010
      %4031 = vst [vmem:[#allocation3 + $0x160] sm:$0xff] %v4012
      %4032 = vst [vmem:[#allocation3 + $0x168] sm:$0xff] %v4014
      %4033 = vst [vmem:[#allocation3 + $0x170] sm:$0xff] %v4016
      %4034 = vst [vmem:[#allocation3 + $0x178] sm:$0xff] %v4018
      %v4035 = vld [vmem:[#allocation2 + $0x4] sm:$0xff]
      %v4036 = vld [vmem:[#allocation2 + $0xc] sm:$0xff]
      %v4037 = vld [vmem:[#allocation2 + $0x14] sm:$0xff]
      %v4038 = vld [vmem:[#allocation2 + $0x1c] sm:$0xff]
      %v4039 = vld [vmem:[#allocation2 + $0x24] sm:$0xf]
      %v4040 = vld [vmem:[#allocation2 + $0x2c] sm:$0xff]
      %v4041 = vld [vmem:[#allocation2 + $0x34] sm:$0xff]
      %v4042 = vld [vmem:[#allocation2 + $0x3c] sm:$0xff]
      %v4043 = vld [vmem:[#allocation2 + $0x44] sm:$0xff]
      %v4044 = vld [vmem:[#allocation2 + $0x4c] sm:$0xf]
      %v4045 = vld [vmem:[%s1] sm:$0x88]
      %v4046 = vld [vmem:[%s1 + $0x8] sm:$0x88]
      %v4047 = vld [vmem:[%s1 + $0x10] sm:$0x88]
      %v4048 = vld [vmem:[%s1 + $0x18] sm:$0x88]
      %v4053 = vunpack.c.l.b16 %v4045
      %v4054 = vunpack.c.h.b16 %v4045
      %v4055 = vunpack.c.l.b16 %v4046
      %v4056 = vunpack.c.h.b16 %v4046
      %v4057 = vunpack.c.l.b16 %v4047
      %v4058 = vunpack.c.h.b16 %v4047
      %v4059 = vunpack.c.l.b16 %v4048
      %v4060 = vunpack.c.h.b16 %v4048
      %v4061 = vpack.c.b16 %v4053, %v4053
      %v4062 = vpack.c.b16 %v4054, %v4054
      %v4063 = vpack.c.b16 %v4055, %v4055
      %v4064 = vpack.c.b16 %v4056, %v4056
      %v4065 = vpack.c.b16 %v4057, %v4057
      %v4066 = vpack.c.b16 %v4058, %v4058
      %v4067 = vpack.c.b16 %v4059, %v4059
      %v4068 = vpack.c.b16 %v4060, %v4060
      %v4070 = vpack.i.b16 %v4061, %v4061
      %v4072 = vlaneseq
      %v4073 = vshrl.u32 %v4072, 7
      %v4074 = vsub.s32 3, %v4073
      %v4075 = vrot.slane %v4070, %v4074
      %v4077 = vpack.i.b16 %v4062, %v4062
      %v4079 = vlaneseq
      %v4080 = vshrl.u32 %v4079, 7
      %v4081 = vsub.s32 3, %v4080
      %v4082 = vrot.slane %v4077, %v4081
      %v4084 = vpack.i.b16 %v4063, %v4063
      %v4086 = vlaneseq
      %v4087 = vshrl.u32 %v4086, 7
      %v4088 = vsub.s32 3, %v4087
      %v4089 = vrot.slane %v4084, %v4088
      %v4091 = vpack.i.b16 %v4064, %v4064
      %v4093 = vlaneseq
      %v4094 = vshrl.u32 %v4093, 7
      %v4095 = vsub.s32 3, %v4094
      %v4096 = vrot.slane %v4091, %v4095
      %v4098 = vpack.i.b16 %v4065, %v4065
      %v4100 = vlaneseq
      %v4101 = vshrl.u32 %v4100, 7
      %v4102 = vsub.s32 3, %v4101
      %v4103 = vrot.slane %v4098, %v4102
      %v4105 = vpack.i.b16 %v4066, %v4066
      %v4107 = vlaneseq
      %v4108 = vshrl.u32 %v4107, 7
      %v4109 = vsub.s32 3, %v4108
      %v4110 = vrot.slane %v4105, %v4109
      %v4112 = vpack.i.b16 %v4067, %v4067
      %v4114 = vlaneseq
      %v4115 = vshrl.u32 %v4114, 7
      %v4116 = vsub.s32 3, %v4115
      %v4117 = vrot.slane %v4112, %v4116
      %v4119 = vpack.i.b16 %v4068, %v4068
      %v4121 = vlaneseq
      %v4122 = vshrl.u32 %v4121, 7
      %v4123 = vsub.s32 3, %v4122
      %v4124 = vrot.slane %v4119, %v4123
      %v4133 = vunpack.c.l.b16 %v4075
      %v4134 = vunpack.c.l.b16 %v4082
      %v4135 = vunpack.c.l.b16 %v4089
      %v4136 = vunpack.c.l.b16 %v4096
      %v4137 = vunpack.c.l.b16 %v4103
      %v4138 = vunpack.c.l.b16 %v4110
      %v4139 = vunpack.c.l.b16 %v4117
      %v4140 = vunpack.c.l.b16 %v4124
      %v4141 = vpack.c.b16 %v4134, %v4133
      %v4142 = vpack.c.b16 %v4136, %v4135
      %v4143 = vpack.c.b16 %v4138, %v4137
      %v4144 = vpack.c.b16 %v4140, %v4139
      %4145 = vrot.lane.b32.xlu0 %v4141, 15
      %v4146 = vpop.permute.xlu0 %4145
      %4147 = vrot.lane.b32.xlu0 %v4142, 15
      %v4148 = vpop.permute.xlu0 %4147
      %4149 = vrot.lane.b32.xlu0 %v4143, 15
      %v4150 = vpop.permute.xlu0 %4149
      %4151 = vrot.lane.b32.xlu0 %v4144, 15
      %v4152 = vpop.permute.xlu0 %4151
      %v4153 = vrot.slane %v4146, 4
      %v4154 = vrot.slane %v4148, 4
      %v4155 = vrot.slane %v4150, 4
      %v4156 = vrot.slane %v4152, 4
      %v4157 = vsel %vm1014, %v4153, %v4146
      %v4158 = vsel %vm507, %v4153, %v4154
      %v4159 = vsel %vm1014, %v4158, %v4148
      %v4160 = vsel %vm507, %v4154, %v4155
      %v4161 = vsel %vm1014, %v4160, %v4150
      %v4162 = vsel %vm507, %v4155, %v4156
      %v4163 = vsel %vm1014, %v4162, %v4152
      %v4169 = vmul.bf16 %v4035, %v4157
      %v4170 = vmul.bf16 %v4036, %v4159
      %v4171 = vmul.bf16 %v4037, %v4161
      %v4172 = vmul.bf16 %v4038, %v4163
      %v4173 = vmul.bf16 %v4039, %v4156
      %v4174 = vmul.bf16 %v4040, %v4157
      %v4175 = vmul.bf16 %v4041, %v4159
      %v4176 = vmul.bf16 %v4042, %v4161
      %v4177 = vmul.bf16 %v4043, %v4163
      %v4178 = vmul.bf16 %v4044, %v4156
      %4189 = vrot.lane.b32.xlu0 %v4169, 113
      %v4190 = vpop.permute.xlu0 %4189
      %4191 = vrot.lane.b32.xlu0 %v4170, 113
      %v4192 = vpop.permute.xlu0 %4191
      %4193 = vrot.lane.b32.xlu0 %v4171, 113
      %v4194 = vpop.permute.xlu0 %4193
      %4195 = vrot.lane.b32.xlu0 %v4172, 113
      %v4196 = vpop.permute.xlu0 %4195
      %4197 = vrot.lane.b32.xlu0 %v4173, 113
      %v4198 = vpop.permute.xlu0 %4197
      %4199 = vrot.lane.b32.xlu0 %v4174, 113
      %v4200 = vpop.permute.xlu0 %4199
      %4201 = vrot.lane.b32.xlu0 %v4175, 113
      %v4202 = vpop.permute.xlu0 %4201
      %4203 = vrot.lane.b32.xlu0 %v4176, 113
      %v4204 = vpop.permute.xlu0 %4203
      %4205 = vrot.lane.b32.xlu0 %v4177, 113
      %v4206 = vpop.permute.xlu0 %4205
      %4207 = vrot.lane.b32.xlu0 %v4178, 113
      %v4208 = vpop.permute.xlu0 %4207
      %v4209 = vrot.slane %v4190, 4
      %v4210 = vrot.slane %v4192, 4
      %v4211 = vrot.slane %v4194, 4
      %v4212 = vrot.slane %v4196, 4
      %v4213 = vrot.slane %v4198, 4
      %v4214 = vrot.slane %v4200, 4
      %v4215 = vrot.slane %v4202, 4
      %v4216 = vrot.slane %v4204, 4
      %v4217 = vrot.slane %v4206, 4
      %v4218 = vrot.slane %v4208, 4
      %v4219 = vsel %vm507, %v4209, %v4210
      %v4220 = vsel %vm950, %v4190, %v4219
      %v4221 = vsel %vm507, %v4210, %v4211
      %v4222 = vsel %vm950, %v4192, %v4221
      %v4223 = vsel %vm507, %v4211, %v4212
      %v4224 = vsel %vm950, %v4194, %v4223
      %v4225 = vsel %vm507, %v4212, %v4213
      %v4226 = vsel %vm950, %v4196, %v4225
      %v4227 = vsel %vm507, %v4214, %v4215
      %v4228 = vsel %vm950, %v4200, %v4227
      %v4229 = vsel %vm507, %v4215, %v4216
      %v4230 = vsel %vm950, %v4202, %v4229
      %v4231 = vsel %vm507, %v4216, %v4217
      %v4232 = vsel %vm950, %v4204, %v4231
      %v4233 = vsel %vm507, %v4217, %v4218
      %v4234 = vsel %vm950, %v4206, %v4233
      %4243 = vst [vmem:[#allocation3 + $0x180] sm:$0xff] %v4220
      %4244 = vst [vmem:[#allocation3 + $0x188] sm:$0xff] %v4222
      %4245 = vst [vmem:[#allocation3 + $0x190] sm:$0xff] %v4224
      %4246 = vst [vmem:[#allocation3 + $0x198] sm:$0xff] %v4226
      %4247 = vst [vmem:[#allocation3 + $0x1a0] sm:$0xff] %v4228
      %4248 = vst [vmem:[#allocation3 + $0x1a8] sm:$0xff] %v4230
      %4249 = vst [vmem:[#allocation3 + $0x1b0] sm:$0xff] %v4232
      %4250 = vst [vmem:[#allocation3 + $0x1b8] sm:$0xff] %v4234
      %v4251 = vld [vmem:[#allocation2 + $0x4] sm:$0xff]
      %v4252 = vld [vmem:[#allocation2 + $0xc] sm:$0xff]
      %v4253 = vld [vmem:[#allocation2 + $0x14] sm:$0xff]
      %v4254 = vld [vmem:[#allocation2 + $0x1c] sm:$0xff]
      %v4255 = vld [vmem:[#allocation2 + $0x24] sm:$0xf]
      %v4256 = vld [vmem:[#allocation2 + $0x2c] sm:$0xff]
      %v4257 = vld [vmem:[#allocation2 + $0x34] sm:$0xff]
      %v4258 = vld [vmem:[#allocation2 + $0x3c] sm:$0xff]
      %v4259 = vld [vmem:[#allocation2 + $0x44] sm:$0xff]
      %v4260 = vld [vmem:[#allocation2 + $0x4c] sm:$0xf]
      %v4261 = vld [vmem:[%s1] sm:$0x88]
      %v4262 = vld [vmem:[%s1 + $0x8] sm:$0x88]
      %v4263 = vld [vmem:[%s1 + $0x10] sm:$0x88]
      %v4264 = vld [vmem:[%s1 + $0x18] sm:$0x88]
      %v4269 = vunpack.c.l.b16 %v4261
      %v4270 = vunpack.c.h.b16 %v4261
      %v4271 = vunpack.c.l.b16 %v4262
      %v4272 = vunpack.c.h.b16 %v4262
      %v4273 = vunpack.c.l.b16 %v4263
      %v4274 = vunpack.c.h.b16 %v4263
      %v4275 = vunpack.c.l.b16 %v4264
      %v4276 = vunpack.c.h.b16 %v4264
      %v4277 = vpack.c.b16 %v4269, %v4269
      %v4278 = vpack.c.b16 %v4270, %v4270
      %v4279 = vpack.c.b16 %v4271, %v4271
      %v4280 = vpack.c.b16 %v4272, %v4272
      %v4281 = vpack.c.b16 %v4273, %v4273
      %v4282 = vpack.c.b16 %v4274, %v4274
      %v4283 = vpack.c.b16 %v4275, %v4275
      %v4284 = vpack.c.b16 %v4276, %v4276
      %v4286 = vshrl.u32 %v4277, 16
      %v4287 = vpack.i.b16 %v4286, %v4286
      %v4289 = vlaneseq
      %v4290 = vshrl.u32 %v4289, 7
      %v4291 = vsub.s32 3, %v4290
      %v4292 = vrot.slane %v4287, %v4291
      %v4294 = vshrl.u32 %v4278, 16
      %v4295 = vpack.i.b16 %v4294, %v4294
      %v4297 = vlaneseq
      %v4298 = vshrl.u32 %v4297, 7
      %v4299 = vsub.s32 3, %v4298
      %v4300 = vrot.slane %v4295, %v4299
      %v4302 = vshrl.u32 %v4279, 16
      %v4303 = vpack.i.b16 %v4302, %v4302
      %v4305 = vlaneseq
      %v4306 = vshrl.u32 %v4305, 7
      %v4307 = vsub.s32 3, %v4306
      %v4308 = vrot.slane %v4303, %v4307
      %v4310 = vshrl.u32 %v4280, 16
      %v4311 = vpack.i.b16 %v4310, %v4310
      %v4313 = vlaneseq
      %v4314 = vshrl.u32 %v4313, 7
      %v4315 = vsub.s32 3, %v4314
      %v4316 = vrot.slane %v4311, %v4315
      %v4318 = vshrl.u32 %v4281, 16
      %v4319 = vpack.i.b16 %v4318, %v4318
      %v4321 = vlaneseq
      %v4322 = vshrl.u32 %v4321, 7
      %v4323 = vsub.s32 3, %v4322
      %v4324 = vrot.slane %v4319, %v4323
      %v4326 = vshrl.u32 %v4282, 16
      %v4327 = vpack.i.b16 %v4326, %v4326
      %v4329 = vlaneseq
      %v4330 = vshrl.u32 %v4329, 7
      %v4331 = vsub.s32 3, %v4330
      %v4332 = vrot.slane %v4327, %v4331
      %v4334 = vshrl.u32 %v4283, 16
      %v4335 = vpack.i.b16 %v4334, %v4334
      %v4337 = vlaneseq
      %v4338 = vshrl.u32 %v4337, 7
      %v4339 = vsub.s32 3, %v4338
      %v4340 = vrot.slane %v4335, %v4339
      %v4342 = vshrl.u32 %v4284, 16
      %v4343 = vpack.i.b16 %v4342, %v4342
      %v4345 = vlaneseq
      %v4346 = vshrl.u32 %v4345, 7
      %v4347 = vsub.s32 3, %v4346
      %v4348 = vrot.slane %v4343, %v4347
      %v4357 = vunpack.c.l.b16 %v4292
      %v4358 = vunpack.c.l.b16 %v4300
      %v4359 = vunpack.c.l.b16 %v4308
      %v4360 = vunpack.c.l.b16 %v4316
      %v4361 = vunpack.c.l.b16 %v4324
      %v4362 = vunpack.c.l.b16 %v4332
      %v4363 = vunpack.c.l.b16 %v4340
      %v4364 = vunpack.c.l.b16 %v4348
      %v4365 = vpack.c.b16 %v4358, %v4357
      %v4366 = vpack.c.b16 %v4360, %v4359
      %v4367 = vpack.c.b16 %v4362, %v4361
      %v4368 = vpack.c.b16 %v4364, %v4363
      %4369 = vrot.lane.b32.xlu0 %v4365, 16
      %v4370 = vpop.permute.xlu0 %4369
      %4371 = vrot.lane.b32.xlu0 %v4366, 16
      %v4372 = vpop.permute.xlu0 %4371
      %4373 = vrot.lane.b32.xlu0 %v4367, 16
      %v4374 = vpop.permute.xlu0 %4373
      %4375 = vrot.lane.b32.xlu0 %v4368, 16
      %v4376 = vpop.permute.xlu0 %4375
      %v4377 = vrot.slane %v4370, 4
      %v4378 = vrot.slane %v4372, 4
      %v4379 = vrot.slane %v4374, 4
      %v4380 = vrot.slane %v4376, 4
      %v4381 = vsel %vm796, %v4377, %v4370
      %v4382 = vsel %vm507, %v4377, %v4378
      %v4383 = vsel %vm796, %v4382, %v4372
      %v4384 = vsel %vm507, %v4378, %v4379
      %v4385 = vsel %vm796, %v4384, %v4374
      %v4386 = vsel %vm507, %v4379, %v4380
      %v4387 = vsel %vm796, %v4386, %v4376
      %v4393 = vmul.bf16 %v4251, %v4381
      %v4394 = vmul.bf16 %v4252, %v4383
      %v4395 = vmul.bf16 %v4253, %v4385
      %v4396 = vmul.bf16 %v4254, %v4387
      %v4397 = vmul.bf16 %v4255, %v4380
      %v4398 = vmul.bf16 %v4256, %v4381
      %v4399 = vmul.bf16 %v4257, %v4383
      %v4400 = vmul.bf16 %v4258, %v4385
      %v4401 = vmul.bf16 %v4259, %v4387
      %v4402 = vmul.bf16 %v4260, %v4380
      %4413 = vrot.lane.b32.xlu0 %v4393, 112
      %v4414 = vpop.permute.xlu0 %4413
      %4415 = vrot.lane.b32.xlu0 %v4394, 112
      %v4416 = vpop.permute.xlu0 %4415
      %4417 = vrot.lane.b32.xlu0 %v4395, 112
      %v4418 = vpop.permute.xlu0 %4417
      %4419 = vrot.lane.b32.xlu0 %v4396, 112
      %v4420 = vpop.permute.xlu0 %4419
      %4421 = vrot.lane.b32.xlu0 %v4397, 112
      %v4422 = vpop.permute.xlu0 %4421
      %4423 = vrot.lane.b32.xlu0 %v4398, 112
      %v4424 = vpop.permute.xlu0 %4423
      %4425 = vrot.lane.b32.xlu0 %v4399, 112
      %v4426 = vpop.permute.xlu0 %4425
      %4427 = vrot.lane.b32.xlu0 %v4400, 112
      %v4428 = vpop.permute.xlu0 %4427
      %4429 = vrot.lane.b32.xlu0 %v4401, 112
      %v4430 = vpop.permute.xlu0 %4429
      %4431 = vrot.lane.b32.xlu0 %v4402, 112
      %v4432 = vpop.permute.xlu0 %4431
      %v4433 = vrot.slane %v4414, 4
      %v4434 = vrot.slane %v4416, 4
      %v4435 = vrot.slane %v4418, 4
      %v4436 = vrot.slane %v4420, 4
      %v4437 = vrot.slane %v4422, 4
      %v4438 = vrot.slane %v4424, 4
      %v4439 = vrot.slane %v4426, 4
      %v4440 = vrot.slane %v4428, 4
      %v4441 = vrot.slane %v4430, 4
      %v4442 = vrot.slane %v4432, 4
      %v4443 = vsel %vm507, %v4433, %v4434
      %v4444 = vsel %vm732, %v4414, %v4443
      %v4445 = vsel %vm507, %v4434, %v4435
      %v4446 = vsel %vm732, %v4416, %v4445
      %v4447 = vsel %vm507, %v4435, %v4436
      %v4448 = vsel %vm732, %v4418, %v4447
      %v4449 = vsel %vm507, %v4436, %v4437
      %v4450 = vsel %vm732, %v4420, %v4449
      %v4451 = vsel %vm507, %v4438, %v4439
      %v4452 = vsel %vm732, %v4424, %v4451
      %v4453 = vsel %vm507, %v4439, %v4440
      %v4454 = vsel %vm732, %v4426, %v4453
      %v4455 = vsel %vm507, %v4440, %v4441
      %v4456 = vsel %vm732, %v4428, %v4455
      %v4457 = vsel %vm507, %v4441, %v4442
      %v4458 = vsel %vm732, %v4430, %v4457
      %4467 = vst [vmem:[#allocation3 + $0x1c0] sm:$0xff] %v4444
      %4468 = vst [vmem:[#allocation3 + $0x1c8] sm:$0xff] %v4446
      %4469 = vst [vmem:[#allocation3 + $0x1d0] sm:$0xff] %v4448
      %4470 = vst [vmem:[#allocation3 + $0x1d8] sm:$0xff] %v4450
      %4471 = vst [vmem:[#allocation3 + $0x1e0] sm:$0xff] %v4452
      %4472 = vst [vmem:[#allocation3 + $0x1e8] sm:$0xff] %v4454
      %4473 = vst [vmem:[#allocation3 + $0x1f0] sm:$0xff] %v4456
      %4474 = vst [vmem:[#allocation3 + $0x1f8] sm:$0xff] %v4458
      %v4475 = vld [vmem:[#allocation2 + $0x4] sm:$0xff]
      %v4476 = vld [vmem:[#allocation2 + $0xc] sm:$0xff]
      %v4477 = vld [vmem:[#allocation2 + $0x14] sm:$0xff]
      %v4478 = vld [vmem:[#allocation2 + $0x1c] sm:$0xff]
      %v4479 = vld [vmem:[#allocation2 + $0x24] sm:$0xf]
      %v4480 = vld [vmem:[#allocation2 + $0x2c] sm:$0xff]
      %v4481 = vld [vmem:[#allocation2 + $0x34] sm:$0xff]
      %v4482 = vld [vmem:[#allocation2 + $0x3c] sm:$0xff]
      %v4483 = vld [vmem:[#allocation2 + $0x44] sm:$0xff]
      %v4484 = vld [vmem:[#allocation2 + $0x4c] sm:$0xf]
      %v4485 = vld [vmem:[%s1 + $0x20] sm:$0x11]
      %v4486 = vld [vmem:[%s1 + $0x28] sm:$0x11]
      %v4487 = vld [vmem:[%s1 + $0x30] sm:$0x11]
      %v4488 = vld [vmem:[%s1 + $0x38] sm:$0x11]
      %v4493 = vunpack.c.l.b16 %v4485
      %v4494 = vunpack.c.h.b16 %v4485
      %v4495 = vunpack.c.l.b16 %v4486
      %v4496 = vunpack.c.h.b16 %v4486
      %v4497 = vunpack.c.l.b16 %v4487
      %v4498 = vunpack.c.h.b16 %v4487
      %v4499 = vunpack.c.l.b16 %v4488
      %v4500 = vunpack.c.h.b16 %v4488
      %v4501 = vpack.c.b16 %v4493, %v4493
      %v4502 = vpack.c.b16 %v4494, %v4494
      %v4503 = vpack.c.b16 %v4495, %v4495
      %v4504 = vpack.c.b16 %v4496, %v4496
      %v4505 = vpack.c.b16 %v4497, %v4497
      %v4506 = vpack.c.b16 %v4498, %v4498
      %v4507 = vpack.c.b16 %v4499, %v4499
      %v4508 = vpack.c.b16 %v4500, %v4500
      %v4510 = vpack.i.b16 %v4501, %v4501
      %v4512 = vlaneseq
      %v4513 = vshrl.u32 %v4512, 7
      %v4514 = vsub.s32 0, %v4513
      %v4515 = vrot.slane %v4510, %v4514
      %v4517 = vpack.i.b16 %v4502, %v4502
      %v4519 = vlaneseq
      %v4520 = vshrl.u32 %v4519, 7
      %v4521 = vsub.s32 0, %v4520
      %v4522 = vrot.slane %v4517, %v4521
      %v4524 = vpack.i.b16 %v4503, %v4503
      %v4526 = vlaneseq
      %v4527 = vshrl.u32 %v4526, 7
      %v4528 = vsub.s32 0, %v4527
      %v4529 = vrot.slane %v4524, %v4528
      %v4531 = vpack.i.b16 %v4504, %v4504
      %v4533 = vlaneseq
      %v4534 = vshrl.u32 %v4533, 7
      %v4535 = vsub.s32 0, %v4534
      %v4536 = vrot.slane %v4531, %v4535
      %v4538 = vpack.i.b16 %v4505, %v4505
      %v4540 = vlaneseq
      %v4541 = vshrl.u32 %v4540, 7
      %v4542 = vsub.s32 0, %v4541
      %v4543 = vrot.slane %v4538, %v4542
      %v4545 = vpack.i.b16 %v4506, %v4506
      %v4547 = vlaneseq
      %v4548 = vshrl.u32 %v4547, 7
      %v4549 = vsub.s32 0, %v4548
      %v4550 = vrot.slane %v4545, %v4549
      %v4552 = vpack.i.b16 %v4507, %v4507
      %v4554 = vlaneseq
      %v4555 = vshrl.u32 %v4554, 7
      %v4556 = vsub.s32 0, %v4555
      %v4557 = vrot.slane %v4552, %v4556
      %v4559 = vpack.i.b16 %v4508, %v4508
      %v4561 = vlaneseq
      %v4562 = vshrl.u32 %v4561, 7
      %v4563 = vsub.s32 0, %v4562
      %v4564 = vrot.slane %v4559, %v4563
      %v4573 = vunpack.c.l.b16 %v4515
      %v4574 = vunpack.c.l.b16 %v4522
      %v4575 = vunpack.c.l.b16 %v4529
      %v4576 = vunpack.c.l.b16 %v4536
      %v4577 = vunpack.c.l.b16 %v4543
      %v4578 = vunpack.c.l.b16 %v4550
      %v4579 = vunpack.c.l.b16 %v4557
      %v4580 = vunpack.c.l.b16 %v4564
      %v4581 = vpack.c.b16 %v4574, %v4573
      %v4582 = vpack.c.b16 %v4576, %v4575
      %v4583 = vpack.c.b16 %v4578, %v4577
      %v4584 = vpack.c.b16 %v4580, %v4579
      %4585 = vrot.lane.b32.xlu0 %v4581, 17
      %v4586 = vpop.permute.xlu0 %4585
      %4587 = vrot.lane.b32.xlu0 %v4582, 17
      %v4588 = vpop.permute.xlu0 %4587
      %4589 = vrot.lane.b32.xlu0 %v4583, 17
      %v4590 = vpop.permute.xlu0 %4589
      %4591 = vrot.lane.b32.xlu0 %v4584, 17
      %v4592 = vpop.permute.xlu0 %4591
      %v4593 = vrot.slane %v4586, 4
      %v4594 = vrot.slane %v4588, 4
      %v4595 = vrot.slane %v4590, 4
      %v4596 = vrot.slane %v4592, 4
      %v4597 = vsel %vm570, %v4593, %v4586
      %v4598 = vsel %vm507, %v4593, %v4594
      %v4599 = vsel %vm570, %v4598, %v4588
      %v4600 = vsel %vm507, %v4594, %v4595
      %v4601 = vsel %vm570, %v4600, %v4590
      %v4602 = vsel %vm507, %v4595, %v4596
      %v4603 = vsel %vm570, %v4602, %v4592
      %v4609 = vmul.bf16 %v4475, %v4597
      %v4610 = vmul.bf16 %v4476, %v4599
      %v4611 = vmul.bf16 %v4477, %v4601
      %v4612 = vmul.bf16 %v4478, %v4603
      %v4613 = vmul.bf16 %v4479, %v4596
      %v4614 = vmul.bf16 %v4480, %v4597
      %v4615 = vmul.bf16 %v4481, %v4599
      %v4616 = vmul.bf16 %v4482, %v4601
      %v4617 = vmul.bf16 %v4483, %v4603
      %v4618 = vmul.bf16 %v4484, %v4596
      %4629 = vrot.lane.b32.xlu0 %v4609, 111
      %v4630 = vpop.permute.xlu0 %4629
      %4631 = vrot.lane.b32.xlu0 %v4610, 111
      %v4632 = vpop.permute.xlu0 %4631
      %4633 = vrot.lane.b32.xlu0 %v4611, 111
      %v4634 = vpop.permute.xlu0 %4633
      %4635 = vrot.lane.b32.xlu0 %v4612, 111
      %v4636 = vpop.permute.xlu0 %4635
      %4637 = vrot.lane.b32.xlu0 %v4613, 111
      %v4638 = vpop.permute.xlu0 %4637
      %4639 = vrot.lane.b32.xlu0 %v4614, 111
      %v4640 = vpop.permute.xlu0 %4639
      %4641 = vrot.lane.b32.xlu0 %v4615, 111
      %v4642 = vpop.permute.xlu0 %4641
      %4643 = vrot.lane.b32.xlu0 %v4616, 111
      %v4644 = vpop.permute.xlu0 %4643
      %4645 = vrot.lane.b32.xlu0 %v4617, 111
      %v4646 = vpop.permute.xlu0 %4645
      %4647 = vrot.lane.b32.xlu0 %v4618, 111
      %v4648 = vpop.permute.xlu0 %4647
      %v4649 = vrot.slane %v4630, 4
      %v4650 = vrot.slane %v4632, 4
      %v4651 = vrot.slane %v4634, 4
      %v4652 = vrot.slane %v4636, 4
      %v4653 = vrot.slane %v4638, 4
      %v4654 = vrot.slane %v4640, 4
      %v4655 = vrot.slane %v4642, 4
      %v4656 = vrot.slane %v4644, 4
      %v4657 = vrot.slane %v4646, 4
      %v4658 = vrot.slane %v4648, 4
      %v4659 = vsel %vm507, %v4649, %v4650
      %v4660 = vsel %vm505, %v4630, %v4659
      %v4661 = vsel %vm507, %v4650, %v4651
      %v4662 = vsel %vm505, %v4632, %v4661
      %v4663 = vsel %vm507, %v4651, %v4652
      %v4664 = vsel %vm505, %v4634, %v4663
      %v4665 = vsel %vm507, %v4652, %v4653
      %v4666 = vsel %vm505, %v4636, %v4665
      %v4667 = vsel %vm507, %v4654, %v4655
      %v4668 = vsel %vm505, %v4640, %v4667
      %v4669 = vsel %vm507, %v4655, %v4656
      %v4670 = vsel %vm505, %v4642, %v4669
      %v4671 = vsel %vm507, %v4656, %v4657
      %v4672 = vsel %vm505, %v4644, %v4671
      %v4673 = vsel %vm507, %v4657, %v4658
      %v4674 = vsel %vm505, %v4646, %v4673
      %4683 = vst [vmem:[#allocation3 + $0x200] sm:$0xff] %v4660
      %4684 = vst [vmem:[#allocation3 + $0x208] sm:$0xff] %v4662
      %4685 = vst [vmem:[#allocation3 + $0x210] sm:$0xff] %v4664
      %4686 = vst [vmem:[#allocation3 + $0x218] sm:$0xff] %v4666
      %4687 = vst [vmem:[#allocation3 + $0x220] sm:$0xff] %v4668
      %4688 = vst [vmem:[#allocation3 + $0x228] sm:$0xff] %v4670
      %4689 = vst [vmem:[#allocation3 + $0x230] sm:$0xff] %v4672
      %4690 = vst [vmem:[#allocation3 + $0x238] sm:$0xff] %v4674
      %v4691 = vld [vmem:[%s5] sm:$0xff]
      %v4692 = vld [vmem:[%s5 + $0x8] sm:$0xff]
      %v4693 = vld [vmem:[#allocation3] sm:$0xff]
      %v4694 = vld [vmem:[#allocation3 + $0x8] sm:$0xff]
      %v4695 = vld [vmem:[#allocation3 + $0x10] sm:$0xff]
      %v4696 = vld [vmem:[#allocation3 + $0x18] sm:$0xff]
      %v4697 = vld [vmem:[#allocation3 + $0x20] sm:$0xff]
      %v4698 = vld [vmem:[#allocation3 + $0x28] sm:$0xff]
      %v4699 = vld [vmem:[#allocation3 + $0x30] sm:$0xff]
      %v4700 = vld [vmem:[#allocation3 + $0x38] sm:$0xff]
      %v4701 = vld [vmem:[#allocation3 + $0x40] sm:$0xff]
      %v4702 = vld [vmem:[#allocation3 + $0x48] sm:$0xff]
      %v4703 = vld [vmem:[#allocation3 + $0x50] sm:$0xff]
      %v4704 = vld [vmem:[#allocation3 + $0x58] sm:$0xff]
      %v4705 = vld [vmem:[#allocation3 + $0x60] sm:$0xff]
      %v4706 = vld [vmem:[#allocation3 + $0x68] sm:$0xff]
      %v4707 = vld [vmem:[#allocation3 + $0x70] sm:$0xff]
      %v4708 = vld [vmem:[#allocation3 + $0x78] sm:$0xff]
      %v4709 = vld [vmem:[#allocation3 + $0x80] sm:$0xff]
      %v4710 = vld [vmem:[#allocation3 + $0x88] sm:$0xff]
      %v4711 = vld [vmem:[#allocation3 + $0x90] sm:$0xff]
      %v4712 = vld [vmem:[#allocation3 + $0x98] sm:$0xff]
      %v4713 = vld [vmem:[#allocation3 + $0xa0] sm:$0xff]
      %v4714 = vld [vmem:[#allocation3 + $0xa8] sm:$0xff]
      %v4715 = vld [vmem:[#allocation3 + $0xb0] sm:$0xff]
      %v4716 = vld [vmem:[#allocation3 + $0xb8] sm:$0xff]
      %v4717 = vld [vmem:[#allocation3 + $0xc0] sm:$0xff]
      %v4718 = vld [vmem:[#allocation3 + $0xc8] sm:$0xff]
      %v4719 = vld [vmem:[#allocation3 + $0xd0] sm:$0xff]
      %v4720 = vld [vmem:[#allocation3 + $0xd8] sm:$0xff]
      %v4721 = vld [vmem:[#allocation3 + $0xe0] sm:$0xff]
      %v4722 = vld [vmem:[#allocation3 + $0xe8] sm:$0xff]
      %v4723 = vld [vmem:[#allocation3 + $0xf0] sm:$0xff]
      %v4724 = vld [vmem:[#allocation3 + $0xf8] sm:$0xff]
      %v4725 = vld [vmem:[#allocation3 + $0x100] sm:$0xff]
      %v4726 = vld [vmem:[#allocation3 + $0x108] sm:$0xff]
      %v4727 = vld [vmem:[#allocation3 + $0x110] sm:$0xff]
      %v4728 = vld [vmem:[#allocation3 + $0x118] sm:$0xff]
      %v4729 = vld [vmem:[#allocation3 + $0x120] sm:$0xff]
      %v4730 = vld [vmem:[#allocation3 + $0x128] sm:$0xff]
      %v4731 = vld [vmem:[#allocation3 + $0x130] sm:$0xff]
      %v4732 = vld [vmem:[#allocation3 + $0x138] sm:$0xff]
      %v4733 = vld [vmem:[#allocation3 + $0x140] sm:$0xff]
      %v4734 = vld [vmem:[#allocation3 + $0x148] sm:$0xff]
      %v4735 = vld [vmem:[#allocation3 + $0x150] sm:$0xff]
      %v4736 = vld [vmem:[#allocation3 + $0x158] sm:$0xff]
      %v4737 = vld [vmem:[#allocation3 + $0x160] sm:$0xff]
      %v4738 = vld [vmem:[#allocation3 + $0x168] sm:$0xff]
      %v4739 = vld [vmem:[#allocation3 + $0x170] sm:$0xff]
      %v4740 = vld [vmem:[#allocation3 + $0x178] sm:$0xff]
      %v4741 = vld [vmem:[#allocation3 + $0x180] sm:$0xff]
      %v4742 = vld [vmem:[#allocation3 + $0x188] sm:$0xff]
      %v4743 = vld [vmem:[#allocation3 + $0x190] sm:$0xff]
      %v4744 = vld [vmem:[#allocation3 + $0x198] sm:$0xff]
      %v4745 = vld [vmem:[#allocation3 + $0x1a0] sm:$0xff]
      %v4746 = vld [vmem:[#allocation3 + $0x1a8] sm:$0xff]
      %v4747 = vld [vmem:[#allocation3 + $0x1b0] sm:$0xff]
      %v4748 = vld [vmem:[#allocation3 + $0x1b8] sm:$0xff]
      %v4749 = vld [vmem:[#allocation3 + $0x1c0] sm:$0xff]
      %v4750 = vld [vmem:[#allocation3 + $0x1c8] sm:$0xff]
      %v4751 = vld [vmem:[#allocation3 + $0x1d0] sm:$0xff]
      %v4752 = vld [vmem:[#allocation3 + $0x1d8] sm:$0xff]
      %v4753 = vld [vmem:[#allocation3 + $0x1e0] sm:$0xff]
      %v4754 = vld [vmem:[#allocation3 + $0x1e8] sm:$0xff]
      %v4755 = vld [vmem:[#allocation3 + $0x1f0] sm:$0xff]
      %v4756 = vld [vmem:[#allocation3 + $0x1f8] sm:$0xff]
      %v4757 = vld [vmem:[#allocation3 + $0x200] sm:$0xff]
      %v4758 = vld [vmem:[#allocation3 + $0x208] sm:$0xff]
      %v4759 = vld [vmem:[#allocation3 + $0x210] sm:$0xff]
      %v4760 = vld [vmem:[#allocation3 + $0x218] sm:$0xff]
      %v4761 = vld [vmem:[#allocation3 + $0x220] sm:$0xff]
      %v4762 = vld [vmem:[#allocation3 + $0x228] sm:$0xff]
      %v4763 = vld [vmem:[#allocation3 + $0x230] sm:$0xff]
      %v4764 = vld [vmem:[#allocation3 + $0x238] sm:$0xff]
      %v4767 = vunpack.c.l.b16 %v4691
      %v4768 = vunpack.c.h.b16 %v4691
      %v4769 = vunpack.c.l.b16 %v4692
      %v4770 = vunpack.c.h.b16 %v4692
      %v4771 = vpack.c.b16 %v4769, %v4767
      %v4772 = vpack.c.b16 %v4770, %v4768
      %v4846 = vunpack.c.l.b16 %v4693
      %v4847 = vunpack.c.h.b16 %v4693
      %v4848 = vunpack.c.l.b16 %v4694
      %v4849 = vunpack.c.h.b16 %v4694
      %v4850 = vunpack.c.l.b16 %v4695
      %v4851 = vunpack.c.h.b16 %v4695
      %v4852 = vunpack.c.l.b16 %v4696
      %v4853 = vunpack.c.h.b16 %v4696
      %v4854 = vunpack.c.l.b16 %v4697
      %v4855 = vunpack.c.h.b16 %v4697
      %v4856 = vunpack.c.l.b16 %v4698
      %v4857 = vunpack.c.h.b16 %v4698
      %v4858 = vunpack.c.l.b16 %v4699
      %v4859 = vunpack.c.h.b16 %v4699
      %v4860 = vunpack.c.l.b16 %v4700
      %v4861 = vunpack.c.h.b16 %v4700
      %v4862 = vunpack.c.l.b16 %v4701
      %v4863 = vunpack.c.h.b16 %v4701
      %v4864 = vunpack.c.l.b16 %v4702
      %v4865 = vunpack.c.h.b16 %v4702
      %v4866 = vunpack.c.l.b16 %v4703
      %v4867 = vunpack.c.h.b16 %v4703
      %v4868 = vunpack.c.l.b16 %v4704
      %v4869 = vunpack.c.h.b16 %v4704
      %v4870 = vunpack.c.l.b16 %v4705
      %v4871 = vunpack.c.h.b16 %v4705
      %v4872 = vunpack.c.l.b16 %v4706
      %v4873 = vunpack.c.h.b16 %v4706
      %v4874 = vunpack.c.l.b16 %v4707
      %v4875 = vunpack.c.h.b16 %v4707
      %v4876 = vunpack.c.l.b16 %v4708
      %v4877 = vunpack.c.h.b16 %v4708
      %v4878 = vunpack.c.l.b16 %v4709
      %v4879 = vunpack.c.h.b16 %v4709
      %v4880 = vunpack.c.l.b16 %v4710
      %v4881 = vunpack.c.h.b16 %v4710
      %v4882 = vunpack.c.l.b16 %v4711
      %v4883 = vunpack.c.h.b16 %v4711
      %v4884 = vunpack.c.l.b16 %v4712
      %v4885 = vunpack.c.h.b16 %v4712
      %v4886 = vunpack.c.l.b16 %v4713
      %v4887 = vunpack.c.h.b16 %v4713
      %v4888 = vunpack.c.l.b16 %v4714
      %v4889 = vunpack.c.h.b16 %v4714
      %v4890 = vunpack.c.l.b16 %v4715
      %v4891 = vunpack.c.h.b16 %v4715
      %v4892 = vunpack.c.l.b16 %v4716
      %v4893 = vunpack.c.h.b16 %v4716
      %v4894 = vunpack.c.l.b16 %v4717
      %v4895 = vunpack.c.h.b16 %v4717
      %v4896 = vunpack.c.l.b16 %v4718
      %v4897 = vunpack.c.h.b16 %v4718
      %v4898 = vunpack.c.l.b16 %v4719
      %v4899 = vunpack.c.h.b16 %v4719
      %v4900 = vunpack.c.l.b16 %v4720
      %v4901 = vunpack.c.h.b16 %v4720
      %v4902 = vunpack.c.l.b16 %v4721
      %v4903 = vunpack.c.h.b16 %v4721
      %v4904 = vunpack.c.l.b16 %v4722
      %v4905 = vunpack.c.h.b16 %v4722
      %v4906 = vunpack.c.l.b16 %v4723
      %v4907 = vunpack.c.h.b16 %v4723
      %v4908 = vunpack.c.l.b16 %v4724
      %v4909 = vunpack.c.h.b16 %v4724
      %v4910 = vunpack.c.l.b16 %v4725
      %v4911 = vunpack.c.h.b16 %v4725
      %v4912 = vunpack.c.l.b16 %v4726
      %v4913 = vunpack.c.h.b16 %v4726
      %v4914 = vunpack.c.l.b16 %v4727
      %v4915 = vunpack.c.h.b16 %v4727
      %v4916 = vunpack.c.l.b16 %v4728
      %v4917 = vunpack.c.h.b16 %v4728
      %v4918 = vunpack.c.l.b16 %v4729
      %v4919 = vunpack.c.h.b16 %v4729
      %v4920 = vunpack.c.l.b16 %v4730
      %v4921 = vunpack.c.h.b16 %v4730
      %v4922 = vunpack.c.l.b16 %v4731
      %v4923 = vunpack.c.h.b16 %v4731
      %v4924 = vunpack.c.l.b16 %v4732
      %v4925 = vunpack.c.h.b16 %v4732
      %v4926 = vunpack.c.l.b16 %v4733
      %v4927 = vunpack.c.h.b16 %v4733
      %v4928 = vunpack.c.l.b16 %v4734
      %v4929 = vunpack.c.h.b16 %v4734
      %v4930 = vunpack.c.l.b16 %v4735
      %v4931 = vunpack.c.h.b16 %v4735
      %v4932 = vunpack.c.l.b16 %v4736
      %v4933 = vunpack.c.h.b16 %v4736
      %v4934 = vunpack.c.l.b16 %v4737
      %v4935 = vunpack.c.h.b16 %v4737
      %v4936 = vunpack.c.l.b16 %v4738
      %v4937 = vunpack.c.h.b16 %v4738
      %v4938 = vunpack.c.l.b16 %v4739
      %v4939 = vunpack.c.h.b16 %v4739
      %v4940 = vunpack.c.l.b16 %v4740
      %v4941 = vunpack.c.h.b16 %v4740
      %v4942 = vunpack.c.l.b16 %v4741
      %v4943 = vunpack.c.h.b16 %v4741
      %v4944 = vunpack.c.l.b16 %v4742
      %v4945 = vunpack.c.h.b16 %v4742
      %v4946 = vunpack.c.l.b16 %v4743
      %v4947 = vunpack.c.h.b16 %v4743
      %v4948 = vunpack.c.l.b16 %v4744
      %v4949 = vunpack.c.h.b16 %v4744
      %v4950 = vunpack.c.l.b16 %v4745
      %v4951 = vunpack.c.h.b16 %v4745
      %v4952 = vunpack.c.l.b16 %v4746
      %v4953 = vunpack.c.h.b16 %v4746
      %v4954 = vunpack.c.l.b16 %v4747
      %v4955 = vunpack.c.h.b16 %v4747
      %v4956 = vunpack.c.l.b16 %v4748
      %v4957 = vunpack.c.h.b16 %v4748
      %v4958 = vunpack.c.l.b16 %v4749
      %v4959 = vunpack.c.h.b16 %v4749
      %v4960 = vunpack.c.l.b16 %v4750
      %v4961 = vunpack.c.h.b16 %v4750
      %v4962 = vunpack.c.l.b16 %v4751
      %v4963 = vunpack.c.h.b16 %v4751
      %v4964 = vunpack.c.l.b16 %v4752
      %v4965 = vunpack.c.h.b16 %v4752
      %v4966 = vunpack.c.l.b16 %v4753
      %v4967 = vunpack.c.h.b16 %v4753
      %v4968 = vunpack.c.l.b16 %v4754
      %v4969 = vunpack.c.h.b16 %v4754
      %v4970 = vunpack.c.l.b16 %v4755
      %v4971 = vunpack.c.h.b16 %v4755
      %v4972 = vunpack.c.l.b16 %v4756
      %v4973 = vunpack.c.h.b16 %v4756
      %v4974 = vunpack.c.l.b16 %v4757
      %v4975 = vunpack.c.h.b16 %v4757
      %v4976 = vunpack.c.l.b16 %v4758
      %v4977 = vunpack.c.h.b16 %v4758
      %v4978 = vunpack.c.l.b16 %v4759
      %v4979 = vunpack.c.h.b16 %v4759
      %v4980 = vunpack.c.l.b16 %v4760
      %v4981 = vunpack.c.h.b16 %v4760
      %v4982 = vunpack.c.l.b16 %v4761
      %v4983 = vunpack.c.h.b16 %v4761
      %v4984 = vunpack.c.l.b16 %v4762
      %v4985 = vunpack.c.h.b16 %v4762
      %v4986 = vunpack.c.l.b16 %v4763
      %v4987 = vunpack.c.h.b16 %v4763
      %v4988 = vunpack.c.l.b16 %v4764
      %v4989 = vunpack.c.h.b16 %v4764
      %v4990 = vpack.c.b16 %v4854, %v4846
      %v4991 = vpack.c.b16 %v4855, %v4847
      %v4992 = vpack.c.b16 %v4856, %v4848
      %v4993 = vpack.c.b16 %v4857, %v4849
      %v4994 = vpack.c.b16 %v4858, %v4850
      %v4995 = vpack.c.b16 %v4859, %v4851
      %v4996 = vpack.c.b16 %v4860, %v4852
      %v4997 = vpack.c.b16 %v4861, %v4853
      %v4998 = vpack.c.b16 %v4870, %v4862
      %v4999 = vpack.c.b16 %v4871, %v4863
      %v5000 = vpack.c.b16 %v4872, %v4864
      %v5001 = vpack.c.b16 %v4873, %v4865
      %v5002 = vpack.c.b16 %v4874, %v4866
      %v5003 = vpack.c.b16 %v4875, %v4867
      %v5004 = vpack.c.b16 %v4876, %v4868
      %v5005 = vpack.c.b16 %v4877, %v4869
      %v5006 = vpack.c.b16 %v4886, %v4878
      %v5007 = vpack.c.b16 %v4887, %v4879
      %v5008 = vpack.c.b16 %v4888, %v4880
      %v5009 = vpack.c.b16 %v4889, %v4881
      %v5010 = vpack.c.b16 %v4890, %v4882
      %v5011 = vpack.c.b16 %v4891, %v4883
      %v5012 = vpack.c.b16 %v4892, %v4884
      %v5013 = vpack.c.b16 %v4893, %v4885
      %v5014 = vpack.c.b16 %v4902, %v4894
      %v5015 = vpack.c.b16 %v4903, %v4895
      %v5016 = vpack.c.b16 %v4904, %v4896
      %v5017 = vpack.c.b16 %v4905, %v4897
      %v5018 = vpack.c.b16 %v4906, %v4898
      %v5019 = vpack.c.b16 %v4907, %v4899
      %v5020 = vpack.c.b16 %v4908, %v4900
      %v5021 = vpack.c.b16 %v4909, %v4901
      %v5022 = vpack.c.b16 %v4918, %v4910
      %v5023 = vpack.c.b16 %v4919, %v4911
      %v5024 = vpack.c.b16 %v4920, %v4912
      %v5025 = vpack.c.b16 %v4921, %v4913
      %v5026 = vpack.c.b16 %v4922, %v4914
      %v5027 = vpack.c.b16 %v4923, %v4915
      %v5028 = vpack.c.b16 %v4924, %v4916
      %v5029 = vpack.c.b16 %v4925, %v4917
      %v5030 = vpack.c.b16 %v4934, %v4926
      %v5031 = vpack.c.b16 %v4935, %v4927
      %v5032 = vpack.c.b16 %v4936, %v4928
      %v5033 = vpack.c.b16 %v4937, %v4929
      %v5034 = vpack.c.b16 %v4938, %v4930
      %v5035 = vpack.c.b16 %v4939, %v4931
      %v5036 = vpack.c.b16 %v4940, %v4932
      %v5037 = vpack.c.b16 %v4941, %v4933
      %v5038 = vpack.c.b16 %v4950, %v4942
      %v5039 = vpack.c.b16 %v4951, %v4943
      %v5040 = vpack.c.b16 %v4952, %v4944
      %v5041 = vpack.c.b16 %v4953, %v4945
      %v5042 = vpack.c.b16 %v4954, %v4946
      %v5043 = vpack.c.b16 %v4955, %v4947
      %v5044 = vpack.c.b16 %v4956, %v4948
      %v5045 = vpack.c.b16 %v4957, %v4949
      %v5046 = vpack.c.b16 %v4966, %v4958
      %v5047 = vpack.c.b16 %v4967, %v4959
      %v5048 = vpack.c.b16 %v4968, %v4960
      %v5049 = vpack.c.b16 %v4969, %v4961
      %v5050 = vpack.c.b16 %v4970, %v4962
      %v5051 = vpack.c.b16 %v4971, %v4963
      %v5052 = vpack.c.b16 %v4972, %v4964
      %v5053 = vpack.c.b16 %v4973, %v4965
      %v5054 = vpack.c.b16 %v4982, %v4974
      %v5055 = vpack.c.b16 %v4983, %v4975
      %v5056 = vpack.c.b16 %v4984, %v4976
      %v5057 = vpack.c.b16 %v4985, %v4977
      %v5058 = vpack.c.b16 %v4986, %v4978
      %v5059 = vpack.c.b16 %v4987, %v4979
      %v5060 = vpack.c.b16 %v4988, %v4980
      %v5061 = vpack.c.b16 %v4989, %v4981
      %v5135 = vsel %vm2611, %v4772, 0
      %5137 = vmatprep.subr.bf16.mxu0 %v5047
      %5138 = vmatpush1.bf16.msra.mxu0 %v5046
      %5139 = vmatprep.subr.bf16.mxu0 %v5039
      %5140 = vmatpush1.bf16.msra.mxu0 %v5038
      %5141 = vmatprep.subr.bf16.mxu0 %v5031
      %5142 = vmatpush1.bf16.msra.mxu0 %v5030
      %5143 = vmatprep.subr.bf16.mxu0 %v5023
      %5144 = vmatpush1.bf16.msra.mxu0 %v5022
      %5145 = vmatprep.subr.bf16.mxu0 %v5015
      %5146 = vmatpush1.bf16.msra.mxu0 %v5014
      %5147 = vmatprep.subr.bf16.mxu0 %v5007
      %5148 = vmatpush1.bf16.msra.mxu0 %v5006
      %5149 = vmatprep.subr.bf16.mxu0 %v4999
      %5150 = vmatpush1.bf16.msra.mxu0 %v4998
      %5151 = vmatprep.subr.bf16.mxu0 %v4991
      %5152 = vmatpush1.bf16.msra.mxu0 %v4990
      %5153 = vmatprep.subr.bf16.mxu0 0
      %5154 = vmatpush2.bf16.msra.mxu0 0
      %5155 = vmatprep.subr.bf16.mxu0 0
      %5156 = vmatpush2.bf16.msra.mxu0 0
      %5157 = vmatprep.subr.bf16.mxu0 0
      %5158 = vmatpush2.bf16.msra.mxu0 0
      %5159 = vmatprep.subr.bf16.mxu0 0
      %5160 = vmatpush2.bf16.msra.mxu0 0
      %5161 = vmatprep.subr.bf16.mxu0 0
      %5162 = vmatpush2.bf16.msra.mxu0 0
      %5163 = vmatprep.subr.bf16.mxu0 0
      %5164 = vmatpush2.bf16.msra.mxu0 0
      %5165 = vmatprep.subr.bf16.mxu0 0
      %5166 = vmatpush2.bf16.msra.mxu0 0
      %5167 = vmatprep.subr.bf16.mxu0 %v5055
      %5168 = vmatpush2.bf16.msra.mxu0 %v5054
      %5169 = vmatprep.mubr.bf16.mxu0 %v5135
      %5170 = vmatmul.mubr.bf16.gmra.mxu0 %v4771
      %v5171 = vpop.f32.mrf.mxu0
      %v5172 = vadd.f32 0.0, %v5171
      %v5173 = vpop.f32.mrf.mxu0
      %v5174 = vadd.f32 0.0, %v5173
      %v5175 = vpop.f32.mrf.mxu0
      %v5176 = vadd.f32 0.0, %v5175
      %v5177 = vpop.f32.mrf.mxu0
      %v5178 = vadd.f32 0.0, %v5177
      %5179 = vdwg.mxu0
      %5180 = vmatprep.subr.bf16.mxu0 %v5049
      %5181 = vmatpush1.bf16.msra.mxu0 %v5048
      %5182 = vmatprep.subr.bf16.mxu0 %v5041
      %5183 = vmatpush1.bf16.msra.mxu0 %v5040
      %5184 = vmatprep.subr.bf16.mxu0 %v5033
      %5185 = vmatpush1.bf16.msra.mxu0 %v5032
      %5186 = vmatprep.subr.bf16.mxu0 %v5025
      %5187 = vmatpush1.bf16.msra.mxu0 %v5024
      %5188 = vmatprep.subr.bf16.mxu0 %v5017
      %5189 = vmatpush1.bf16.msra.mxu0 %v5016
      %5190 = vmatprep.subr.bf16.mxu0 %v5009
      %5191 = vmatpush1.bf16.msra.mxu0 %v5008
      %5192 = vmatprep.subr.bf16.mxu0 %v5001
      %5193 = vmatpush1.bf16.msra.mxu0 %v5000
      %5194 = vmatprep.subr.bf16.mxu0 %v4993
      %5195 = vmatpush1.bf16.msra.mxu0 %v4992
      %5196 = vmatprep.subr.bf16.mxu0 0
      %5197 = vmatpush2.bf16.msra.mxu0 0
      %5198 = vmatprep.subr.bf16.mxu0 0
      %5199 = vmatpush2.bf16.msra.mxu0 0
      %5200 = vmatprep.subr.bf16.mxu0 0
      %5201 = vmatpush2.bf16.msra.mxu0 0
      %5202 = vmatprep.subr.bf16.mxu0 0
      %5203 = vmatpush2.bf16.msra.mxu0 0
      %5204 = vmatprep.subr.bf16.mxu0 0
      %5205 = vmatpush2.bf16.msra.mxu0 0
      %5206 = vmatprep.subr.bf16.mxu0 0
      %5207 = vmatpush2.bf16.msra.mxu0 0
      %5208 = vmatprep.subr.bf16.mxu0 0
      %5209 = vmatpush2.bf16.msra.mxu0 0
      %5210 = vmatprep.subr.bf16.mxu0 %v5057
      %5211 = vmatpush2.bf16.msra.mxu0 %v5056
      %5212 = vmatprep.mubr.bf16.mxu0 %v5135
      %5213 = vmatmul.mubr.bf16.gmra.mxu0 %v4771
      %v5214 = vpop.f32.mrf.mxu0
      %v5215 = vadd.f32 0.0, %v5214
      %v5216 = vpop.f32.mrf.mxu0
      %v5217 = vadd.f32 0.0, %v5216
      %v5218 = vpop.f32.mrf.mxu0
      %v5219 = vadd.f32 0.0, %v5218
      %v5220 = vpop.f32.mrf.mxu0
      %v5221 = vadd.f32 0.0, %v5220
      %5222 = vdwg.mxu0
      %5223 = vmatprep.subr.bf16.mxu0 %v5051
      %5224 = vmatpush1.bf16.msra.mxu0 %v5050
      %5225 = vmatprep.subr.bf16.mxu0 %v5043
      %5226 = vmatpush1.bf16.msra.mxu0 %v5042
      %5227 = vmatprep.subr.bf16.mxu0 %v5035
      %5228 = vmatpush1.bf16.msra.mxu0 %v5034
      %5229 = vmatprep.subr.bf16.mxu0 %v5027
      %5230 = vmatpush1.bf16.msra.mxu0 %v5026
      %5231 = vmatprep.subr.bf16.mxu0 %v5019
      %5232 = vmatpush1.bf16.msra.mxu0 %v5018
      %5233 = vmatprep.subr.bf16.mxu0 %v5011
      %5234 = vmatpush1.bf16.msra.mxu0 %v5010
      %5235 = vmatprep.subr.bf16.mxu0 %v5003
      %5236 = vmatpush1.bf16.msra.mxu0 %v5002
      %5237 = vmatprep.subr.bf16.mxu0 %v4995
      %5238 = vmatpush1.bf16.msra.mxu0 %v4994
      %5239 = vmatprep.subr.bf16.mxu0 0
      %5240 = vmatpush2.bf16.msra.mxu0 0
      %5241 = vmatprep.subr.bf16.mxu0 0
      %5242 = vmatpush2.bf16.msra.mxu0 0
      %5243 = vmatprep.subr.bf16.mxu0 0
      %5244 = vmatpush2.bf16.msra.mxu0 0
      %5245 = vmatprep.subr.bf16.mxu0 0
      %5246 = vmatpush2.bf16.msra.mxu0 0
      %5247 = vmatprep.subr.bf16.mxu0 0
      %5248 = vmatpush2.bf16.msra.mxu0 0
      %5249 = vmatprep.subr.bf16.mxu0 0
      %5250 = vmatpush2.bf16.msra.mxu0 0
      %5251 = vmatprep.subr.bf16.mxu0 0
      %5252 = vmatpush2.bf16.msra.mxu0 0
      %5253 = vmatprep.subr.bf16.mxu0 %v5059
      %5254 = vmatpush2.bf16.msra.mxu0 %v5058
      %5255 = vmatprep.mubr.bf16.mxu0 %v5135
      %5256 = vmatmul.mubr.bf16.gmra.mxu0 %v4771
      %v5257 = vpop.f32.mrf.mxu0
      %v5258 = vadd.f32 0.0, %v5257
      %v5259 = vpop.f32.mrf.mxu0
      %v5260 = vadd.f32 0.0, %v5259
      %v5261 = vpop.f32.mrf.mxu0
      %v5262 = vadd.f32 0.0, %v5261
      %v5263 = vpop.f32.mrf.mxu0
      %v5264 = vadd.f32 0.0, %v5263
      %5265 = vdwg.mxu0
      %5266 = vmatprep.subr.bf16.mxu0 %v5053
      %5267 = vmatpush1.bf16.msra.mxu0 %v5052
      %5268 = vmatprep.subr.bf16.mxu0 %v5045
      %5269 = vmatpush1.bf16.msra.mxu0 %v5044
      %5270 = vmatprep.subr.bf16.mxu0 %v5037
      %5271 = vmatpush1.bf16.msra.mxu0 %v5036
      %5272 = vmatprep.subr.bf16.mxu0 %v5029
      %5273 = vmatpush1.bf16.msra.mxu0 %v5028
      %5274 = vmatprep.subr.bf16.mxu0 %v5021
      %5275 = vmatpush1.bf16.msra.mxu0 %v5020
      %5276 = vmatprep.subr.bf16.mxu0 %v5013
      %5277 = vmatpush1.bf16.msra.mxu0 %v5012
      %5278 = vmatprep.subr.bf16.mxu0 %v5005
      %5279 = vmatpush1.bf16.msra.mxu0 %v5004
      %5280 = vmatprep.subr.bf16.mxu0 %v4997
      %5281 = vmatpush1.bf16.msra.mxu0 %v4996
      %5282 = vmatprep.subr.bf16.mxu0 0
      %5283 = vmatpush2.bf16.msra.mxu0 0
      %5284 = vmatprep.subr.bf16.mxu0 0
      %5285 = vmatpush2.bf16.msra.mxu0 0
      %5286 = vmatprep.subr.bf16.mxu0 0
      %5287 = vmatpush2.bf16.msra.mxu0 0
      %5288 = vmatprep.subr.bf16.mxu0 0
      %5289 = vmatpush2.bf16.msra.mxu0 0
      %5290 = vmatprep.subr.bf16.mxu0 0
      %5291 = vmatpush2.bf16.msra.mxu0 0
      %5292 = vmatprep.subr.bf16.mxu0 0
      %5293 = vmatpush2.bf16.msra.mxu0 0
      %5294 = vmatprep.subr.bf16.mxu0 0
      %5295 = vmatpush2.bf16.msra.mxu0 0
      %5296 = vmatprep.subr.bf16.mxu0 %v5061
      %5297 = vmatpush2.bf16.msra.mxu0 %v5060
      %5298 = vmatprep.mubr.bf16.mxu0 %v5135
      %5299 = vmatmul.mubr.bf16.gmra.mxu0 %v4771
      %v5300 = vpop.f32.mrf.mxu0
      %v5301 = vadd.f32 0.0, %v5300
      %v5302 = vpop.f32.mrf.mxu0
      %v5303 = vadd.f32 0.0, %v5302
      %v5304 = vpop.f32.mrf.mxu0
      %v5305 = vadd.f32 0.0, %v5304
      %v5306 = vpop.f32.mrf.mxu0
      %v5307 = vadd.f32 0.0, %v5306
      %5308 = vdwg.mxu0
      %v5309 = vld [vmem:[%s6] sm:$0xff]
      %v5310 = vld [vmem:[%s6 + $0x8] sm:$0xff]
      %5312 = vset.pattern.permute.xlu0 0
      %5313 = vperm.xlu0 %5312, %v5309
      %v5314 = vpop.permute.xlu0 %5313
      %5317 = vset.pattern.permute.xlu0 0
      %5318 = vperm.xlu0 %5317, %v5310
      %v5319 = vpop.permute.xlu0 %5318
      %v5321 = vmul.f32 %v5172, %v5314
      %v5322 = vmul.f32 %v5174, %v5314
      %v5323 = vmul.f32 %v5215, %v5314
      %v5324 = vmul.f32 %v5217, %v5314
      %v5325 = vmul.f32 %v5258, %v5314
      %v5326 = vmul.f32 %v5260, %v5314
      %v5327 = vmul.f32 %v5301, %v5314
      %v5328 = vmul.f32 %v5303, %v5314
      %v5329 = vmul.f32 %v5176, %v5319
      %v5330 = vmul.f32 %v5178, %v5319
      %v5331 = vmul.f32 %v5219, %v5319
      %v5332 = vmul.f32 %v5221, %v5319
      %v5333 = vmul.f32 %v5262, %v5319
      %v5334 = vmul.f32 %v5264, %v5319
      %v5335 = vmul.f32 %v5305, %v5319
      %v5336 = vmul.f32 %v5307, %v5319
      %v5337 = vld [vmem:[%s7] sm:$0xff]
      %v5338 = vld [vmem:[%s7 + $0x8] sm:$0xff]
      %5340 = vset.pattern.permute.xlu0 0
      %5341 = vperm.xlu0 %5340, %v5337
      %v5342 = vpop.permute.xlu0 %5341
      %5345 = vset.pattern.permute.xlu0 0
      %5346 = vperm.xlu0 %5345, %v5338
      %v5347 = vpop.permute.xlu0 %5346
      %v5349 = vadd.f32 %v5321, %v5342
      %v5350 = vadd.f32 %v5322, %v5342
      %v5351 = vadd.f32 %v5323, %v5342
      %v5352 = vadd.f32 %v5324, %v5342
      %v5353 = vadd.f32 %v5325, %v5342
      %v5354 = vadd.f32 %v5326, %v5342
      %v5355 = vadd.f32 %v5327, %v5342
      %v5356 = vadd.f32 %v5328, %v5342
      %v5357 = vadd.f32 %v5329, %v5347
      %v5358 = vadd.f32 %v5330, %v5347
      %v5359 = vadd.f32 %v5331, %v5347
      %v5360 = vadd.f32 %v5332, %v5347
      %v5361 = vadd.f32 %v5333, %v5347
      %v5362 = vadd.f32 %v5334, %v5347
      %v5363 = vadd.f32 %v5335, %v5347
      %v5364 = vadd.f32 %v5336, %v5347
      %v5365 = vld [vmem:[%s300] sm:$0xff]
      %v5366 = vld [vmem:[%s300 + $0x8] sm:$0xff]
      %v5367 = vld [vmem:[%s300 + $0x10] sm:$0xff]
      %v5368 = vld [vmem:[%s300 + $0x18] sm:$0xff]
      %v5369 = vld [vmem:[%s300 + $0x20] sm:$0xff]
      %v5370 = vld [vmem:[%s300 + $0x28] sm:$0xff]
      %v5371 = vld [vmem:[%s300 + $0x30] sm:$0xff]
      %v5372 = vld [vmem:[%s300 + $0x38] sm:$0xff]
      %v5373 = vld [vmem:[%s300 + $0x40] sm:$0xff]
      %v5374 = vld [vmem:[%s300 + $0x48] sm:$0xff]
      %v5375 = vld [vmem:[%s300 + $0x50] sm:$0xff]
      %v5376 = vld [vmem:[%s300 + $0x58] sm:$0xff]
      %v5377 = vld [vmem:[%s300 + $0x60] sm:$0xff]
      %v5378 = vld [vmem:[%s300 + $0x68] sm:$0xff]
      %v5379 = vld [vmem:[%s300 + $0x70] sm:$0xff]
      %v5380 = vld [vmem:[%s300 + $0x78] sm:$0xff]
      %v5381 = vadd.f32 %v5349, %v5365
      %v5382 = vadd.f32 %v5350, %v5366
      %v5383 = vadd.f32 %v5351, %v5367
      %v5384 = vadd.f32 %v5352, %v5368
      %v5385 = vadd.f32 %v5353, %v5369
      %v5386 = vadd.f32 %v5354, %v5370
      %v5387 = vadd.f32 %v5355, %v5371
      %v5388 = vadd.f32 %v5356, %v5372
      %v5389 = vadd.f32 %v5357, %v5373
      %v5390 = vadd.f32 %v5358, %v5374
      %v5391 = vadd.f32 %v5359, %v5375
      %v5392 = vadd.f32 %v5360, %v5376
      %v5393 = vadd.f32 %v5361, %v5377
      %v5394 = vadd.f32 %v5362, %v5378
      %v5395 = vadd.f32 %v5363, %v5379
      %v5396 = vadd.f32 %v5364, %v5380
      %v5397 = vmax.f32 %v5381, 0.0
      %v5398 = vmax.f32 %v5382, 0.0
      %v5399 = vmax.f32 %v5383, 0.0
      %v5400 = vmax.f32 %v5384, 0.0
      %v5401 = vmax.f32 %v5385, 0.0
      %v5402 = vmax.f32 %v5386, 0.0
      %v5403 = vmax.f32 %v5387, 0.0
      %v5404 = vmax.f32 %v5388, 0.0
      %v5405 = vmax.f32 %v5389, 0.0
      %v5406 = vmax.f32 %v5390, 0.0
      %v5407 = vmax.f32 %v5391, 0.0
      %v5408 = vmax.f32 %v5392, 0.0
      %v5409 = vmax.f32 %v5393, 0.0
      %v5410 = vmax.f32 %v5394, 0.0
      %v5411 = vmax.f32 %v5395, 0.0
      %v5412 = vmax.f32 %v5396, 0.0
      %5413 = vst [vmem:[%s305] sm:$0xff] %v5397
      %5414 = vst [vmem:[%s305 + $0x8] sm:$0xff] %v5398
      %5415 = vst [vmem:[%s305 + $0x10] sm:$0xff] %v5399
      %5416 = vst [vmem:[%s305 + $0x18] sm:$0xff] %v5400
      %5417 = vst [vmem:[%s305 + $0x20] sm:$0xff] %v5401
      %5418 = vst [vmem:[%s305 + $0x28] sm:$0xff] %v5402
      %5419 = vst [vmem:[%s305 + $0x30] sm:$0xff] %v5403
      %5420 = vst [vmem:[%s305 + $0x38] sm:$0xff] %v5404
      %5421 = vst [vmem:[%s305 + $0x40] sm:$0xff] %v5405
      %5422 = vst [vmem:[%s305 + $0x48] sm:$0xff] %v5406
      %5423 = vst [vmem:[%s305 + $0x50] sm:$0xff] %v5407
      %5424 = vst [vmem:[%s305 + $0x58] sm:$0xff] %v5408
      %5425 = vst [vmem:[%s305 + $0x60] sm:$0xff] %v5409
      %5426 = vst [vmem:[%s305 + $0x68] sm:$0xff] %v5410
      %5427 = vst [vmem:[%s305 + $0x70] sm:$0xff] %v5411
      %5428 = vst [vmem:[%s305 + $0x78] sm:$0xff] %v5412
      %p5429 = scmp.lt.s32.totalorder %s19, 1
      %s5430 = scalar_select %p5429, %s19, 1
      %s5431 = smul.addr %s5430, 16
      %s5432 = smul.addr %s5431, 8
      %s5433 = scalar_lea.vmem %s8, %s5432
      // Predicated region
      $region53: #{basic_block_forward.1} parent=51 // pred_check
        %p5434 = pneg %p210
      $region54: #{basic_block_forward.1} parent=51 // pred_check_branch
        %5436 = sbr.rel (%p5434) target = $region56
      $region55: #{basic_block_forward.1} parent=51 // pred_region
        _
      $region56: #{basic_block_forward.1} parent=51 // pred_fallthru
        _
    $region52: #{basic_block_forward.1} parent=5 // pred_fallthru
      _
    %p5437 = scmp.le.s32.totalorder 2, %s14
    // Predicated region
    $region57: #{basic_block_forward.1} parent=5 // pred_check
      %p5438 = pneg %p5437
    $region58: #{basic_block_forward.1} parent=5 // pred_check_branch
      %5440 = sbr.rel (%p5438) target = $region60
    $region59: #{basic_block_forward.1} parent=5 // pred_region
      %s5441 = ssub.s32 %s14, 2
      // Predicated region
      $region61: #{basic_block_forward.1} parent=59 // pred_check
        %p5442 = pneg %p216
      $region62: #{basic_block_forward.1} parent=59 // pred_check_branch
        %5444 = sbr.rel (%p5442) target = $region64
      $region63: #{basic_block_forward.1} parent=59 // pred_region
        %p5445 = scmp.lt.s32.totalorder %s20, 1
        %s5446 = scalar_select %p5445, %s20, 1
        %s5447 = smul.addr %s5446, 16
        %s5448 = smul.addr %s5447, 8
        %s5449 = scalar_lea.vmem %s8, %s5448
      $region64: #{basic_block_forward.1} parent=59 // pred_fallthru
        _
    $region60: #{basic_block_forward.1} parent=5 // pred_fallthru
      _
  $region6: #{basic_block_forward.1} parent=0 // loop_footer
    %s18 = sadd.s32 1, %s14
  $region7: #{basic_block_forward.1} parent=0 // loop_footer_branch
    %13 = sbr.rel target = $region3
  $region8: #{basic_block_forward.1} parent=0 // loop_exit
    _

</llo_original>
